<compile_context>
chip_gen: v6e
topology: v6e:2x2x1
jax: 0.10.0
libtpu: 0.0.40
codegen_flags: <defaults>
</compile_context>

<pallas_src>
import jax
import jax.numpy as jnp
from jax.experimental import pallas as pl
from jax.experimental.pallas import tpu as pltpu

_MIB = 1024 * 1024


# ----------------------------------------------------------------------------
# Small helpers
# ----------------------------------------------------------------------------
def _device_kind():
    try:
        return jax.devices()[0].device_kind.lower()
    except Exception:
        return ""


def _pad128(v):
    return ((v + 127) // 128) * 128


def _pick_block(total, target):
    """Largest divisor of `total` <= target, preferring multiples of 128
    (MXU/lane native), then multiples of 8; falls back to the full extent."""
    if total <= target:
        return total
    best8 = None
    for c in range(target, 7, -1):
        if total % c:
            continue
        if c % 128 == 0:
            return c
        if best8 is None and c % 8 == 0:
            best8 = c
    return best8 if best8 is not None else total


def _resolve_block(user, total, target):
    if user is None:
        return _pick_block(total, target)
    assert total % user == 0, "block size must divide the sequence length"
    assert user % 8 == 0 or user == total, "block size must be a multiple of 8"
    if user < 128 and total % 128 == 0:
        # Sub-128 key/query tiles waste VPU/EUP lanes and MXU depth -> clamp.
        return 128
    return user


def _vmem_limit(est_bytes):
    # Headroom x1.5, clamped to [32 MiB, 96 MiB].
    return int(min(max(est_bytes * 3 // 2, 32 * _MIB), 96 * _MIB))


# ----------------------------------------------------------------------------
# Kernel 1: head-major QKV projection.
# Per output j, per head h:  out_j[0, h] = x[in_map[j]] @ W_j[h]   ((TL,E)@(E,D))
# Writing head-major directly avoids the old XLA transpose HBM round trip.
# ----------------------------------------------------------------------------
def _make_head_proj_kernel(heads, in_map):
    n_in = max(in_map) + 1
    n_out = len(in_map)

    def kernel(*refs):
        x_refs = refs[:n_in]
        w_refs = refs[n_in:n_in + n_out]
        o_refs = refs[n_in + n_out:]
        cd = w_refs[0].dtype
        xs = [x_refs[i][0].astype(cd) for i in range(n_in)]     # (TL, E)
        for j in range(n_out):
            x = xs[in_map[j]]
            w_ref = w_refs[j]
            o_ref = o_refs[j]
            for h in range(heads):                               # static unroll
                o_ref[0, h] = jnp.dot(
                    x, w_ref[h], preferred_element_type=jnp.float32
                ).astype(o_ref.dtype)

    return kernel


def _project_heads(inputs, weight_stacks, in_map, *, out_dtype, row_target=512):
    """inputs: list of (N, L, E) arrays (same N, L).  weight_stacks: list of
    (H, E, D) per-head weight slabs.  in_map[j]: which input feeds output j.
    Returns one (N, H, L, D) array (dtype out_dtype) per weight stack."""
    N, L, E = inputs[0].shape
    H, _, D = weight_stacks[0].shape
    TL = _pick_block(L, row_target)
    n_in, n_out = len(inputs), len(weight_stacks)

    in_size = jnp.dtype(inputs[0].dtype).itemsize
    cd_size = jnp.dtype(out_dtype).itemsize
    est = (2 * n_in * TL * _pad128(E) * max(in_size, cd_size)   # row blocks (x2 buf)
           + 2 * n_out * H * E * _pad128(D) * cd_size           # weight stacks
           + 2 * n_out * H * TL * _pad128(D) * cd_size)         # output blocks

    x_spec = pl.BlockSpec((1, TL, E), lambda n, i: (n, i, 0))
    w_spec = pl.BlockSpec((H, E, D), lambda n, i: (0, 0, 0))
    o_spec = pl.BlockSpec((1, H, TL, D), lambda n, i: (n, 0, i, 0))

    outs = pl.pallas_call(
        _make_head_proj_kernel(H, tuple(in_map)),
        out_shape=tuple(jax.ShapeDtypeStruct((N, H, L, D), out_dtype)
                        for _ in range(n_out)),
        grid_spec=pltpu.PrefetchScalarGridSpec(
            num_scalar_prefetch=0,
            grid=(N, L // TL),
            in_specs=[x_spec] * n_in + [w_spec] * n_out,
            out_specs=tuple(o_spec for _ in range(n_out)),
        ),
        compiler_params=pltpu.CompilerParams(
            dimension_semantics=("parallel", "parallel"),
            vmem_limit_bytes=_vmem_limit(est)),
    )(*inputs, *weight_stacks)
    if not isinstance(outs, (list, tuple)):
        outs = (outs,)
    return tuple(outs)


# ----------------------------------------------------------------------------
# Kernel 2: flash-style attention over key tiles + fused output projection.
# Blocks: q (1,H,TQ,D), k/v (1,H,TK,D), wo (H,D,E), bo (1,E), out (1,TQ,E).
# ----------------------------------------------------------------------------
def _make_attn_kernel(heads, head_group, exp_dtype, approx_recip):
    def kernel(qh_ref, kh_ref, vh_ref, wo_ref, bo_ref, o_ref,
               m_scr, l_scr, acc_scr):
        ki = pl.program_id(2)

        @pl.when(ki == 0)
        def _init():
            m_scr[...] = jnp.full(m_scr.shape, -jnp.inf, dtype=m_scr.dtype)
            l_scr[...] = jnp.zeros(l_scr.shape, dtype=l_scr.dtype)
            acc_scr[...] = jnp.zeros(acc_scr.shape, dtype=acc_scr.dtype)

        # Online softmax, processed in head chunks so the live (hg, TQ, TK)
        # f32 score/p tensors stay small (vreg / spill pressure).
        for h0 in range(0, heads, head_group):
            h1 = min(h0 + head_group, heads)
            qh = qh_ref[0, h0:h1]         # (hg, TQ, D); scale folded into Wq
            kh = kh_ref[0, h0:h1]         # (hg, TK, D)
            vh = vh_ref[0, h0:h1]         # (hg, TK, D)

            s = jnp.einsum('hqd,hkd->hqk', qh, kh,
                           preferred_element_type=jnp.float32)   # f32 scores

            m_prev = m_scr[h0:h1]
            m_new = jnp.maximum(m_prev, jnp.max(s, axis=-1, keepdims=True))
            alpha = jnp.exp(m_prev - m_new)
            # exp in bf16 on v6e/v7x (EUP is the saturating slot); f32 else.
            p = jnp.exp((s - m_new).astype(exp_dtype))
            l_scr[h0:h1] = alpha * l_scr[h0:h1] + jnp.sum(
                p.astype(jnp.float32), axis=-1, keepdims=True)
            acc_scr[h0:h1] = alpha * acc_scr[h0:h1] + jnp.einsum(
                'hqk,hkd->hqd', p.astype(vh.dtype), vh,
                preferred_element_type=jnp.float32)
            m_scr[h0:h1] = m_new

        @pl.when(ki == pl.num_programs(2) - 1)
        def _finalize():
            tq, e = o_ref.shape[1], o_ref.shape[2]
            y = jnp.zeros((tq, e), dtype=jnp.float32)
            for h in range(heads):
                inv_l = pl.reciprocal(l_scr[h], approx=approx_recip)  # (TQ, 1)
                ctx = (acc_scr[h] * inv_l).astype(wo_ref.dtype)       # (TQ, D)
                # Fused fc_out: per-head (TQ,D)@(D,E), f32 accumulation
                # (== concat-heads @ Wo^T).  Output block is lane-dense (E).
                y = y + jnp.dot(ctx, wo_ref[h],
                                preferred_element_type=jnp.float32)
            o_ref[0] = (y + bo_ref[...]).astype(o_ref.dtype)

    return kernel


# ----------------------------------------------------------------------------
# Wrapper
# ----------------------------------------------------------------------------
def multi_head_attention(q, k, v, wq_t, wk_t, wv_t, wo_t, bo, *, heads,
                         compute_dtype=jnp.bfloat16,
                         block_q=None, block_k=None, exp_dtype=None):
    """Forward of MultiHeadAttention (mask=None path).

    q: (N, Lq, E); k, v: (N, Lk, E).  w*_t: (E, E) pre-transposed so y = x @ W_t
    matches torch nn.Linear.  bo: (1, E) or (E,).  compute_dtype: MXU operand
    dtype (accumulation always f32, softmax stats always f32)."""
    N, Lq, E = q.shape
    _, Lk, _ = k.shape
    assert v.shape[1] == Lk, "k and v must have the same sequence length"
    H = heads
    D = E // H
    assert D * H == E, "embedding_size must be divisible by heads"
    cd = jnp.dtype(compute_dtype)
    kind = _device_kind()

    # bf16 exp only where the EUP is natively bf16 (v6e / v7x).
    if exp_dtype is None:
        exp_dtype = (jnp.bfloat16
                     if (cd == jnp.bfloat16 and ("v6" in kind or "v7" in kind))
                     else jnp.float32)
    exp_dtype = jnp.dtype(exp_dtype)

    # NOTE: torch module scales by embedding_size ** -0.5 (not head_dim ** -0.5).
    scale = float(E) ** -0.5

    # One-time, weight-sized prep: per-head (E, D) slabs, head-major.
    wq_h = (wq_t * scale).reshape(E, H, D).transpose(1, 0, 2).astype(cd)  # (H,E,D)
    wk_h = wk_t.reshape(E, H, D).transpose(1, 0, 2).astype(cd)
    wv_h = wv_t.reshape(E, H, D).transpose(1, 0, 2).astype(cd)
    wo_hde = wo_t.reshape(H, D, E).astype(cd)      # [h, d, e] == Wo_t[h*D + d, e]
    bo_f32 = bo.reshape(1, E).astype(jnp.float32)

    # ---- Kernel 1: head-major QKV projection (no HBM transpose afterwards) --
    if (q is k) and (q is v):
        qh, kh, vh = _project_heads([q], [wq_h, wk_h, wv_h], (0, 0, 0),
                                    out_dtype=cd)
    else:
        (qh,) = _project_heads([q], [wq_h], (0,), out_dtype=cd)
        if k is v:
            kh, vh = _project_heads([k], [wk_h, wv_h], (0, 0), out_dtype=cd)
        else:
            kh, vh = _project_heads([k, v], [wk_h, wv_h], (0, 1), out_dtype=cd)

    # ---- Kernel 2: attention tiling / VMEM budgeting ------------------------
    tile_target = 128 if ("v5" in kind or "v4" in kind or "v3" in kind) else 256
    TQ = _resolve_block(block_q, Lq, tile_target)
    TK = _resolve_block(block_k, Lk, tile_target)

    cd_size = cd.itemsize
    out_size = jnp.dtype(q.dtype).itemsize

    def attn_plan(tq, tk):
        hg = max(1, min(H, (512 * 1024) // max(tq * tk * 4, 1)))
        total = (2 * (H * tq * _pad128(D) * cd_size        # q block (x2 buf)
                      + 2 * H * tk * _pad128(D) * cd_size  # k, v blocks
                      + H * D * _pad128(E) * cd_size       # Wo
                      + tq * _pad128(E) * out_size)        # out block
                 + 2 * H * tq * 128 * 4                    # m, l (lane-padded)
                 + H * tq * _pad128(D) * 4                 # acc scratch
                 + 2 * hg * tq * tk * 4)                   # live score / p
        return total, hg

    budget = (44 if "v7" in kind else 80) * _MIB
    est, HG = attn_plan(TQ, TK)
    if est > budget and block_k is None and TK > 128:
        TK = _pick_block(Lk, 128)
        est, HG = attn_plan(TQ, TK)
    if est > budget and block_q is None and TQ > 128:
        TQ = _pick_block(Lq, 128)
        est, HG = attn_plan(TQ, TK)

    attn_kernel = _make_attn_kernel(H, HG, exp_dtype,
                                    approx_recip=(cd != jnp.float32))

    return pl.pallas_call(
        attn_kernel,
        out_shape=jax.ShapeDtypeStruct((N, Lq, E), q.dtype),
        grid_spec=pltpu.PrefetchScalarGridSpec(
            num_scalar_prefetch=0,
            grid=(N, Lq // TQ, Lk // TK),
            in_specs=[
                pl.BlockSpec((1, H, TQ, D), lambda n, qi, ki: (n, 0, qi, 0)),
                pl.BlockSpec((1, H, TK, D), lambda n, qi, ki: (n, 0, ki, 0)),
                pl.BlockSpec((1, H, TK, D), lambda n, qi, ki: (n, 0, ki, 0)),
                pl.BlockSpec((H, D, E), lambda n, qi, ki: (0, 0, 0)),
                pl.BlockSpec((1, E), lambda n, qi, ki: (0, 0)),
            ],
            out_specs=pl.BlockSpec((1, TQ, E), lambda n, qi, ki: (n, qi, 0)),
            scratch_shapes=[
                pltpu.VMEM((H, TQ, 1), jnp.float32),   # running max
                pltpu.VMEM((H, TQ, 1), jnp.float32),   # running sum
                pltpu.VMEM((H, TQ, D), jnp.float32),   # running PV accumulator
            ],
        ),
        compiler_params=pltpu.CompilerParams(
            dimension_semantics=("parallel", "parallel", "arbitrary"),
            vmem_limit_bytes=_vmem_limit(est)),
    )(qh, kh, vh, wo_hde, bo_f32)


# ----------------------------------------------------------------------------
# Plain-JAX reference mirroring the torch forward (mask=None path).
# ----------------------------------------------------------------------------
def _reference(q, k, v, wq_t, wk_t, wv_t, wo_t, bo, *, heads):
    N, Lq, E = q.shape
    Lk = k.shape[1]
    D = E // heads
    qp = q @ wq_t
    kp = k @ wk_t
    vp = v @ wv_t
    qh = qp.reshape(N, Lq, heads, D)
    kh = kp.reshape(N, Lk, heads, D)
    vh = vp.reshape(N, Lk, heads, D)
    qk = jnp.einsum('nqhd,nkhd->nhqk', qh, kh)
    attn = jax.nn.softmax(qk * (E ** -0.5), axis=3)
    out = jnp.einsum('nhqk,nkhd->nqhd', attn, vh).reshape(N, Lq, E)
    return out @ wo_t + bo


if __name__ == "__main__":
    N, E, H = 2, 128, 4
    Lq, Lk = 256, 128

    key = jax.random.PRNGKey(0)
    kx, kq, kk, kv, kwq, kwk, kwv, kwo, kbo = jax.random.split(key, 9)

    wscale = 1.0 / (E ** 0.5)
    wq_t = (jax.random.normal(kwq, (E, E), dtype=jnp.float32) * wscale).T
    wk_t = (jax.random.normal(kwk, (E, E), dtype=jnp.float32) * wscale).T
    wv_t = (jax.random.normal(kwv, (E, E), dtype=jnp.float32) * wscale).T
    wo_t = (jax.random.normal(kwo, (E, E), dtype=jnp.float32) * wscale).T
    bo = jax.random.normal(kbo, (1, E), dtype=jnp.float32) * wscale

    x = jax.random.normal(kx, (N, Lq, E), dtype=jnp.float32)
    q = jax.random.normal(kq, (N, Lq, E), dtype=jnp.float32)
    k = jax.random.normal(kk, (N, Lk, E), dtype=jnp.float32)
    v = jax.random.normal(kv, (N, Lk, E), dtype=jnp.float32)

    # 1) Self-attention, f32 compute, explicit 128 tiles -> 2 query x 2 key
    #    steps exercise the multi-tile online softmax.
    out_self = multi_head_attention(x, x, x, wq_t, wk_t, wv_t, wo_t, bo,
                                    heads=H, compute_dtype=jnp.float32,
                                    block_q=128, block_k=128)
    out_self = jax.block_until_ready(out_self)
    ref_self = _reference(x, x, x, wq_t, wk_t, wv_t, wo_t, bo, heads=H)
    assert out_self.shape == (N, Lq, E)
    assert jnp.allclose(out_self, ref_self, atol=3e-3, rtol=3e-3), \
        "self-attention (f32) mismatch vs reference"

    # 2) Cross-attention with Lq != Lk, f32 compute, default tiling.
    out_cross = multi_head_attention(q, k, v, wq_t, wk_t, wv_t, wo_t, bo,
                                     heads=H, compute_dtype=jnp.float32)
    out_cross = jax.block_until_ready(out_cross)
    ref_cross = _reference(q, k, v, wq_t, wk_t, wv_t, wo_t, bo, heads=H)
    assert jnp.allclose(out_cross, ref_cross, atol=3e-3, rtol=3e-3), \
        "cross-attention (f32) mismatch vs reference"

    # 3) Cross-attention with shared K/V input (k is v) -> fused K/V projection.
    out_kv = multi_head_attention(q, k, k, wq_t, wk_t, wv_t, wo_t, bo,
                                  heads=H, compute_dtype=jnp.float32)
    out_kv = jax.block_until_ready(out_kv)
    ref_kv = _reference(q, k, k, wq_t, wk_t, wv_t, wo_t, bo, heads=H)
    assert jnp.allclose(out_kv, ref_kv, atol=3e-3, rtol=3e-3), \
        "shared-KV cross-attention (f32) mismatch vs reference"

    # 4) Self-attention with bf16 MXU operands (bf16 exp auto-enabled on
    #    v6e/v7x, f32 exp elsewhere).
    out_bf16 = multi_head_attention(x, x, x, wq_t, wk_t, wv_t, wo_t, bo,
                                    heads=H, compute_dtype=jnp.bfloat16)
    out_bf16 = jax.block_until_ready(out_bf16)
    assert jnp.allclose(out_bf16, ref_self, atol=1e-1, rtol=1e-1), \
        "self-attention (bf16) mismatch vs reference"

    print("KERNEL_OK")
</pallas_src>

<mosaic_0001>
module attributes {stable_mosaic.version = 11 : i64} {
  func.func @kernel(%arg0: i32, %arg1: i32, %arg2: memref<1x256x128xf32, #tpu.memory_space<vmem>>, %arg3: memref<4x128x32xf32, #tpu.memory_space<vmem>>, %arg4: memref<4x128x32xf32, #tpu.memory_space<vmem>>, %arg5: memref<4x128x32xf32, #tpu.memory_space<vmem>>, %arg6: memref<1x4x256x32xf32, #tpu.memory_space<vmem>>, %arg7: memref<1x4x256x32xf32, #tpu.memory_space<vmem>>, %arg8: memref<1x4x256x32xf32, #tpu.memory_space<vmem>>) attributes {dimension_semantics = [#tpu.dimension_semantics<parallel>, #tpu.dimension_semantics<parallel>], iteration_bounds = array<i64: 2, 1>, scalar_prefetch = 0 : i64, scratch_operands = 0 : i64, tpu.core_type = #tpu.core_type<tc>, window_params = [{transform_indices = @transform_0, window_bounds = array<i64: 1, 256, 128>}, {pipeline_mode = #tpu.pipeline_mode<synchronous>, transform_indices = @transform_1, window_bounds = array<i64: 4, 128, 32>}, {pipeline_mode = #tpu.pipeline_mode<synchronous>, transform_indices = @transform_2, window_bounds = array<i64: 4, 128, 32>}, {pipeline_mode = #tpu.pipeline_mode<synchronous>, transform_indices = @transform_3, window_bounds = array<i64: 4, 128, 32>}, {transform_indices = @transform_4, window_bounds = array<i64: 1, 4, 256, 32>}, {transform_indices = @transform_5, window_bounds = array<i64: 1, 4, 256, 32>}, {transform_indices = @transform_6, window_bounds = array<i64: 1, 4, 256, 32>}]} {
    %c0 = arith.constant 0 : index
    %c0_0 = arith.constant 0 : index
    %c0_1 = arith.constant 0 : index
    %0 = vector.load %arg2[%c0, %c0_0, %c0_1] : memref<1x256x128xf32, #tpu.memory_space<vmem>>, vector<1x256x128xf32>
    %1 = vector.shape_cast %0 : vector<1x256x128xf32> to vector<256x128xf32>
    %c0_2 = arith.constant 0 : index
    %c0_3 = arith.constant 0 : index
    %c0_4 = arith.constant 0 : index
    %2 = vector.load %arg3[%c0_2, %c0_3, %c0_4] : memref<4x128x32xf32, #tpu.memory_space<vmem>>, vector<1x128x32xf32>
    %3 = vector.shape_cast %2 : vector<1x128x32xf32> to vector<128x32xf32>
    %cst = arith.constant dense<0.000000e+00> : vector<256x32xf32>
    %4 = tpu.matmul %1, %3, %cst {dimension_numbers = #tpu.dot_dimension_numbers<[1], [0], [0], [1], [0, 0, 1, 1], [], []>} : vector<256x128xf32>, vector<128x32xf32>, vector<256x32xf32> -> vector<256x32xf32>
    %c0_5 = arith.constant 0 : index
    %c0_6 = arith.constant 0 : index
    %c0_7 = arith.constant 0 : index
    %c0_8 = arith.constant 0 : index
    %5 = vector.load %arg6[%c0_5, %c0_6, %c0_7, %c0_8] : memref<1x4x256x32xf32, #tpu.memory_space<vmem>>, vector<1x1x256x32xf32>
    %6 = vector.shape_cast %5 : vector<1x1x256x32xf32> to vector<256x32xf32>
    %7 = vector.shape_cast %4 : vector<256x32xf32> to vector<1x1x256x32xf32>
    tpu.vector_store %arg6[%c0_5, %c0_6, %c0_7, %c0_8], %7 {strides = array<i32>} : memref<1x4x256x32xf32, #tpu.memory_space<vmem>>, vector<1x1x256x32xf32>,
    %c1 = arith.constant 1 : index
    %c0_9 = arith.constant 0 : index
    %c0_10 = arith.constant 0 : index
    %8 = vector.load %arg3[%c1, %c0_9, %c0_10] : memref<4x128x32xf32, #tpu.memory_space<vmem>>, vector<1x128x32xf32>
    %9 = vector.shape_cast %8 : vector<1x128x32xf32> to vector<128x32xf32>
    %cst_11 = arith.constant dense<0.000000e+00> : vector<256x32xf32>
    %10 = tpu.matmul %1, %9, %cst_11 {dimension_numbers = #tpu.dot_dimension_numbers<[1], [0], [0], [1], [0, 0, 1, 1], [], []>} : vector<256x128xf32>, vector<128x32xf32>, vector<256x32xf32> -> vector<256x32xf32>
    %c0_12 = arith.constant 0 : index
    %c1_13 = arith.constant 1 : index
    %c0_14 = arith.constant 0 : index
    %c0_15 = arith.constant 0 : index
    %11 = vector.load %arg6[%c0_12, %c1_13, %c0_14, %c0_15] : memref<1x4x256x32xf32, #tpu.memory_space<vmem>>, vector<1x1x256x32xf32>
    %12 = vector.shape_cast %11 : vector<1x1x256x32xf32> to vector<256x32xf32>
    %13 = vector.shape_cast %10 : vector<256x32xf32> to vector<1x1x256x32xf32>
    tpu.vector_store %arg6[%c0_12, %c1_13, %c0_14, %c0_15], %13 {strides = array<i32>} : memref<1x4x256x32xf32, #tpu.memory_space<vmem>>, vector<1x1x256x32xf32>,
    %c2 = arith.constant 2 : index
    %c0_16 = arith.constant 0 : index
    %c0_17 = arith.constant 0 : index
    %14 = vector.load %arg3[%c2, %c0_16, %c0_17] : memref<4x128x32xf32, #tpu.memory_space<vmem>>, vector<1x128x32xf32>
    %15 = vector.shape_cast %14 : vector<1x128x32xf32> to vector<128x32xf32>
    %cst_18 = arith.constant dense<0.000000e+00> : vector<256x32xf32>
    %16 = tpu.matmul %1, %15, %cst_18 {dimension_numbers = #tpu.dot_dimension_numbers<[1], [0], [0], [1], [0, 0, 1, 1], [], []>} : vector<256x128xf32>, vector<128x32xf32>, vector<256x32xf32> -> vector<256x32xf32>
    %c0_19 = arith.constant 0 : index
    %c2_20 = arith.constant 2 : index
    %c0_21 = arith.constant 0 : index
    %c0_22 = arith.constant 0 : index
    %17 = vector.load %arg6[%c0_19, %c2_20, %c0_21, %c0_22] : memref<1x4x256x32xf32, #tpu.memory_space<vmem>>, vector<1x1x256x32xf32>
    %18 = vector.shape_cast %17 : vector<1x1x256x32xf32> to vector<256x32xf32>
    %19 = vector.shape_cast %16 : vector<256x32xf32> to vector<1x1x256x32xf32>
    tpu.vector_store %arg6[%c0_19, %c2_20, %c0_21, %c0_22], %19 {strides = array<i32>} : memref<1x4x256x32xf32, #tpu.memory_space<vmem>>, vector<1x1x256x32xf32>,
    %c3 = arith.constant 3 : index
    %c0_23 = arith.constant 0 : index
    %c0_24 = arith.constant 0 : index
    %20 = vector.load %arg3[%c3, %c0_23, %c0_24] : memref<4x128x32xf32, #tpu.memory_space<vmem>>, vector<1x128x32xf32>
    %21 = vector.shape_cast %20 : vector<1x128x32xf32> to vector<128x32xf32>
    %cst_25 = arith.constant dense<0.000000e+00> : vector<256x32xf32>
    %22 = tpu.matmul %1, %21, %cst_25 {dimension_numbers = #tpu.dot_dimension_numbers<[1], [0], [0], [1], [0, 0, 1, 1], [], []>} : vector<256x128xf32>, vector<128x32xf32>, vector<256x32xf32> -> vector<256x32xf32>
    %c0_26 = arith.constant 0 : index
    %c3_27 = arith.constant 3 : index
    %c0_28 = arith.constant 0 : index
    %c0_29 = arith.constant 0 : index
    %23 = vector.load %arg6[%c0_26, %c3_27, %c0_28, %c0_29] : memref<1x4x256x32xf32, #tpu.memory_space<vmem>>, vector<1x1x256x32xf32>
    %24 = vector.shape_cast %23 : vector<1x1x256x32xf32> to vector<256x32xf32>
    %25 = vector.shape_cast %22 : vector<256x32xf32> to vector<1x1x256x32xf32>
    tpu.vector_store %arg6[%c0_26, %c3_27, %c0_28, %c0_29], %25 {strides = array<i32>} : memref<1x4x256x32xf32, #tpu.memory_space<vmem>>, vector<1x1x256x32xf32>,
    %c0_30 = arith.constant 0 : index
    %c0_31 = arith.constant 0 : index
    %c0_32 = arith.constant 0 : index
    %26 = vector.load %arg4[%c0_30, %c0_31, %c0_32] : memref<4x128x32xf32, #tpu.memory_space<vmem>>, vector<1x128x32xf32>
    %27 = vector.shape_cast %26 : vector<1x128x32xf32> to vector<128x32xf32>
    %cst_33 = arith.constant dense<0.000000e+00> : vector<256x32xf32>
    %28 = tpu.matmul %1, %27, %cst_33 {dimension_numbers = #tpu.dot_dimension_numbers<[1], [0], [0], [1], [0, 0, 1, 1], [], []>} : vector<256x128xf32>, vector<128x32xf32>, vector<256x32xf32> -> vector<256x32xf32>
    %c0_34 = arith.constant 0 : index
    %c0_35 = arith.constant 0 : index
    %c0_36 = arith.constant 0 : index
    %c0_37 = arith.constant 0 : index
    %29 = vector.load %arg7[%c0_34, %c0_35, %c0_36, %c0_37] : memref<1x4x256x32xf32, #tpu.memory_space<vmem>>, vector<1x1x256x32xf32>
    %30 = vector.shape_cast %29 : vector<1x1x256x32xf32> to vector<256x32xf32>
    %31 = vector.shape_cast %28 : vector<256x32xf32> to vector<1x1x256x32xf32>
    tpu.vector_store %arg7[%c0_34, %c0_35, %c0_36, %c0_37], %31 {strides = array<i32>} : memref<1x4x256x32xf32, #tpu.memory_space<vmem>>, vector<1x1x256x32xf32>,
    %c1_38 = arith.constant 1 : index
    %c0_39 = arith.constant 0 : index
    %c0_40 = arith.constant 0 : index
    %32 = vector.load %arg4[%c1_38, %c0_39, %c0_40] : memref<4x128x32xf32, #tpu.memory_space<vmem>>, vector<1x128x32xf32>
    %33 = vector.shape_cast %32 : vector<1x128x32xf32> to vector<128x32xf32>
    %cst_41 = arith.constant dense<0.000000e+00> : vector<256x32xf32>
    %34 = tpu.matmul %1, %33, %cst_41 {dimension_numbers = #tpu.dot_dimension_numbers<[1], [0], [0], [1], [0, 0, 1, 1], [], []>} : vector<256x128xf32>, vector<128x32xf32>, vector<256x32xf32> -> vector<256x32xf32>
    %c0_42 = arith.constant 0 : index
    %c1_43 = arith.constant 1 : index
    %c0_44 = arith.constant 0 : index
    %c0_45 = arith.constant 0 : index
    %35 = vector.load %arg7[%c0_42, %c1_43, %c0_44, %c0_45] : memref<1x4x256x32xf32, #tpu.memory_space<vmem>>, vector<1x1x256x32xf32>
    %36 = vector.shape_cast %35 : vector<1x1x256x32xf32> to vector<256x32xf32>
    %37 = vector.shape_cast %34 : vector<256x32xf32> to vector<1x1x256x32xf32>
    tpu.vector_store %arg7[%c0_42, %c1_43, %c0_44, %c0_45], %37 {strides = array<i32>} : memref<1x4x256x32xf32, #tpu.memory_space<vmem>>, vector<1x1x256x32xf32>,
    %c2_46 = arith.constant 2 : index
    %c0_47 = arith.constant 0 : index
    %c0_48 = arith.constant 0 : index
    %38 = vector.load %arg4[%c2_46, %c0_47, %c0_48] : memref<4x128x32xf32, #tpu.memory_space<vmem>>, vector<1x128x32xf32>
    %39 = vector.shape_cast %38 : vector<1x128x32xf32> to vector<128x32xf32>
    %cst_49 = arith.constant dense<0.000000e+00> : vector<256x32xf32>
    %40 = tpu.matmul %1, %39, %cst_49 {dimension_numbers = #tpu.dot_dimension_numbers<[1], [0], [0], [1], [0, 0, 1, 1], [], []>} : vector<256x128xf32>, vector<128x32xf32>, vector<256x32xf32> -> vector<256x32xf32>
    %c0_50 = arith.constant 0 : index
    %c2_51 = arith.constant 2 : index
    %c0_52 = arith.constant 0 : index
    %c0_53 = arith.constant 0 : index
    %41 = vector.load %arg7[%c0_50, %c2_51, %c0_52, %c0_53] : memref<1x4x256x32xf32, #tpu.memory_space<vmem>>, vector<1x1x256x32xf32>
    %42 = vector.shape_cast %41 : vector<1x1x256x32xf32> to vector<256x32xf32>
    %43 = vector.shape_cast %40 : vector<256x32xf32> to vector<1x1x256x32xf32>
    tpu.vector_store %arg7[%c0_50, %c2_51, %c0_52, %c0_53], %43 {strides = array<i32>} : memref<1x4x256x32xf32, #tpu.memory_space<vmem>>, vector<1x1x256x32xf32>,
    %c3_54 = arith.constant 3 : index
    %c0_55 = arith.constant 0 : index
    %c0_56 = arith.constant 0 : index
    %44 = vector.load %arg4[%c3_54, %c0_55, %c0_56] : memref<4x128x32xf32, #tpu.memory_space<vmem>>, vector<1x128x32xf32>
    %45 = vector.shape_cast %44 : vector<1x128x32xf32> to vector<128x32xf32>
    %cst_57 = arith.constant dense<0.000000e+00> : vector<256x32xf32>
    %46 = tpu.matmul %1, %45, %cst_57 {dimension_numbers = #tpu.dot_dimension_numbers<[1], [0], [0], [1], [0, 0, 1, 1], [], []>} : vector<256x128xf32>, vector<128x32xf32>, vector<256x32xf32> -> vector<256x32xf32>
    %c0_58 = arith.constant 0 : index
    %c3_59 = arith.constant 3 : index
    %c0_60 = arith.constant 0 : index
    %c0_61 = arith.constant 0 : index
    %47 = vector.load %arg7[%c0_58, %c3_59, %c0_60, %c0_61] : memref<1x4x256x32xf32, #tpu.memory_space<vmem>>, vector<1x1x256x32xf32>
    %48 = vector.shape_cast %47 : vector<1x1x256x32xf32> to vector<256x32xf32>
    %49 = vector.shape_cast %46 : vector<256x32xf32> to vector<1x1x256x32xf32>
    tpu.vector_store %arg7[%c0_58, %c3_59, %c0_60, %c0_61], %49 {strides = array<i32>} : memref<1x4x256x32xf32, #tpu.memory_space<vmem>>, vector<1x1x256x32xf32>,
    %c0_62 = arith.constant 0 : index
    %c0_63 = arith.constant 0 : index
    %c0_64 = arith.constant 0 : index
    %50 = vector.load %arg5[%c0_62, %c0_63, %c0_64] : memref<4x128x32xf32, #tpu.memory_space<vmem>>, vector<1x128x32xf32>
    %51 = vector.shape_cast %50 : vector<1x128x32xf32> to vector<128x32xf32>
    %cst_65 = arith.constant dense<0.000000e+00> : vector<256x32xf32>
    %52 = tpu.matmul %1, %51, %cst_65 {dimension_numbers = #tpu.dot_dimension_numbers<[1], [0], [0], [1], [0, 0, 1, 1], [], []>} : vector<256x128xf32>, vector<128x32xf32>, vector<256x32xf32> -> vector<256x32xf32>
    %c0_66 = arith.constant 0 : index
    %c0_67 = arith.constant 0 : index
    %c0_68 = arith.constant 0 : index
    %c0_69 = arith.constant 0 : index
    %53 = vector.load %arg8[%c0_66, %c0_67, %c0_68, %c0_69] : memref<1x4x256x32xf32, #tpu.memory_space<vmem>>, vector<1x1x256x32xf32>
    %54 = vector.shape_cast %53 : vector<1x1x256x32xf32> to vector<256x32xf32>
    %55 = vector.shape_cast %52 : vector<256x32xf32> to vector<1x1x256x32xf32>
    tpu.vector_store %arg8[%c0_66, %c0_67, %c0_68, %c0_69], %55 {strides = array<i32>} : memref<1x4x256x32xf32, #tpu.memory_space<vmem>>, vector<1x1x256x32xf32>,
    %c1_70 = arith.constant 1 : index
    %c0_71 = arith.constant 0 : index
    %c0_72 = arith.constant 0 : index
    %56 = vector.load %arg5[%c1_70, %c0_71, %c0_72] : memref<4x128x32xf32, #tpu.memory_space<vmem>>, vector<1x128x32xf32>
    %57 = vector.shape_cast %56 : vector<1x128x32xf32> to vector<128x32xf32>
    %cst_73 = arith.constant dense<0.000000e+00> : vector<256x32xf32>
    %58 = tpu.matmul %1, %57, %cst_73 {dimension_numbers = #tpu.dot_dimension_numbers<[1], [0], [0], [1], [0, 0, 1, 1], [], []>} : vector<256x128xf32>, vector<128x32xf32>, vector<256x32xf32> -> vector<256x32xf32>
    %c0_74 = arith.constant 0 : index
    %c1_75 = arith.constant 1 : index
    %c0_76 = arith.constant 0 : index
    %c0_77 = arith.constant 0 : index
    %59 = vector.load %arg8[%c0_74, %c1_75, %c0_76, %c0_77] : memref<1x4x256x32xf32, #tpu.memory_space<vmem>>, vector<1x1x256x32xf32>
    %60 = vector.shape_cast %59 : vector<1x1x256x32xf32> to vector<256x32xf32>
    %61 = vector.shape_cast %58 : vector<256x32xf32> to vector<1x1x256x32xf32>
    tpu.vector_store %arg8[%c0_74, %c1_75, %c0_76, %c0_77], %61 {strides = array<i32>} : memref<1x4x256x32xf32, #tpu.memory_space<vmem>>, vector<1x1x256x32xf32>,
    %c2_78 = arith.constant 2 : index
    %c0_79 = arith.constant 0 : index
    %c0_80 = arith.constant 0 : index
    %62 = vector.load %arg5[%c2_78, %c0_79, %c0_80] : memref<4x128x32xf32, #tpu.memory_space<vmem>>, vector<1x128x32xf32>
    %63 = vector.shape_cast %62 : vector<1x128x32xf32> to vector<128x32xf32>
    %cst_81 = arith.constant dense<0.000000e+00> : vector<256x32xf32>
    %64 = tpu.matmul %1, %63, %cst_81 {dimension_numbers = #tpu.dot_dimension_numbers<[1], [0], [0], [1], [0, 0, 1, 1], [], []>} : vector<256x128xf32>, vector<128x32xf32>, vector<256x32xf32> -> vector<256x32xf32>
    %c0_82 = arith.constant 0 : index
    %c2_83 = arith.constant 2 : index
    %c0_84 = arith.constant 0 : index
    %c0_85 = arith.constant 0 : index
    %65 = vector.load %arg8[%c0_82, %c2_83, %c0_84, %c0_85] : memref<1x4x256x32xf32, #tpu.memory_space<vmem>>, vector<1x1x256x32xf32>
    %66 = vector.shape_cast %65 : vector<1x1x256x32xf32> to vector<256x32xf32>
    %67 = vector.shape_cast %64 : vector<256x32xf32> to vector<1x1x256x32xf32>
    tpu.vector_store %arg8[%c0_82, %c2_83, %c0_84, %c0_85], %67 {strides = array<i32>} : memref<1x4x256x32xf32, #tpu.memory_space<vmem>>, vector<1x1x256x32xf32>,
    %c3_86 = arith.constant 3 : index
    %c0_87 = arith.constant 0 : index
    %c0_88 = arith.constant 0 : index
    %68 = vector.load %arg5[%c3_86, %c0_87, %c0_88] : memref<4x128x32xf32, #tpu.memory_space<vmem>>, vector<1x128x32xf32>
    %69 = vector.shape_cast %68 : vector<1x128x32xf32> to vector<128x32xf32>
    %cst_89 = arith.constant dense<0.000000e+00> : vector<256x32xf32>
    %70 = tpu.matmul %1, %69, %cst_89 {dimension_numbers = #tpu.dot_dimension_numbers<[1], [0], [0], [1], [0, 0, 1, 1], [], []>} : vector<256x128xf32>, vector<128x32xf32>, vector<256x32xf32> -> vector<256x32xf32>
    %c0_90 = arith.constant 0 : index
    %c3_91 = arith.constant 3 : index
    %c0_92 = arith.constant 0 : index
    %c0_93 = arith.constant 0 : index
    %71 = vector.load %arg8[%c0_90, %c3_91, %c0_92, %c0_93] : memref<1x4x256x32xf32, #tpu.memory_space<vmem>>, vector<1x1x256x32xf32>
    %72 = vector.shape_cast %71 : vector<1x1x256x32xf32> to vector<256x32xf32>
    %73 = vector.shape_cast %70 : vector<256x32xf32> to vector<1x1x256x32xf32>
    tpu.vector_store %arg8[%c0_90, %c3_91, %c0_92, %c0_93], %73 {strides = array<i32>} : memref<1x4x256x32xf32, #tpu.memory_space<vmem>>, vector<1x1x256x32xf32>,
    return
  }
  func.func @transform_0(%arg0: i32, %arg1: i32) -> (i32, i32, i32) {
    %c0_i32 = arith.constant 0 : i32
    %c0_i32_0 = arith.constant 0 : i32
    return %arg0, %arg1, %c0_i32 : i32, i32, i32
  }
  func.func @transform_1(%arg0: i32, %arg1: i32) -> (i32, i32, i32) {
    %c0_i32 = arith.constant 0 : i32
    %c0_i32_0 = arith.constant 0 : i32
    %c0_i32_1 = arith.constant 0 : i32
    %c0_i32_2 = arith.constant 0 : i32
    return %c0_i32, %c0_i32_0, %c0_i32_1 : i32, i32, i32
  }
  func.func @transform_2(%arg0: i32, %arg1: i32) -> (i32, i32, i32) {
    %c0_i32 = arith.constant 0 : i32
    %c0_i32_0 = arith.constant 0 : i32
    %c0_i32_1 = arith.constant 0 : i32
    %c0_i32_2 = arith.constant 0 : i32
    return %c0_i32, %c0_i32_0, %c0_i32_1 : i32, i32, i32
  }
  func.func @transform_3(%arg0: i32, %arg1: i32) -> (i32, i32, i32) {
    %c0_i32 = arith.constant 0 : i32
    %c0_i32_0 = arith.constant 0 : i32
    %c0_i32_1 = arith.constant 0 : i32
    %c0_i32_2 = arith.constant 0 : i32
    return %c0_i32, %c0_i32_0, %c0_i32_1 : i32, i32, i32
  }
  func.func @transform_4(%arg0: i32, %arg1: i32) -> (i32, i32, i32, i32) {
    %c0_i32 = arith.constant 0 : i32
    %c0_i32_0 = arith.constant 0 : i32
    %c0_i32_1 = arith.constant 0 : i32
    return %arg0, %c0_i32, %arg1, %c0_i32_0 : i32, i32, i32, i32
  }
  func.func @transform_5(%arg0: i32, %arg1: i32) -> (i32, i32, i32, i32) {
    %c0_i32 = arith.constant 0 : i32
    %c0_i32_0 = arith.constant 0 : i32
    %c0_i32_1 = arith.constant 0 : i32
    return %arg0, %c0_i32, %arg1, %c0_i32_0 : i32, i32, i32, i32
  }
  func.func @transform_6(%arg0: i32, %arg1: i32) -> (i32, i32, i32, i32) {
    %c0_i32 = arith.constant 0 : i32
    %c0_i32_0 = arith.constant 0 : i32
    %c0_i32_1 = arith.constant 0 : i32
    return %arg0, %c0_i32, %arg1, %c0_i32_0 : i32, i32, i32, i32
  }
}

</mosaic_0001>

<llo_original>
// kernel: tpu_custom_call.1
$region0: #{tpu_custom_call.1}
  #allocation0 [shape = 'u32[]', space=smem, size = 0x4, offset = 0x4, fixed_abs, tag = 'smem constant byte address 0x4 - core index']
  #allocation1 [shape = 'u32[144,128]{1,0:T(1,128)}', space=vmem, size = 0x12000, scoped, tag = 'internal scratch']
  %s0 = inlined_call_operand.vmem [shape: f32[2,256,128], index: 0, kind: input, shape index: {}]
  %s1 = inlined_call_operand.vmem [shape: f32[4,128,32], index: 1, kind: input, shape index: {}]
  %s2 = inlined_call_operand.vmem [shape: f32[4,128,32], index: 2, kind: input, shape index: {}]
  %s3 = inlined_call_operand.vmem [shape: f32[4,128,32], index: 3, kind: input, shape index: {}]
  %s4 = inlined_call_operand.vmem [shape: f32[2,4,256,32], index: 4, kind: output, shape index: {0}]
  %s5 = inlined_call_operand.vmem [shape: f32[2,4,256,32], index: 5, kind: output, shape index: {1}]
  %s6 = inlined_call_operand.vmem [shape: f32[2,4,256,32], index: 6, kind: output, shape index: {2}]
  %7 = xla_tuple %s4, %s5, %s6
  %s8 = sld [smem:[#allocation0]]
  $region65: #{tpu_custom_call.1} parent=0
    _
  %s10 = ssub.s32 1, %s8
  %s11 = scalar_select 0, %s10, %s8
  loop: start=0, step=1, limit=4
  $region2: #{tpu_custom_call.1} parent=0 // loop_pre_header
    _
  $region3: #{tpu_custom_call.1} parent=0 // loop_header
    %s13 = sphi 0, %s17
    %p14 = scmp.ge.s32.totalorder %s13, 4
    %s20 = sphi 0, %s32
    %s21 = sphi 0, %s28
    %s22 = sphi 0, %s20
    %s23 = sphi 0, %s21
    %s24 = sphi 0, %s22
    %s25 = sphi 0, %s23
    %s37 = sphi 0, %s39
    %s40 = sphi 0, %s37
    %s41 = sphi 0, %s40
    %s57 = sphi 0, %s41
    %s61 = sphi 0, %s61
    %s63 = sphi 0, %s61
    %s64 = sphi 0, %s63
    %s78 = sphi 0, %s64
    %s82 = sphi 0, %s82
    %s84 = sphi 0, %s82
    %s85 = sphi 0, %s84
    %s99 = sphi 0, %s85
    %s103 = sphi 0, %s103
    %s105 = sphi 0, %s103
    %s106 = sphi 0, %s105
    %s120 = sphi 0, %s106
    %s128 = sphi 0, %s130
    %s131 = sphi 0, %s128
    %s132 = sphi 0, %s131
    %s148 = sphi 0, %s132
    %s156 = sphi 0, %s158
    %s159 = sphi 0, %s156
    %s160 = sphi 0, %s159
    %s176 = sphi 0, %s160
    %s184 = sphi 0, %s186
    %s187 = sphi 0, %s184
    %s188 = sphi 0, %s187
    %s204 = sphi 0, %s188
  $region4: #{tpu_custom_call.1} parent=0 // loop_header_branch
    %16 = sbr.rel (%p14) target = $region8
  $region5: #{tpu_custom_call.1} parent=0 // loop_body
    %s18 = ssub.s32 %s13, 1
    %s19 = ssub.s32 %s13, 2
    %s26 = sadd.s32 1, %s21
    %p27 = scmp.ge.s32.totalorder %s26, 1
    %s28 = scalar_select %p27, 0, %s26
    %s29 = sadd.s32 1, %s20
    %s30 = scalar_select %p27, %s29, %s20
    %p31 = scmp.ge.s32.totalorder %s30, 2
    %s32 = scalar_select %p31, 0, %s30
    %s33 = ssub.s32 %s20, %s32
    %s34 = ssub.s32 %s21, %s28
    %s35 = sor.u32 %s33, %s34
    %p36 = scmp.eq.s32.totalorder %s35, 0
    %s38 = sadd.s32 %s37, 1
    %s39 = scalar_select %p36, %s37, %s38
    %p42 = pneg %p36
    %p43 = scmp.eq.s32.totalorder %s13, 1
    %p44 = por %p42, %p43
    %p45 = scmp.ne.s32.totalorder %s37, %s40
    %p46 = scmp.eq.s32.totalorder %s13, 0
    %p47 = por %p45, %p46
    %p48 = scmp.ne.s32.totalorder %s37, %s40
    %p49 = scmp.eq.s32.totalorder %s18, 1
    %p50 = por %p48, %p49
    %p51 = scmp.ne.s32.totalorder %s40, %s41
    %p52 = scmp.eq.s32.totalorder %s18, 0
    %p53 = por %p51, %p52
    %p54 = scmp.ne.s32.totalorder %s40, %s41
    %p55 = scmp.eq.s32.totalorder %s19, 1
    %p56 = por %p54, %p55
    %p58 = scmp.ne.s32.totalorder %s41, %s57
    %p59 = scmp.eq.s32.totalorder %s19, 0
    %p60 = por %p58, %p59
    %s62 = sadd.s32 %s61, 1
    %p65 = scmp.eq.s32.totalorder %s13, 1
    %p66 = scmp.ne.s32.totalorder %s61, %s63
    %p67 = scmp.eq.s32.totalorder %s13, 0
    %p68 = por %p66, %p67
    %p69 = scmp.ne.s32.totalorder %s61, %s63
    %p70 = scmp.eq.s32.totalorder %s18, 1
    %p71 = por %p69, %p70
    %p72 = scmp.ne.s32.totalorder %s63, %s64
    %p73 = scmp.eq.s32.totalorder %s18, 0
    %p74 = por %p72, %p73
    %p75 = scmp.ne.s32.totalorder %s63, %s64
    %p76 = scmp.eq.s32.totalorder %s19, 1
    %p77 = por %p75, %p76
    %p79 = scmp.ne.s32.totalorder %s64, %s78
    %p80 = scmp.eq.s32.totalorder %s19, 0
    %p81 = por %p79, %p80
    %s83 = sadd.s32 %s82, 1
    %p86 = scmp.eq.s32.totalorder %s13, 1
    %p87 = scmp.ne.s32.totalorder %s82, %s84
    %p88 = scmp.eq.s32.totalorder %s13, 0
    %p89 = por %p87, %p88
    %p90 = scmp.ne.s32.totalorder %s82, %s84
    %p91 = scmp.eq.s32.totalorder %s18, 1
    %p92 = por %p90, %p91
    %p93 = scmp.ne.s32.totalorder %s84, %s85
    %p94 = scmp.eq.s32.totalorder %s18, 0
    %p95 = por %p93, %p94
    %p96 = scmp.ne.s32.totalorder %s84, %s85
    %p97 = scmp.eq.s32.totalorder %s19, 1
    %p98 = por %p96, %p97
    %p100 = scmp.ne.s32.totalorder %s85, %s99
    %p101 = scmp.eq.s32.totalorder %s19, 0
    %p102 = por %p100, %p101
    %s104 = sadd.s32 %s103, 1
    %p107 = scmp.eq.s32.totalorder %s13, 1
    %p108 = scmp.ne.s32.totalorder %s103, %s105
    %p109 = scmp.eq.s32.totalorder %s13, 0
    %p110 = por %p108, %p109
    %p111 = scmp.ne.s32.totalorder %s103, %s105
    %p112 = scmp.eq.s32.totalorder %s18, 1
    %p113 = por %p111, %p112
    %p114 = scmp.ne.s32.totalorder %s105, %s106
    %p115 = scmp.eq.s32.totalorder %s18, 0
    %p116 = por %p114, %p115
    %p117 = scmp.ne.s32.totalorder %s105, %s106
    %p118 = scmp.eq.s32.totalorder %s19, 1
    %p119 = por %p117, %p118
    %p121 = scmp.ne.s32.totalorder %s106, %s120
    %p122 = scmp.eq.s32.totalorder %s19, 0
    %p123 = por %p121, %p122
    %s124 = ssub.s32 %s20, %s32
    %s125 = ssub.s32 %s21, %s28
    %s126 = sor.u32 %s124, %s125
    %p127 = scmp.eq.s32.totalorder %s126, 0
    %s129 = sadd.s32 %s128, 1
    %s130 = scalar_select %p127, %s128, %s129
    %p133 = pneg %p127
    %p134 = scmp.eq.s32.totalorder %s13, 1
    %p135 = por %p133, %p134
    %p136 = scmp.ne.s32.totalorder %s128, %s131
    %p137 = scmp.eq.s32.totalorder %s13, 0
    %p138 = por %p136, %p137
    %p139 = scmp.ne.s32.totalorder %s128, %s131
    %p140 = scmp.eq.s32.totalorder %s18, 1
    %p141 = por %p139, %p140
    %p142 = scmp.ne.s32.totalorder %s131, %s132
    %p143 = scmp.eq.s32.totalorder %s18, 0
    %p144 = por %p142, %p143
    %p145 = scmp.ne.s32.totalorder %s131, %s132
    %p146 = scmp.eq.s32.totalorder %s19, 1
    %p147 = por %p145, %p146
    %p149 = scmp.ne.s32.totalorder %s132, %s148
    %p150 = scmp.eq.s32.totalorder %s19, 0
    %p151 = por %p149, %p150
    %s152 = ssub.s32 %s20, %s32
    %s153 = ssub.s32 %s21, %s28
    %s154 = sor.u32 %s152, %s153
    %p155 = scmp.eq.s32.totalorder %s154, 0
    %s157 = sadd.s32 %s156, 1
    %s158 = scalar_select %p155, %s156, %s157
    %p161 = pneg %p155
    %p162 = scmp.eq.s32.totalorder %s13, 1
    %p163 = por %p161, %p162
    %p164 = scmp.ne.s32.totalorder %s156, %s159
    %p165 = scmp.eq.s32.totalorder %s13, 0
    %p166 = por %p164, %p165
    %p167 = scmp.ne.s32.totalorder %s156, %s159
    %p168 = scmp.eq.s32.totalorder %s18, 1
    %p169 = por %p167, %p168
    %p170 = scmp.ne.s32.totalorder %s159, %s160
    %p171 = scmp.eq.s32.totalorder %s18, 0
    %p172 = por %p170, %p171
    %p173 = scmp.ne.s32.totalorder %s159, %s160
    %p174 = scmp.eq.s32.totalorder %s19, 1
    %p175 = por %p173, %p174
    %p177 = scmp.ne.s32.totalorder %s160, %s176
    %p178 = scmp.eq.s32.totalorder %s19, 0
    %p179 = por %p177, %p178
    %s180 = ssub.s32 %s20, %s32
    %s181 = ssub.s32 %s21, %s28
    %s182 = sor.u32 %s180, %s181
    %p183 = scmp.eq.s32.totalorder %s182, 0
    %s185 = sadd.s32 %s184, 1
    %s186 = scalar_select %p183, %s184, %s185
    %p189 = pneg %p183
    %p190 = scmp.eq.s32.totalorder %s13, 1
    %p191 = por %p189, %p190
    %p192 = scmp.ne.s32.totalorder %s184, %s187
    %p193 = scmp.eq.s32.totalorder %s13, 0
    %p194 = por %p192, %p193
    %p195 = scmp.ne.s32.totalorder %s184, %s187
    %p196 = scmp.eq.s32.totalorder %s18, 1
    %p197 = por %p195, %p196
    %p198 = scmp.ne.s32.totalorder %s187, %s188
    %p199 = scmp.eq.s32.totalorder %s18, 0
    %p200 = por %p198, %p199
    %p201 = scmp.ne.s32.totalorder %s187, %s188
    %p202 = scmp.eq.s32.totalorder %s19, 1
    %p203 = por %p201, %p202
    %p205 = scmp.ne.s32.totalorder %s188, %s204
    %p206 = scmp.eq.s32.totalorder %s19, 0
    %p207 = por %p205, %p206
    %p208 = scmp.le.s32.totalorder 1, %s13
    %p209 = scmp.lt.s32.totalorder %s13, 3
    %p210 = pnand %p208, %p209
    %p211 = pneg %p210
    // Predicated region
    $region9: #{tpu_custom_call.1} parent=5 // pred_check
      _
    $region10: #{tpu_custom_call.1} parent=5 // pred_check_branch
      %213 = sbr.rel (%p210) target = $region12
    $region11: #{tpu_custom_call.1} parent=5 // pred_region
      %s214 = ssub.s32 %s13, 1
      // Predicated region
      $region13: #{tpu_custom_call.1} parent=11 // pred_check
        %p215 = pneg %p74
      $region14: #{tpu_custom_call.1} parent=11 // pred_check_branch
        %217 = sbr.rel (%p215) target = $region16
      $region15: #{tpu_custom_call.1} parent=11 // pred_region
        _
      $region16: #{tpu_custom_call.1} parent=11 // pred_fallthru
        _
      // Predicated region
      $region17: #{tpu_custom_call.1} parent=11 // pred_check
        %p218 = pneg %p95
      $region18: #{tpu_custom_call.1} parent=11 // pred_check_branch
        %220 = sbr.rel (%p218) target = $region20
      $region19: #{tpu_custom_call.1} parent=11 // pred_region
        _
      $region20: #{tpu_custom_call.1} parent=11 // pred_fallthru
        _
      // Predicated region
      $region21: #{tpu_custom_call.1} parent=11 // pred_check
        %p221 = pneg %p116
      $region22: #{tpu_custom_call.1} parent=11 // pred_check_branch
        %223 = sbr.rel (%p221) target = $region24
      $region23: #{tpu_custom_call.1} parent=11 // pred_region
        _
      $region24: #{tpu_custom_call.1} parent=11 // pred_fallthru
        _
    $region12: #{tpu_custom_call.1} parent=5 // pred_fallthru
      _
    %p224 = scmp.lt.s32.totalorder %s13, 2
    // Predicated region
    $region25: #{tpu_custom_call.1} parent=5 // pred_check
      %p225 = pneg %p224
    $region26: #{tpu_custom_call.1} parent=5 // pred_check_branch
      %227 = sbr.rel (%p225) target = $region28
    $region27: #{tpu_custom_call.1} parent=5 // pred_region
      // Predicated region
      $region29: #{tpu_custom_call.1} parent=27 // pred_check
        %p228 = pneg %p47
      $region30: #{tpu_custom_call.1} parent=27 // pred_check_branch
        %230 = sbr.rel (%p228) target = $region32
      $region31: #{tpu_custom_call.1} parent=27 // pred_region
        %s231 = smul.u32 32, %s21
        %p232 = scmp.lt.s32.totalorder %s20, 1
        %s233 = scalar_select %p232, %s20, 1
        %p234 = scmp.lt.s32.totalorder %s231, 31
        %s235 = scalar_select %p234, %s231, 31
        %s236 = smul.addr %s233, 32
        %s237 = sadd.s32 %s235, %s236
        %s238 = smul.addr %s237, 8
        %s239 = scalar_lea.vmem %s0, %s238
        %s240 = smul.u32 32, %s21
      $region32: #{tpu_custom_call.1} parent=27 // pred_fallthru
        _
    $region28: #{tpu_custom_call.1} parent=5 // pred_fallthru
      _
    %p241 = scmp.le.s32.totalorder 1, %s13
    %p242 = scmp.lt.s32.totalorder %s13, 3
    %p243 = pnand %p241, %p242
    %p244 = pneg %p243
    // Predicated region
    $region33: #{tpu_custom_call.1} parent=5 // pred_check
      _
    $region34: #{tpu_custom_call.1} parent=5 // pred_check_branch
      %246 = sbr.rel (%p243) target = $region36
    $region35: #{tpu_custom_call.1} parent=5 // pred_region
      %s247 = ssub.s32 %s13, 1
      %s248 = smul.u32 32, %s23
      %p249 = scmp.lt.s32.totalorder %s22, 1
      %s250 = scalar_select %p249, %s22, 1
      %p251 = scmp.lt.s32.totalorder %s248, 31
      %s252 = scalar_select %p251, %s248, 31
      %s253 = smul.addr %s250, 32
      %s254 = sadd.s32 %s252, %s253
      %s255 = smul.addr %s254, 8
      %s256 = scalar_lea.vmem %s0, %s255
      %p257 = pneg %p53
      %p258 = pneg %p50
      %p259 = pneg %p74
      %p260 = pneg %p71
      %p261 = pneg %p95
      %p262 = pneg %p92
      %p263 = pneg %p116
      %p264 = pneg %p113
      %p265 = pneg %p144
      %p266 = pneg %p141
      %s267 = smul.u32 32, %s23
      %p268 = scmp.lt.s32.totalorder %s22, 1
      %s269 = scalar_select %p268, %s22, 1
      %p270 = scmp.lt.s32.totalorder %s267, 31
      %s271 = scalar_select %p270, %s267, 31
      %s272 = smul.addr %s269, 128
      %s273 = sadd.s32 %s271, %s272
      %s274 = smul.addr %s273, 8
      %s275 = scalar_lea.vmem %s4, %s274
      %p276 = pneg %p172
      %p277 = pneg %p169
      %s278 = smul.u32 32, %s23
      %p279 = scmp.lt.s32.totalorder %s22, 1
      %s280 = scalar_select %p279, %s22, 1
      %p281 = scmp.lt.s32.totalorder %s278, 31
      %s282 = scalar_select %p281, %s278, 31
      %s283 = smul.addr %s280, 128
      %s284 = sadd.s32 %s282, %s283
      %s285 = smul.addr %s284, 8
      %s286 = scalar_lea.vmem %s5, %s285
      %p287 = pneg %p200
      %p288 = pneg %p197
      %s289 = smul.u32 32, %s23
      %p290 = scmp.lt.s32.totalorder %s22, 1
      %s291 = scalar_select %p290, %s22, 1
      %p292 = scmp.lt.s32.totalorder %s289, 31
      %s293 = scalar_select %p292, %s289, 31
      %s294 = smul.addr %s291, 128
      %s295 = sadd.s32 %s293, %s294
      %s296 = smul.addr %s295, 8
      %s297 = scalar_lea.vmem %s6, %s296
      %s298 = smul.u32 32, %s23
      %p299 = scmp.lt.s32.totalorder %s22, 1
      %s300 = scalar_select %p299, %s22, 1
      %p301 = scmp.lt.s32.totalorder %s298, 31
      %s302 = scalar_select %p301, %s298, 31
      %s303 = smul.addr %s300, 32
      %s304 = sadd.s32 %s302, %s303
      %s305 = smul.addr %s304, 8
      %s306 = scalar_lea.vmem %s0, %s305
      %s307 = smul.u32 32, %s23
      %s308 = smul.u32 32, %s23
      %p309 = scmp.lt.s32.totalorder %s22, 1
      %s310 = scalar_select %p309, %s22, 1
      %p311 = scmp.lt.s32.totalorder %s308, 31
      %s312 = scalar_select %p311, %s308, 31
      %s313 = smul.addr %s310, 128
      %s314 = sadd.s32 %s312, %s313
      %s315 = smul.addr %s314, 8
      %s316 = scalar_lea.vmem %s4, %s315
      %s317 = smul.u32 32, %s23
      %s318 = smul.u32 32, %s23
      %p319 = scmp.lt.s32.totalorder %s22, 1
      %s320 = scalar_select %p319, %s22, 1
      %p321 = scmp.lt.s32.totalorder %s318, 31
      %s322 = scalar_select %p321, %s318, 31
      %s323 = smul.addr %s320, 128
      %s324 = sadd.s32 %s322, %s323
      %s325 = smul.addr %s324, 8
      %s326 = scalar_lea.vmem %s5, %s325
      %s327 = smul.u32 32, %s23
      %s328 = smul.u32 32, %s23
      %p329 = scmp.lt.s32.totalorder %s22, 1
      %s330 = scalar_select %p329, %s22, 1
      %p331 = scmp.lt.s32.totalorder %s328, 31
      %s332 = scalar_select %p331, %s328, 31
      %s333 = smul.addr %s330, 128
      %s334 = sadd.s32 %s332, %s333
      %s335 = smul.addr %s334, 8
      %s336 = scalar_lea.vmem %s6, %s335
      %s337 = smul.u32 32, %s23
      %v338 = vld [vmem:[%s306] sm:$0xff]
      %v339 = vld [vmem:[%s306 + $0x8] sm:$0xff]
      %v340 = vld [vmem:[%s306 + $0x10] sm:$0xff]
      %v341 = vld [vmem:[%s306 + $0x18] sm:$0xff]
      %v342 = vld [vmem:[%s306 + $0x20] sm:$0xff]
      %v343 = vld [vmem:[%s306 + $0x28] sm:$0xff]
      %v344 = vld [vmem:[%s306 + $0x30] sm:$0xff]
      %v345 = vld [vmem:[%s306 + $0x38] sm:$0xff]
      %v346 = vld [vmem:[%s306 + $0x40] sm:$0xff]
      %v347 = vld [vmem:[%s306 + $0x48] sm:$0xff]
      %v348 = vld [vmem:[%s306 + $0x50] sm:$0xff]
      %v349 = vld [vmem:[%s306 + $0x58] sm:$0xff]
      %v350 = vld [vmem:[%s306 + $0x60] sm:$0xff]
      %v351 = vld [vmem:[%s306 + $0x68] sm:$0xff]
      %v352 = vld [vmem:[%s306 + $0x70] sm:$0xff]
      %v353 = vld [vmem:[%s306 + $0x78] sm:$0xff]
      %v354 = vld [vmem:[%s306 + $0x80] sm:$0xff]
      %v355 = vld [vmem:[%s306 + $0x88] sm:$0xff]
      %v356 = vld [vmem:[%s306 + $0x90] sm:$0xff]
      %v357 = vld [vmem:[%s306 + $0x98] sm:$0xff]
      %v358 = vld [vmem:[%s306 + $0xa0] sm:$0xff]
      %v359 = vld [vmem:[%s306 + $0xa8] sm:$0xff]
      %v360 = vld [vmem:[%s306 + $0xb0] sm:$0xff]
      %v361 = vld [vmem:[%s306 + $0xb8] sm:$0xff]
      %v362 = vld [vmem:[%s306 + $0xc0] sm:$0xff]
      %v363 = vld [vmem:[%s306 + $0xc8] sm:$0xff]
      %v364 = vld [vmem:[%s306 + $0xd0] sm:$0xff]
      %v365 = vld [vmem:[%s306 + $0xd8] sm:$0xff]
      %v366 = vld [vmem:[%s306 + $0xe0] sm:$0xff]
      %v367 = vld [vmem:[%s306 + $0xe8] sm:$0xff]
      %v368 = vld [vmem:[%s306 + $0xf0] sm:$0xff]
      %v369 = vld [vmem:[%s306 + $0xf8] sm:$0xff]
      %v370 = vld [vmem:[%s1] sm:$0xff]
      %v371 = vld [vmem:[%s1 + $0x8] sm:$0xff]
      %v372 = vld [vmem:[%s1 + $0x10] sm:$0xff]
      %v373 = vld [vmem:[%s1 + $0x18] sm:$0xff]
      %v374 = vld [vmem:[%s1 + $0x20] sm:$0xff]
      %v375 = vld [vmem:[%s1 + $0x28] sm:$0xff]
      %v376 = vld [vmem:[%s1 + $0x30] sm:$0xff]
      %v377 = vld [vmem:[%s1 + $0x38] sm:$0xff]
      %v378 = vld [vmem:[%s1 + $0x40] sm:$0xff]
      %v379 = vld [vmem:[%s1 + $0x48] sm:$0xff]
      %v380 = vld [vmem:[%s1 + $0x50] sm:$0xff]
      %v381 = vld [vmem:[%s1 + $0x58] sm:$0xff]
      %v382 = vld [vmem:[%s1 + $0x60] sm:$0xff]
      %v383 = vld [vmem:[%s1 + $0x68] sm:$0xff]
      %v384 = vld [vmem:[%s1 + $0x70] sm:$0xff]
      %v385 = vld [vmem:[%s1 + $0x78] sm:$0xff]
      %386 = vmatprep.subr.mxu0 0.0
      %387 = vmatpush1.msra.mxu0 %v385
      %388 = vmatprep.subr.mxu0 0.0
      %389 = vmatpush1.msra.mxu0 %v384
      %390 = vmatprep.subr.mxu0 0.0
      %391 = vmatpush1.msra.mxu0 %v383
      %392 = vmatprep.subr.mxu0 0.0
      %393 = vmatpush1.msra.mxu0 %v382
      %394 = vmatprep.subr.mxu0 0.0
      %395 = vmatpush1.msra.mxu0 %v381
      %396 = vmatprep.subr.mxu0 0.0
      %397 = vmatpush1.msra.mxu0 %v380
      %398 = vmatprep.subr.mxu0 0.0
      %399 = vmatpush1.msra.mxu0 %v379
      %400 = vmatprep.subr.mxu0 0.0
      %401 = vmatpush1.msra.mxu0 %v378
      %402 = vmatprep.subr.mxu0 0.0
      %403 = vmatpush1.msra.mxu0 %v377
      %404 = vmatprep.subr.mxu0 0.0
      %405 = vmatpush1.msra.mxu0 %v376
      %406 = vmatprep.subr.mxu0 0.0
      %407 = vmatpush1.msra.mxu0 %v375
      %408 = vmatprep.subr.mxu0 0.0
      %409 = vmatpush1.msra.mxu0 %v374
      %410 = vmatprep.subr.mxu0 0.0
      %411 = vmatpush1.msra.mxu0 %v373
      %412 = vmatprep.subr.mxu0 0.0
      %413 = vmatpush1.msra.mxu0 %v372
      %414 = vmatprep.subr.mxu0 0.0
      %415 = vmatpush1.msra.mxu0 %v371
      %416 = vmatprep.subr.mxu0 0.0
      %417 = vmatpush1.msra.mxu0 %v370
      %418 = vmatprep.subr.mxu0 0.0
      %419 = vmatpush2.msra.mxu0 0.0
      %420 = vmatprep.subr.mxu0 0.0
      %421 = vmatpush2.msra.mxu0 0.0
      %422 = vmatprep.subr.mxu0 0.0
      %423 = vmatpush2.msra.mxu0 0.0
      %424 = vmatprep.subr.mxu0 0.0
      %425 = vmatpush2.msra.mxu0 0.0
      %426 = vmatprep.subr.mxu0 0.0
      %427 = vmatpush2.msra.mxu0 0.0
      %428 = vmatprep.subr.mxu0 0.0
      %429 = vmatpush2.msra.mxu0 0.0
      %430 = vmatprep.subr.mxu0 0.0
      %431 = vmatpush2.msra.mxu0 0.0
      %432 = vmatprep.subr.mxu0 0.0
      %433 = vmatpush2.msra.mxu0 0.0
      %434 = vmatprep.subr.mxu0 0.0
      %435 = vmatpush2.msra.mxu0 0.0
      %436 = vmatprep.subr.mxu0 0.0
      %437 = vmatpush2.msra.mxu0 0.0
      %438 = vmatprep.subr.mxu0 0.0
      %439 = vmatpush2.msra.mxu0 0.0
      %440 = vmatprep.subr.mxu0 0.0
      %441 = vmatpush2.msra.mxu0 0.0
      %442 = vmatprep.subr.mxu0 0.0
      %443 = vmatpush2.msra.mxu0 0.0
      %444 = vmatprep.subr.mxu0 0.0
      %445 = vmatpush2.msra.mxu0 0.0
      %446 = vmatprep.subr.mxu0 0.0
      %447 = vmatpush2.msra.mxu0 0.0
      %448 = vmatprep.subr.mxu0 0.0
      %449 = vmatpush2.msra.mxu0 0.0
      %450 = vmatprep.mubr.f32.mxu0 0.0
      %451 = vmatmul.mubr.f32.gmra.mxu0 %v338
      %v452 = vpop.f32.mrf.mxu0
      %v453 = vadd.f32 0.0, %v452
      %v454 = vpop.f32.mrf.mxu0
      %455 = vmatprep.mubr.f32.mxu0 0.0
      %456 = vmatmul.mubr.f32.gmra.mxu0 %v339
      %v457 = vpop.f32.mrf.mxu0
      %v458 = vadd.f32 0.0, %v457
      %v459 = vpop.f32.mrf.mxu0
      %460 = vmatprep.mubr.f32.mxu0 0.0
      %461 = vmatmul.mubr.f32.gmra.mxu0 %v340
      %v462 = vpop.f32.mrf.mxu0
      %v463 = vadd.f32 0.0, %v462
      %v464 = vpop.f32.mrf.mxu0
      %465 = vmatprep.mubr.f32.mxu0 0.0
      %466 = vmatmul.mubr.f32.gmra.mxu0 %v341
      %v467 = vpop.f32.mrf.mxu0
      %v468 = vadd.f32 0.0, %v467
      %v469 = vpop.f32.mrf.mxu0
      %470 = vmatprep.mubr.f32.mxu0 0.0
      %471 = vmatmul.mubr.f32.gmra.mxu0 %v342
      %v472 = vpop.f32.mrf.mxu0
      %v473 = vadd.f32 0.0, %v472
      %v474 = vpop.f32.mrf.mxu0
      %475 = vmatprep.mubr.f32.mxu0 0.0
      %476 = vmatmul.mubr.f32.gmra.mxu0 %v343
      %v477 = vpop.f32.mrf.mxu0
      %v478 = vadd.f32 0.0, %v477
      %v479 = vpop.f32.mrf.mxu0
      %480 = vmatprep.mubr.f32.mxu0 0.0
      %481 = vmatmul.mubr.f32.gmra.mxu0 %v344
      %v482 = vpop.f32.mrf.mxu0
      %v483 = vadd.f32 0.0, %v482
      %v484 = vpop.f32.mrf.mxu0
      %485 = vmatprep.mubr.f32.mxu0 0.0
      %486 = vmatmul.mubr.f32.gmra.mxu0 %v345
      %v487 = vpop.f32.mrf.mxu0
      %v488 = vadd.f32 0.0, %v487
      %v489 = vpop.f32.mrf.mxu0
      %490 = vmatprep.mubr.f32.mxu0 0.0
      %491 = vmatmul.mubr.f32.gmra.mxu0 %v346
      %v492 = vpop.f32.mrf.mxu0
      %v493 = vadd.f32 0.0, %v492
      %v494 = vpop.f32.mrf.mxu0
      %495 = vmatprep.mubr.f32.mxu0 0.0
      %496 = vmatmul.mubr.f32.gmra.mxu0 %v347
      %v497 = vpop.f32.mrf.mxu0
      %v498 = vadd.f32 0.0, %v497
      %v499 = vpop.f32.mrf.mxu0
      %500 = vmatprep.mubr.f32.mxu0 0.0
      %501 = vmatmul.mubr.f32.gmra.mxu0 %v348
      %v502 = vpop.f32.mrf.mxu0
      %v503 = vadd.f32 0.0, %v502
      %v504 = vpop.f32.mrf.mxu0
      %505 = vmatprep.mubr.f32.mxu0 0.0
      %506 = vmatmul.mubr.f32.gmra.mxu0 %v349
      %v507 = vpop.f32.mrf.mxu0
      %v508 = vadd.f32 0.0, %v507
      %v509 = vpop.f32.mrf.mxu0
      %510 = vmatprep.mubr.f32.mxu0 0.0
      %511 = vmatmul.mubr.f32.gmra.mxu0 %v350
      %v512 = vpop.f32.mrf.mxu0
      %v513 = vadd.f32 0.0, %v512
      %v514 = vpop.f32.mrf.mxu0
      %515 = vmatprep.mubr.f32.mxu0 0.0
      %516 = vmatmul.mubr.f32.gmra.mxu0 %v351
      %v517 = vpop.f32.mrf.mxu0
      %v518 = vadd.f32 0.0, %v517
      %v519 = vpop.f32.mrf.mxu0
      %520 = vmatprep.mubr.f32.mxu0 0.0
      %521 = vmatmul.mubr.f32.gmra.mxu0 %v352
      %v522 = vpop.f32.mrf.mxu0
      %v523 = vadd.f32 0.0, %v522
      %v524 = vpop.f32.mrf.mxu0
      %525 = vmatprep.mubr.f32.mxu0 0.0
      %526 = vmatmul.mubr.f32.gmra.mxu0 %v353
      %v527 = vpop.f32.mrf.mxu0
      %v528 = vadd.f32 0.0, %v527
      %v529 = vpop.f32.mrf.mxu0
      %530 = vmatprep.mubr.f32.mxu0 0.0
      %531 = vmatmul.mubr.f32.gmra.mxu0 %v354
      %v532 = vpop.f32.mrf.mxu0
      %v533 = vadd.f32 0.0, %v532
      %v534 = vpop.f32.mrf.mxu0
      %535 = vmatprep.mubr.f32.mxu0 0.0
      %536 = vmatmul.mubr.f32.gmra.mxu0 %v355
      %v537 = vpop.f32.mrf.mxu0
      %v538 = vadd.f32 0.0, %v537
      %v539 = vpop.f32.mrf.mxu0
      %540 = vmatprep.mubr.f32.mxu0 0.0
      %541 = vmatmul.mubr.f32.gmra.mxu0 %v356
      %v542 = vpop.f32.mrf.mxu0
      %v543 = vadd.f32 0.0, %v542
      %v544 = vpop.f32.mrf.mxu0
      %545 = vmatprep.mubr.f32.mxu0 0.0
      %546 = vmatmul.mubr.f32.gmra.mxu0 %v357
      %v547 = vpop.f32.mrf.mxu0
      %v548 = vadd.f32 0.0, %v547
      %v549 = vpop.f32.mrf.mxu0
      %550 = vmatprep.mubr.f32.mxu0 0.0
      %551 = vmatmul.mubr.f32.gmra.mxu0 %v358
      %v552 = vpop.f32.mrf.mxu0
      %v553 = vadd.f32 0.0, %v552
      %v554 = vpop.f32.mrf.mxu0
      %555 = vmatprep.mubr.f32.mxu0 0.0
      %556 = vmatmul.mubr.f32.gmra.mxu0 %v359
      %v557 = vpop.f32.mrf.mxu0
      %v558 = vadd.f32 0.0, %v557
      %v559 = vpop.f32.mrf.mxu0
      %560 = vmatprep.mubr.f32.mxu0 0.0
      %561 = vmatmul.mubr.f32.gmra.mxu0 %v360
      %v562 = vpop.f32.mrf.mxu0
      %v563 = vadd.f32 0.0, %v562
      %v564 = vpop.f32.mrf.mxu0
      %565 = vmatprep.mubr.f32.mxu0 0.0
      %566 = vmatmul.mubr.f32.gmra.mxu0 %v361
      %v567 = vpop.f32.mrf.mxu0
      %v568 = vadd.f32 0.0, %v567
      %v569 = vpop.f32.mrf.mxu0
      %570 = vmatprep.mubr.f32.mxu0 0.0
      %571 = vmatmul.mubr.f32.gmra.mxu0 %v362
      %v572 = vpop.f32.mrf.mxu0
      %v573 = vadd.f32 0.0, %v572
      %v574 = vpop.f32.mrf.mxu0
      %575 = vmatprep.mubr.f32.mxu0 0.0
      %576 = vmatmul.mubr.f32.gmra.mxu0 %v363
      %v577 = vpop.f32.mrf.mxu0
      %v578 = vadd.f32 0.0, %v577
      %v579 = vpop.f32.mrf.mxu0
      %580 = vmatprep.mubr.f32.mxu0 0.0
      %581 = vmatmul.mubr.f32.gmra.mxu0 %v364
      %v582 = vpop.f32.mrf.mxu0
      %v583 = vadd.f32 0.0, %v582
      %v584 = vpop.f32.mrf.mxu0
      %585 = vmatprep.mubr.f32.mxu0 0.0
      %586 = vmatmul.mubr.f32.gmra.mxu0 %v365
      %v587 = vpop.f32.mrf.mxu0
      %v588 = vadd.f32 0.0, %v587
      %v589 = vpop.f32.mrf.mxu0
      %590 = vmatprep.mubr.f32.mxu0 0.0
      %591 = vmatmul.mubr.f32.gmra.mxu0 %v366
      %v592 = vpop.f32.mrf.mxu0
      %v593 = vadd.f32 0.0, %v592
      %v594 = vpop.f32.mrf.mxu0
      %595 = vmatprep.mubr.f32.mxu0 0.0
      %596 = vmatmul.mubr.f32.gmra.mxu0 %v367
      %v597 = vpop.f32.mrf.mxu0
      %v598 = vadd.f32 0.0, %v597
      %v599 = vpop.f32.mrf.mxu0
      %600 = vmatprep.mubr.f32.mxu0 0.0
      %601 = vmatmul.mubr.f32.gmra.mxu0 %v368
      %v602 = vpop.f32.mrf.mxu0
      %v603 = vadd.f32 0.0, %v602
      %v604 = vpop.f32.mrf.mxu0
      %605 = vmatprep.mubr.f32.mxu0 0.0
      %606 = vmatmul.mubr.f32.gmra.mxu0 %v369
      %v607 = vpop.f32.mrf.mxu0
      %v608 = vadd.f32 0.0, %v607
      %v609 = vpop.f32.mrf.mxu0
      %610 = vdwg.mxu0
      %vm611 = vcmask 261120
      %612 = vst.msk [vmem:[%s316] sm:$0xff] %vm611, %v453
      %613 = vst.msk [vmem:[%s316 + $0x8] sm:$0xff] %vm611, %v458
      %614 = vst.msk [vmem:[%s316 + $0x10] sm:$0xff] %vm611, %v463
      %615 = vst.msk [vmem:[%s316 + $0x18] sm:$0xff] %vm611, %v468
      %616 = vst.msk [vmem:[%s316 + $0x20] sm:$0xff] %vm611, %v473
      %617 = vst.msk [vmem:[%s316 + $0x28] sm:$0xff] %vm611, %v478
      %618 = vst.msk [vmem:[%s316 + $0x30] sm:$0xff] %vm611, %v483
      %619 = vst.msk [vmem:[%s316 + $0x38] sm:$0xff] %vm611, %v488
      %620 = vst.msk [vmem:[%s316 + $0x40] sm:$0xff] %vm611, %v493
      %621 = vst.msk [vmem:[%s316 + $0x48] sm:$0xff] %vm611, %v498
      %622 = vst.msk [vmem:[%s316 + $0x50] sm:$0xff] %vm611, %v503
      %623 = vst.msk [vmem:[%s316 + $0x58] sm:$0xff] %vm611, %v508
      %624 = vst.msk [vmem:[%s316 + $0x60] sm:$0xff] %vm611, %v513
      %625 = vst.msk [vmem:[%s316 + $0x68] sm:$0xff] %vm611, %v518
      %626 = vst.msk [vmem:[%s316 + $0x70] sm:$0xff] %vm611, %v523
      %627 = vst.msk [vmem:[%s316 + $0x78] sm:$0xff] %vm611, %v528
      %628 = vst.msk [vmem:[%s316 + $0x80] sm:$0xff] %vm611, %v533
      %629 = vst.msk [vmem:[%s316 + $0x88] sm:$0xff] %vm611, %v538
      %630 = vst.msk [vmem:[%s316 + $0x90] sm:$0xff] %vm611, %v543
      %631 = vst.msk [vmem:[%s316 + $0x98] sm:$0xff] %vm611, %v548
      %632 = vst.msk [vmem:[%s316 + $0xa0] sm:$0xff] %vm611, %v553
      %633 = vst.msk [vmem:[%s316 + $0xa8] sm:$0xff] %vm611, %v558
      %634 = vst.msk [vmem:[%s316 + $0xb0] sm:$0xff] %vm611, %v563
      %635 = vst.msk [vmem:[%s316 + $0xb8] sm:$0xff] %vm611, %v568
      %636 = vst.msk [vmem:[%s316 + $0xc0] sm:$0xff] %vm611, %v573
      %637 = vst.msk [vmem:[%s316 + $0xc8] sm:$0xff] %vm611, %v578
      %638 = vst.msk [vmem:[%s316 + $0xd0] sm:$0xff] %vm611, %v583
      %639 = vst.msk [vmem:[%s316 + $0xd8] sm:$0xff] %vm611, %v588
      %640 = vst.msk [vmem:[%s316 + $0xe0] sm:$0xff] %vm611, %v593
      %641 = vst.msk [vmem:[%s316 + $0xe8] sm:$0xff] %vm611, %v598
      %642 = vst.msk [vmem:[%s316 + $0xf0] sm:$0xff] %vm611, %v603
      %643 = vst.msk [vmem:[%s316 + $0xf8] sm:$0xff] %vm611, %v608
      %s644 = scalar_lea.vmem %s1, 128
      %v645 = vld [vmem:[%s644] sm:$0xff]
      %v646 = vld [vmem:[%s644 + $0x8] sm:$0xff]
      %v647 = vld [vmem:[%s644 + $0x10] sm:$0xff]
      %v648 = vld [vmem:[%s644 + $0x18] sm:$0xff]
      %v649 = vld [vmem:[%s644 + $0x20] sm:$0xff]
      %v650 = vld [vmem:[%s644 + $0x28] sm:$0xff]
      %v651 = vld [vmem:[%s644 + $0x30] sm:$0xff]
      %v652 = vld [vmem:[%s644 + $0x38] sm:$0xff]
      %v653 = vld [vmem:[%s644 + $0x40] sm:$0xff]
      %v654 = vld [vmem:[%s644 + $0x48] sm:$0xff]
      %v655 = vld [vmem:[%s644 + $0x50] sm:$0xff]
      %v656 = vld [vmem:[%s644 + $0x58] sm:$0xff]
      %v657 = vld [vmem:[%s644 + $0x60] sm:$0xff]
      %v658 = vld [vmem:[%s644 + $0x68] sm:$0xff]
      %v659 = vld [vmem:[%s644 + $0x70] sm:$0xff]
      %v660 = vld [vmem:[%s644 + $0x78] sm:$0xff]
      %661 = vmatprep.subr.mxu0 0.0
      %662 = vmatpush1.msra.mxu0 %v660
      %663 = vmatprep.subr.mxu0 0.0
      %664 = vmatpush1.msra.mxu0 %v659
      %665 = vmatprep.subr.mxu0 0.0
      %666 = vmatpush1.msra.mxu0 %v658
      %667 = vmatprep.subr.mxu0 0.0
      %668 = vmatpush1.msra.mxu0 %v657
      %669 = vmatprep.subr.mxu0 0.0
      %670 = vmatpush1.msra.mxu0 %v656
      %671 = vmatprep.subr.mxu0 0.0
      %672 = vmatpush1.msra.mxu0 %v655
      %673 = vmatprep.subr.mxu0 0.0
      %674 = vmatpush1.msra.mxu0 %v654
      %675 = vmatprep.subr.mxu0 0.0
      %676 = vmatpush1.msra.mxu0 %v653
      %677 = vmatprep.subr.mxu0 0.0
      %678 = vmatpush1.msra.mxu0 %v652
      %679 = vmatprep.subr.mxu0 0.0
      %680 = vmatpush1.msra.mxu0 %v651
      %681 = vmatprep.subr.mxu0 0.0
      %682 = vmatpush1.msra.mxu0 %v650
      %683 = vmatprep.subr.mxu0 0.0
      %684 = vmatpush1.msra.mxu0 %v649
      %685 = vmatprep.subr.mxu0 0.0
      %686 = vmatpush1.msra.mxu0 %v648
      %687 = vmatprep.subr.mxu0 0.0
      %688 = vmatpush1.msra.mxu0 %v647
      %689 = vmatprep.subr.mxu0 0.0
      %690 = vmatpush1.msra.mxu0 %v646
      %691 = vmatprep.subr.mxu0 0.0
      %692 = vmatpush1.msra.mxu0 %v645
      %693 = vmatprep.subr.mxu0 0.0
      %694 = vmatpush2.msra.mxu0 0.0
      %695 = vmatprep.subr.mxu0 0.0
      %696 = vmatpush2.msra.mxu0 0.0
      %697 = vmatprep.subr.mxu0 0.0
      %698 = vmatpush2.msra.mxu0 0.0
      %699 = vmatprep.subr.mxu0 0.0
      %700 = vmatpush2.msra.mxu0 0.0
      %701 = vmatprep.subr.mxu0 0.0
      %702 = vmatpush2.msra.mxu0 0.0
      %703 = vmatprep.subr.mxu0 0.0
      %704 = vmatpush2.msra.mxu0 0.0
      %705 = vmatprep.subr.mxu0 0.0
      %706 = vmatpush2.msra.mxu0 0.0
      %707 = vmatprep.subr.mxu0 0.0
      %708 = vmatpush2.msra.mxu0 0.0
      %709 = vmatprep.subr.mxu0 0.0
      %710 = vmatpush2.msra.mxu0 0.0
      %711 = vmatprep.subr.mxu0 0.0
      %712 = vmatpush2.msra.mxu0 0.0
      %713 = vmatprep.subr.mxu0 0.0
      %714 = vmatpush2.msra.mxu0 0.0
      %715 = vmatprep.subr.mxu0 0.0
      %716 = vmatpush2.msra.mxu0 0.0
      %717 = vmatprep.subr.mxu0 0.0
      %718 = vmatpush2.msra.mxu0 0.0
      %719 = vmatprep.subr.mxu0 0.0
      %720 = vmatpush2.msra.mxu0 0.0
      %721 = vmatprep.subr.mxu0 0.0
      %722 = vmatpush2.msra.mxu0 0.0
      %723 = vmatprep.subr.mxu0 0.0
      %724 = vmatpush2.msra.mxu0 0.0
      %725 = vmatprep.mubr.f32.mxu0 0.0
      %726 = vmatmul.mubr.f32.gmra.mxu0 %v338
      %v727 = vpop.f32.mrf.mxu0
      %v728 = vadd.f32 0.0, %v727
      %v729 = vpop.f32.mrf.mxu0
      %730 = vmatprep.mubr.f32.mxu0 0.0
      %731 = vmatmul.mubr.f32.gmra.mxu0 %v339
      %v732 = vpop.f32.mrf.mxu0
      %v733 = vadd.f32 0.0, %v732
      %v734 = vpop.f32.mrf.mxu0
      %735 = vmatprep.mubr.f32.mxu0 0.0
      %736 = vmatmul.mubr.f32.gmra.mxu0 %v340
      %v737 = vpop.f32.mrf.mxu0
      %v738 = vadd.f32 0.0, %v737
      %v739 = vpop.f32.mrf.mxu0
      %740 = vmatprep.mubr.f32.mxu0 0.0
      %741 = vmatmul.mubr.f32.gmra.mxu0 %v341
      %v742 = vpop.f32.mrf.mxu0
      %v743 = vadd.f32 0.0, %v742
      %v744 = vpop.f32.mrf.mxu0
      %745 = vmatprep.mubr.f32.mxu0 0.0
      %746 = vmatmul.mubr.f32.gmra.mxu0 %v342
      %v747 = vpop.f32.mrf.mxu0
      %v748 = vadd.f32 0.0, %v747
      %v749 = vpop.f32.mrf.mxu0
      %750 = vmatprep.mubr.f32.mxu0 0.0
      %751 = vmatmul.mubr.f32.gmra.mxu0 %v343
      %v752 = vpop.f32.mrf.mxu0
      %v753 = vadd.f32 0.0, %v752
      %v754 = vpop.f32.mrf.mxu0
      %755 = vmatprep.mubr.f32.mxu0 0.0
      %756 = vmatmul.mubr.f32.gmra.mxu0 %v344
      %v757 = vpop.f32.mrf.mxu0
      %v758 = vadd.f32 0.0, %v757
      %v759 = vpop.f32.mrf.mxu0
      %760 = vmatprep.mubr.f32.mxu0 0.0
      %761 = vmatmul.mubr.f32.gmra.mxu0 %v345
      %v762 = vpop.f32.mrf.mxu0
      %v763 = vadd.f32 0.0, %v762
      %v764 = vpop.f32.mrf.mxu0
      %765 = vmatprep.mubr.f32.mxu0 0.0
      %766 = vmatmul.mubr.f32.gmra.mxu0 %v346
      %v767 = vpop.f32.mrf.mxu0
      %v768 = vadd.f32 0.0, %v767
      %v769 = vpop.f32.mrf.mxu0
      %770 = vmatprep.mubr.f32.mxu0 0.0
      %771 = vmatmul.mubr.f32.gmra.mxu0 %v347
      %v772 = vpop.f32.mrf.mxu0
      %v773 = vadd.f32 0.0, %v772
      %v774 = vpop.f32.mrf.mxu0
      %775 = vmatprep.mubr.f32.mxu0 0.0
      %776 = vmatmul.mubr.f32.gmra.mxu0 %v348
      %v777 = vpop.f32.mrf.mxu0
      %v778 = vadd.f32 0.0, %v777
      %v779 = vpop.f32.mrf.mxu0
      %780 = vmatprep.mubr.f32.mxu0 0.0
      %781 = vmatmul.mubr.f32.gmra.mxu0 %v349
      %v782 = vpop.f32.mrf.mxu0
      %v783 = vadd.f32 0.0, %v782
      %v784 = vpop.f32.mrf.mxu0
      %785 = vmatprep.mubr.f32.mxu0 0.0
      %786 = vmatmul.mubr.f32.gmra.mxu0 %v350
      %v787 = vpop.f32.mrf.mxu0
      %v788 = vadd.f32 0.0, %v787
      %v789 = vpop.f32.mrf.mxu0
      %790 = vmatprep.mubr.f32.mxu0 0.0
      %791 = vmatmul.mubr.f32.gmra.mxu0 %v351
      %v792 = vpop.f32.mrf.mxu0
      %v793 = vadd.f32 0.0, %v792
      %v794 = vpop.f32.mrf.mxu0
      %795 = vmatprep.mubr.f32.mxu0 0.0
      %796 = vmatmul.mubr.f32.gmra.mxu0 %v352
      %v797 = vpop.f32.mrf.mxu0
      %v798 = vadd.f32 0.0, %v797
      %v799 = vpop.f32.mrf.mxu0
      %800 = vmatprep.mubr.f32.mxu0 0.0
      %801 = vmatmul.mubr.f32.gmra.mxu0 %v353
      %v802 = vpop.f32.mrf.mxu0
      %v803 = vadd.f32 0.0, %v802
      %v804 = vpop.f32.mrf.mxu0
      %805 = vmatprep.mubr.f32.mxu0 0.0
      %806 = vmatmul.mubr.f32.gmra.mxu0 %v354
      %v807 = vpop.f32.mrf.mxu0
      %v808 = vadd.f32 0.0, %v807
      %v809 = vpop.f32.mrf.mxu0
      %810 = vmatprep.mubr.f32.mxu0 0.0
      %811 = vmatmul.mubr.f32.gmra.mxu0 %v355
      %v812 = vpop.f32.mrf.mxu0
      %v813 = vadd.f32 0.0, %v812
      %v814 = vpop.f32.mrf.mxu0
      %815 = vmatprep.mubr.f32.mxu0 0.0
      %816 = vmatmul.mubr.f32.gmra.mxu0 %v356
      %v817 = vpop.f32.mrf.mxu0
      %v818 = vadd.f32 0.0, %v817
      %v819 = vpop.f32.mrf.mxu0
      %820 = vmatprep.mubr.f32.mxu0 0.0
      %821 = vmatmul.mubr.f32.gmra.mxu0 %v357
      %v822 = vpop.f32.mrf.mxu0
      %v823 = vadd.f32 0.0, %v822
      %v824 = vpop.f32.mrf.mxu0
      %825 = vmatprep.mubr.f32.mxu0 0.0
      %826 = vmatmul.mubr.f32.gmra.mxu0 %v358
      %v827 = vpop.f32.mrf.mxu0
      %v828 = vadd.f32 0.0, %v827
      %v829 = vpop.f32.mrf.mxu0
      %830 = vmatprep.mubr.f32.mxu0 0.0
      %831 = vmatmul.mubr.f32.gmra.mxu0 %v359
      %v832 = vpop.f32.mrf.mxu0
      %v833 = vadd.f32 0.0, %v832
      %v834 = vpop.f32.mrf.mxu0
      %835 = vmatprep.mubr.f32.mxu0 0.0
      %836 = vmatmul.mubr.f32.gmra.mxu0 %v360
      %v837 = vpop.f32.mrf.mxu0
      %v838 = vadd.f32 0.0, %v837
      %v839 = vpop.f32.mrf.mxu0
      %840 = vmatprep.mubr.f32.mxu0 0.0
      %841 = vmatmul.mubr.f32.gmra.mxu0 %v361
      %v842 = vpop.f32.mrf.mxu0
      %v843 = vadd.f32 0.0, %v842
      %v844 = vpop.f32.mrf.mxu0
      %845 = vmatprep.mubr.f32.mxu0 0.0
      %846 = vmatmul.mubr.f32.gmra.mxu0 %v362
      %v847 = vpop.f32.mrf.mxu0
      %v848 = vadd.f32 0.0, %v847
      %v849 = vpop.f32.mrf.mxu0
      %850 = vmatprep.mubr.f32.mxu0 0.0
      %851 = vmatmul.mubr.f32.gmra.mxu0 %v363
      %v852 = vpop.f32.mrf.mxu0
      %v853 = vadd.f32 0.0, %v852
      %v854 = vpop.f32.mrf.mxu0
      %855 = vmatprep.mubr.f32.mxu0 0.0
      %856 = vmatmul.mubr.f32.gmra.mxu0 %v364
      %v857 = vpop.f32.mrf.mxu0
      %v858 = vadd.f32 0.0, %v857
      %v859 = vpop.f32.mrf.mxu0
      %860 = vmatprep.mubr.f32.mxu0 0.0
      %861 = vmatmul.mubr.f32.gmra.mxu0 %v365
      %v862 = vpop.f32.mrf.mxu0
      %v863 = vadd.f32 0.0, %v862
      %v864 = vpop.f32.mrf.mxu0
      %865 = vmatprep.mubr.f32.mxu0 0.0
      %866 = vmatmul.mubr.f32.gmra.mxu0 %v366
      %v867 = vpop.f32.mrf.mxu0
      %v868 = vadd.f32 0.0, %v867
      %v869 = vpop.f32.mrf.mxu0
      %870 = vmatprep.mubr.f32.mxu0 0.0
      %871 = vmatmul.mubr.f32.gmra.mxu0 %v367
      %v872 = vpop.f32.mrf.mxu0
      %v873 = vadd.f32 0.0, %v872
      %v874 = vpop.f32.mrf.mxu0
      %875 = vmatprep.mubr.f32.mxu0 0.0
      %876 = vmatmul.mubr.f32.gmra.mxu0 %v368
      %v877 = vpop.f32.mrf.mxu0
      %v878 = vadd.f32 0.0, %v877
      %v879 = vpop.f32.mrf.mxu0
      %880 = vmatprep.mubr.f32.mxu0 0.0
      %881 = vmatmul.mubr.f32.gmra.mxu0 %v369
      %v882 = vpop.f32.mrf.mxu0
      %v883 = vadd.f32 0.0, %v882
      %v884 = vpop.f32.mrf.mxu0
      %885 = vdwg.mxu0
      %s886 = scalar_lea.vmem %s316, 256
      %887 = vst.msk [vmem:[%s886] sm:$0xff] %vm611, %v728
      %888 = vst.msk [vmem:[%s886 + $0x8] sm:$0xff] %vm611, %v733
      %889 = vst.msk [vmem:[%s886 + $0x10] sm:$0xff] %vm611, %v738
      %890 = vst.msk [vmem:[%s886 + $0x18] sm:$0xff] %vm611, %v743
      %891 = vst.msk [vmem:[%s886 + $0x20] sm:$0xff] %vm611, %v748
      %892 = vst.msk [vmem:[%s886 + $0x28] sm:$0xff] %vm611, %v753
      %893 = vst.msk [vmem:[%s886 + $0x30] sm:$0xff] %vm611, %v758
      %894 = vst.msk [vmem:[%s886 + $0x38] sm:$0xff] %vm611, %v763
      %895 = vst.msk [vmem:[%s886 + $0x40] sm:$0xff] %vm611, %v768
      %896 = vst.msk [vmem:[%s886 + $0x48] sm:$0xff] %vm611, %v773
      %897 = vst.msk [vmem:[%s886 + $0x50] sm:$0xff] %vm611, %v778
      %898 = vst.msk [vmem:[%s886 + $0x58] sm:$0xff] %vm611, %v783
      %899 = vst.msk [vmem:[%s886 + $0x60] sm:$0xff] %vm611, %v788
      %900 = vst.msk [vmem:[%s886 + $0x68] sm:$0xff] %vm611, %v793
      %901 = vst.msk [vmem:[%s886 + $0x70] sm:$0xff] %vm611, %v798
      %902 = vst.msk [vmem:[%s886 + $0x78] sm:$0xff] %vm611, %v803
      %903 = vst.msk [vmem:[%s886 + $0x80] sm:$0xff] %vm611, %v808
      %904 = vst.msk [vmem:[%s886 + $0x88] sm:$0xff] %vm611, %v813
      %905 = vst.msk [vmem:[%s886 + $0x90] sm:$0xff] %vm611, %v818
      %906 = vst.msk [vmem:[%s886 + $0x98] sm:$0xff] %vm611, %v823
      %907 = vst.msk [vmem:[%s886 + $0xa0] sm:$0xff] %vm611, %v828
      %908 = vst.msk [vmem:[%s886 + $0xa8] sm:$0xff] %vm611, %v833
      %909 = vst.msk [vmem:[%s886 + $0xb0] sm:$0xff] %vm611, %v838
      %910 = vst.msk [vmem:[%s886 + $0xb8] sm:$0xff] %vm611, %v843
      %911 = vst.msk [vmem:[%s886 + $0xc0] sm:$0xff] %vm611, %v848
      %912 = vst.msk [vmem:[%s886 + $0xc8] sm:$0xff] %vm611, %v853
      %913 = vst.msk [vmem:[%s886 + $0xd0] sm:$0xff] %vm611, %v858
      %914 = vst.msk [vmem:[%s886 + $0xd8] sm:$0xff] %vm611, %v863
      %915 = vst.msk [vmem:[%s886 + $0xe0] sm:$0xff] %vm611, %v868
      %916 = vst.msk [vmem:[%s886 + $0xe8] sm:$0xff] %vm611, %v873
      %917 = vst.msk [vmem:[%s886 + $0xf0] sm:$0xff] %vm611, %v878
      %918 = vst.msk [vmem:[%s886 + $0xf8] sm:$0xff] %vm611, %v883
      %s919 = scalar_lea.vmem %s1, 256
      %v920 = vld [vmem:[%s919] sm:$0xff]
      %v921 = vld [vmem:[%s919 + $0x8] sm:$0xff]
      %v922 = vld [vmem:[%s919 + $0x10] sm:$0xff]
      %v923 = vld [vmem:[%s919 + $0x18] sm:$0xff]
      %v924 = vld [vmem:[%s919 + $0x20] sm:$0xff]
      %v925 = vld [vmem:[%s919 + $0x28] sm:$0xff]
      %v926 = vld [vmem:[%s919 + $0x30] sm:$0xff]
      %v927 = vld [vmem:[%s919 + $0x38] sm:$0xff]
      %v928 = vld [vmem:[%s919 + $0x40] sm:$0xff]
      %v929 = vld [vmem:[%s919 + $0x48] sm:$0xff]
      %v930 = vld [vmem:[%s919 + $0x50] sm:$0xff]
      %v931 = vld [vmem:[%s919 + $0x58] sm:$0xff]
      %v932 = vld [vmem:[%s919 + $0x60] sm:$0xff]
      %v933 = vld [vmem:[%s919 + $0x68] sm:$0xff]
      %v934 = vld [vmem:[%s919 + $0x70] sm:$0xff]
      %v935 = vld [vmem:[%s919 + $0x78] sm:$0xff]
      %936 = vmatprep.subr.mxu0 0.0
      %937 = vmatpush1.msra.mxu0 %v935
      %938 = vmatprep.subr.mxu0 0.0
      %939 = vmatpush1.msra.mxu0 %v934
      %940 = vmatprep.subr.mxu0 0.0
      %941 = vmatpush1.msra.mxu0 %v933
      %942 = vmatprep.subr.mxu0 0.0
      %943 = vmatpush1.msra.mxu0 %v932
      %944 = vmatprep.subr.mxu0 0.0
      %945 = vmatpush1.msra.mxu0 %v931
      %946 = vmatprep.subr.mxu0 0.0
      %947 = vmatpush1.msra.mxu0 %v930
      %948 = vmatprep.subr.mxu0 0.0
      %949 = vmatpush1.msra.mxu0 %v929
      %950 = vmatprep.subr.mxu0 0.0
      %951 = vmatpush1.msra.mxu0 %v928
      %952 = vmatprep.subr.mxu0 0.0
      %953 = vmatpush1.msra.mxu0 %v927
      %954 = vmatprep.subr.mxu0 0.0
      %955 = vmatpush1.msra.mxu0 %v926
      %956 = vmatprep.subr.mxu0 0.0
      %957 = vmatpush1.msra.mxu0 %v925
      %958 = vmatprep.subr.mxu0 0.0
      %959 = vmatpush1.msra.mxu0 %v924
      %960 = vmatprep.subr.mxu0 0.0
      %961 = vmatpush1.msra.mxu0 %v923
      %962 = vmatprep.subr.mxu0 0.0
      %963 = vmatpush1.msra.mxu0 %v922
      %964 = vmatprep.subr.mxu0 0.0
      %965 = vmatpush1.msra.mxu0 %v921
      %966 = vmatprep.subr.mxu0 0.0
      %967 = vmatpush1.msra.mxu0 %v920
      %968 = vmatprep.subr.mxu0 0.0
      %969 = vmatpush2.msra.mxu0 0.0
      %970 = vmatprep.subr.mxu0 0.0
      %971 = vmatpush2.msra.mxu0 0.0
      %972 = vmatprep.subr.mxu0 0.0
      %973 = vmatpush2.msra.mxu0 0.0
      %974 = vmatprep.subr.mxu0 0.0
      %975 = vmatpush2.msra.mxu0 0.0
      %976 = vmatprep.subr.mxu0 0.0
      %977 = vmatpush2.msra.mxu0 0.0
      %978 = vmatprep.subr.mxu0 0.0
      %979 = vmatpush2.msra.mxu0 0.0
      %980 = vmatprep.subr.mxu0 0.0
      %981 = vmatpush2.msra.mxu0 0.0
      %982 = vmatprep.subr.mxu0 0.0
      %983 = vmatpush2.msra.mxu0 0.0
      %984 = vmatprep.subr.mxu0 0.0
      %985 = vmatpush2.msra.mxu0 0.0
      %986 = vmatprep.subr.mxu0 0.0
      %987 = vmatpush2.msra.mxu0 0.0
      %988 = vmatprep.subr.mxu0 0.0
      %989 = vmatpush2.msra.mxu0 0.0
      %990 = vmatprep.subr.mxu0 0.0
      %991 = vmatpush2.msra.mxu0 0.0
      %992 = vmatprep.subr.mxu0 0.0
      %993 = vmatpush2.msra.mxu0 0.0
      %994 = vmatprep.subr.mxu0 0.0
      %995 = vmatpush2.msra.mxu0 0.0
      %996 = vmatprep.subr.mxu0 0.0
      %997 = vmatpush2.msra.mxu0 0.0
      %998 = vmatprep.subr.mxu0 0.0
      %999 = vmatpush2.msra.mxu0 0.0
      %1000 = vmatprep.mubr.f32.mxu0 0.0
      %1001 = vmatmul.mubr.f32.gmra.mxu0 %v338
      %v1002 = vpop.f32.mrf.mxu0
      %v1003 = vadd.f32 0.0, %v1002
      %v1004 = vpop.f32.mrf.mxu0
      %1005 = vmatprep.mubr.f32.mxu0 0.0
      %1006 = vmatmul.mubr.f32.gmra.mxu0 %v339
      %v1007 = vpop.f32.mrf.mxu0
      %v1008 = vadd.f32 0.0, %v1007
      %v1009 = vpop.f32.mrf.mxu0
      %1010 = vmatprep.mubr.f32.mxu0 0.0
      %1011 = vmatmul.mubr.f32.gmra.mxu0 %v340
      %v1012 = vpop.f32.mrf.mxu0
      %v1013 = vadd.f32 0.0, %v1012
      %v1014 = vpop.f32.mrf.mxu0
      %1015 = vmatprep.mubr.f32.mxu0 0.0
      %1016 = vmatmul.mubr.f32.gmra.mxu0 %v341
      %v1017 = vpop.f32.mrf.mxu0
      %v1018 = vadd.f32 0.0, %v1017
      %v1019 = vpop.f32.mrf.mxu0
      %1020 = vmatprep.mubr.f32.mxu0 0.0
      %1021 = vmatmul.mubr.f32.gmra.mxu0 %v342
      %v1022 = vpop.f32.mrf.mxu0
      %v1023 = vadd.f32 0.0, %v1022
      %v1024 = vpop.f32.mrf.mxu0
      %1025 = vmatprep.mubr.f32.mxu0 0.0
      %1026 = vmatmul.mubr.f32.gmra.mxu0 %v343
      %v1027 = vpop.f32.mrf.mxu0
      %v1028 = vadd.f32 0.0, %v1027
      %v1029 = vpop.f32.mrf.mxu0
      %1030 = vmatprep.mubr.f32.mxu0 0.0
      %1031 = vmatmul.mubr.f32.gmra.mxu0 %v344
      %v1032 = vpop.f32.mrf.mxu0
      %v1033 = vadd.f32 0.0, %v1032
      %v1034 = vpop.f32.mrf.mxu0
      %1035 = vmatprep.mubr.f32.mxu0 0.0
      %1036 = vmatmul.mubr.f32.gmra.mxu0 %v345
      %v1037 = vpop.f32.mrf.mxu0
      %v1038 = vadd.f32 0.0, %v1037
      %v1039 = vpop.f32.mrf.mxu0
      %1040 = vmatprep.mubr.f32.mxu0 0.0
      %1041 = vmatmul.mubr.f32.gmra.mxu0 %v346
      %v1042 = vpop.f32.mrf.mxu0
      %v1043 = vadd.f32 0.0, %v1042
      %v1044 = vpop.f32.mrf.mxu0
      %1045 = vmatprep.mubr.f32.mxu0 0.0
      %1046 = vmatmul.mubr.f32.gmra.mxu0 %v347
      %v1047 = vpop.f32.mrf.mxu0
      %v1048 = vadd.f32 0.0, %v1047
      %v1049 = vpop.f32.mrf.mxu0
      %1050 = vmatprep.mubr.f32.mxu0 0.0
      %1051 = vmatmul.mubr.f32.gmra.mxu0 %v348
      %v1052 = vpop.f32.mrf.mxu0
      %v1053 = vadd.f32 0.0, %v1052
      %v1054 = vpop.f32.mrf.mxu0
      %1055 = vmatprep.mubr.f32.mxu0 0.0
      %1056 = vmatmul.mubr.f32.gmra.mxu0 %v349
      %v1057 = vpop.f32.mrf.mxu0
      %v1058 = vadd.f32 0.0, %v1057
      %v1059 = vpop.f32.mrf.mxu0
      %1060 = vmatprep.mubr.f32.mxu0 0.0
      %1061 = vmatmul.mubr.f32.gmra.mxu0 %v350
      %v1062 = vpop.f32.mrf.mxu0
      %v1063 = vadd.f32 0.0, %v1062
      %v1064 = vpop.f32.mrf.mxu0
      %1065 = vmatprep.mubr.f32.mxu0 0.0
      %1066 = vmatmul.mubr.f32.gmra.mxu0 %v351
      %v1067 = vpop.f32.mrf.mxu0
      %v1068 = vadd.f32 0.0, %v1067
      %v1069 = vpop.f32.mrf.mxu0
      %1070 = vmatprep.mubr.f32.mxu0 0.0
      %1071 = vmatmul.mubr.f32.gmra.mxu0 %v352
      %v1072 = vpop.f32.mrf.mxu0
      %v1073 = vadd.f32 0.0, %v1072
      %v1074 = vpop.f32.mrf.mxu0
      %1075 = vmatprep.mubr.f32.mxu0 0.0
      %1076 = vmatmul.mubr.f32.gmra.mxu0 %v353
      %v1077 = vpop.f32.mrf.mxu0
      %v1078 = vadd.f32 0.0, %v1077
      %v1079 = vpop.f32.mrf.mxu0
      %1080 = vmatprep.mubr.f32.mxu0 0.0
      %1081 = vmatmul.mubr.f32.gmra.mxu0 %v354
      %v1082 = vpop.f32.mrf.mxu0
      %v1083 = vadd.f32 0.0, %v1082
      %v1084 = vpop.f32.mrf.mxu0
      %1085 = vmatprep.mubr.f32.mxu0 0.0
      %1086 = vmatmul.mubr.f32.gmra.mxu0 %v355
      %v1087 = vpop.f32.mrf.mxu0
      %v1088 = vadd.f32 0.0, %v1087
      %v1089 = vpop.f32.mrf.mxu0
      %1090 = vmatprep.mubr.f32.mxu0 0.0
      %1091 = vmatmul.mubr.f32.gmra.mxu0 %v356
      %v1092 = vpop.f32.mrf.mxu0
      %v1093 = vadd.f32 0.0, %v1092
      %v1094 = vpop.f32.mrf.mxu0
      %1095 = vmatprep.mubr.f32.mxu0 0.0
      %1096 = vmatmul.mubr.f32.gmra.mxu0 %v357
      %v1097 = vpop.f32.mrf.mxu0
      %v1098 = vadd.f32 0.0, %v1097
      %v1099 = vpop.f32.mrf.mxu0
      %1100 = vmatprep.mubr.f32.mxu0 0.0
      %1101 = vmatmul.mubr.f32.gmra.mxu0 %v358
      %v1102 = vpop.f32.mrf.mxu0
      %v1103 = vadd.f32 0.0, %v1102
      %v1104 = vpop.f32.mrf.mxu0
      %1105 = vmatprep.mubr.f32.mxu0 0.0
      %1106 = vmatmul.mubr.f32.gmra.mxu0 %v359
      %v1107 = vpop.f32.mrf.mxu0
      %v1108 = vadd.f32 0.0, %v1107
      %v1109 = vpop.f32.mrf.mxu0
      %1110 = vmatprep.mubr.f32.mxu0 0.0
      %1111 = vmatmul.mubr.f32.gmra.mxu0 %v360
      %v1112 = vpop.f32.mrf.mxu0
      %v1113 = vadd.f32 0.0, %v1112
      %v1114 = vpop.f32.mrf.mxu0
      %1115 = vmatprep.mubr.f32.mxu0 0.0
      %1116 = vmatmul.mubr.f32.gmra.mxu0 %v361
      %v1117 = vpop.f32.mrf.mxu0
      %v1118 = vadd.f32 0.0, %v1117
      %v1119 = vpop.f32.mrf.mxu0
      %1120 = vmatprep.mubr.f32.mxu0 0.0
      %1121 = vmatmul.mubr.f32.gmra.mxu0 %v362
      %v1122 = vpop.f32.mrf.mxu0
      %v1123 = vadd.f32 0.0, %v1122
      %v1124 = vpop.f32.mrf.mxu0
      %1125 = vmatprep.mubr.f32.mxu0 0.0
      %1126 = vmatmul.mubr.f32.gmra.mxu0 %v363
      %v1127 = vpop.f32.mrf.mxu0
      %v1128 = vadd.f32 0.0, %v1127
      %v1129 = vpop.f32.mrf.mxu0
      %1130 = vmatprep.mubr.f32.mxu0 0.0
      %1131 = vmatmul.mubr.f32.gmra.mxu0 %v364
      %v1132 = vpop.f32.mrf.mxu0
      %v1133 = vadd.f32 0.0, %v1132
      %v1134 = vpop.f32.mrf.mxu0
      %1135 = vmatprep.mubr.f32.mxu0 0.0
      %1136 = vmatmul.mubr.f32.gmra.mxu0 %v365
      %v1137 = vpop.f32.mrf.mxu0
      %v1138 = vadd.f32 0.0, %v1137
      %v1139 = vpop.f32.mrf.mxu0
      %1140 = vmatprep.mubr.f32.mxu0 0.0
      %1141 = vmatmul.mubr.f32.gmra.mxu0 %v366
      %v1142 = vpop.f32.mrf.mxu0
      %v1143 = vadd.f32 0.0, %v1142
      %v1144 = vpop.f32.mrf.mxu0
      %1145 = vmatprep.mubr.f32.mxu0 0.0
      %1146 = vmatmul.mubr.f32.gmra.mxu0 %v367
      %v1147 = vpop.f32.mrf.mxu0
      %v1148 = vadd.f32 0.0, %v1147
      %v1149 = vpop.f32.mrf.mxu0
      %1150 = vmatprep.mubr.f32.mxu0 0.0
      %1151 = vmatmul.mubr.f32.gmra.mxu0 %v368
      %v1152 = vpop.f32.mrf.mxu0
      %v1153 = vadd.f32 0.0, %v1152
      %v1154 = vpop.f32.mrf.mxu0
      %1155 = vmatprep.mubr.f32.mxu0 0.0
      %1156 = vmatmul.mubr.f32.gmra.mxu0 %v369
      %v1157 = vpop.f32.mrf.mxu0
      %v1158 = vadd.f32 0.0, %v1157
      %v1159 = vpop.f32.mrf.mxu0
      %1160 = vdwg.mxu0
      %s1161 = scalar_lea.vmem %s316, 512
      %1162 = vst.msk [vmem:[%s1161] sm:$0xff] %vm611, %v1003
      %1163 = vst.msk [vmem:[%s1161 + $0x8] sm:$0xff] %vm611, %v1008
      %1164 = vst.msk [vmem:[%s1161 + $0x10] sm:$0xff] %vm611, %v1013
      %1165 = vst.msk [vmem:[%s1161 + $0x18] sm:$0xff] %vm611, %v1018
      %1166 = vst.msk [vmem:[%s1161 + $0x20] sm:$0xff] %vm611, %v1023
      %1167 = vst.msk [vmem:[%s1161 + $0x28] sm:$0xff] %vm611, %v1028
      %1168 = vst.msk [vmem:[%s1161 + $0x30] sm:$0xff] %vm611, %v1033
      %1169 = vst.msk [vmem:[%s1161 + $0x38] sm:$0xff] %vm611, %v1038
      %1170 = vst.msk [vmem:[%s1161 + $0x40] sm:$0xff] %vm611, %v1043
      %1171 = vst.msk [vmem:[%s1161 + $0x48] sm:$0xff] %vm611, %v1048
      %1172 = vst.msk [vmem:[%s1161 + $0x50] sm:$0xff] %vm611, %v1053
      %1173 = vst.msk [vmem:[%s1161 + $0x58] sm:$0xff] %vm611, %v1058
      %1174 = vst.msk [vmem:[%s1161 + $0x60] sm:$0xff] %vm611, %v1063
      %1175 = vst.msk [vmem:[%s1161 + $0x68] sm:$0xff] %vm611, %v1068
      %1176 = vst.msk [vmem:[%s1161 + $0x70] sm:$0xff] %vm611, %v1073
      %1177 = vst.msk [vmem:[%s1161 + $0x78] sm:$0xff] %vm611, %v1078
      %1178 = vst.msk [vmem:[%s1161 + $0x80] sm:$0xff] %vm611, %v1083
      %1179 = vst.msk [vmem:[%s1161 + $0x88] sm:$0xff] %vm611, %v1088
      %1180 = vst.msk [vmem:[%s1161 + $0x90] sm:$0xff] %vm611, %v1093
      %1181 = vst.msk [vmem:[%s1161 + $0x98] sm:$0xff] %vm611, %v1098
      %1182 = vst.msk [vmem:[%s1161 + $0xa0] sm:$0xff] %vm611, %v1103
      %1183 = vst.msk [vmem:[%s1161 + $0xa8] sm:$0xff] %vm611, %v1108
      %1184 = vst.msk [vmem:[%s1161 + $0xb0] sm:$0xff] %vm611, %v1113
      %1185 = vst.msk [vmem:[%s1161 + $0xb8] sm:$0xff] %vm611, %v1118
      %1186 = vst.msk [vmem:[%s1161 + $0xc0] sm:$0xff] %vm611, %v1123
      %1187 = vst.msk [vmem:[%s1161 + $0xc8] sm:$0xff] %vm611, %v1128
      %1188 = vst.msk [vmem:[%s1161 + $0xd0] sm:$0xff] %vm611, %v1133
      %1189 = vst.msk [vmem:[%s1161 + $0xd8] sm:$0xff] %vm611, %v1138
      %1190 = vst.msk [vmem:[%s1161 + $0xe0] sm:$0xff] %vm611, %v1143
      %1191 = vst.msk [vmem:[%s1161 + $0xe8] sm:$0xff] %vm611, %v1148
      %1192 = vst.msk [vmem:[%s1161 + $0xf0] sm:$0xff] %vm611, %v1153
      %1193 = vst.msk [vmem:[%s1161 + $0xf8] sm:$0xff] %vm611, %v1158
      %s1194 = scalar_lea.vmem %s1, 384
      %v1195 = vld [vmem:[%s1194] sm:$0xff]
      %v1196 = vld [vmem:[%s1194 + $0x8] sm:$0xff]
      %v1197 = vld [vmem:[%s1194 + $0x10] sm:$0xff]
      %v1198 = vld [vmem:[%s1194 + $0x18] sm:$0xff]
      %v1199 = vld [vmem:[%s1194 + $0x20] sm:$0xff]
      %v1200 = vld [vmem:[%s1194 + $0x28] sm:$0xff]
      %v1201 = vld [vmem:[%s1194 + $0x30] sm:$0xff]
      %v1202 = vld [vmem:[%s1194 + $0x38] sm:$0xff]
      %v1203 = vld [vmem:[%s1194 + $0x40] sm:$0xff]
      %v1204 = vld [vmem:[%s1194 + $0x48] sm:$0xff]
      %v1205 = vld [vmem:[%s1194 + $0x50] sm:$0xff]
      %v1206 = vld [vmem:[%s1194 + $0x58] sm:$0xff]
      %v1207 = vld [vmem:[%s1194 + $0x60] sm:$0xff]
      %v1208 = vld [vmem:[%s1194 + $0x68] sm:$0xff]
      %v1209 = vld [vmem:[%s1194 + $0x70] sm:$0xff]
      %v1210 = vld [vmem:[%s1194 + $0x78] sm:$0xff]
      %1211 = vmatprep.subr.mxu0 0.0
      %1212 = vmatpush1.msra.mxu0 %v1210
      %1213 = vmatprep.subr.mxu0 0.0
      %1214 = vmatpush1.msra.mxu0 %v1209
      %1215 = vmatprep.subr.mxu0 0.0
      %1216 = vmatpush1.msra.mxu0 %v1208
      %1217 = vmatprep.subr.mxu0 0.0
      %1218 = vmatpush1.msra.mxu0 %v1207
      %1219 = vmatprep.subr.mxu0 0.0
      %1220 = vmatpush1.msra.mxu0 %v1206
      %1221 = vmatprep.subr.mxu0 0.0
      %1222 = vmatpush1.msra.mxu0 %v1205
      %1223 = vmatprep.subr.mxu0 0.0
      %1224 = vmatpush1.msra.mxu0 %v1204
      %1225 = vmatprep.subr.mxu0 0.0
      %1226 = vmatpush1.msra.mxu0 %v1203
      %1227 = vmatprep.subr.mxu0 0.0
      %1228 = vmatpush1.msra.mxu0 %v1202
      %1229 = vmatprep.subr.mxu0 0.0
      %1230 = vmatpush1.msra.mxu0 %v1201
      %1231 = vmatprep.subr.mxu0 0.0
      %1232 = vmatpush1.msra.mxu0 %v1200
      %1233 = vmatprep.subr.mxu0 0.0
      %1234 = vmatpush1.msra.mxu0 %v1199
      %1235 = vmatprep.subr.mxu0 0.0
      %1236 = vmatpush1.msra.mxu0 %v1198
      %1237 = vmatprep.subr.mxu0 0.0
      %1238 = vmatpush1.msra.mxu0 %v1197
      %1239 = vmatprep.subr.mxu0 0.0
      %1240 = vmatpush1.msra.mxu0 %v1196
      %1241 = vmatprep.subr.mxu0 0.0
      %1242 = vmatpush1.msra.mxu0 %v1195
      %1243 = vmatprep.subr.mxu0 0.0
      %1244 = vmatpush2.msra.mxu0 0.0
      %1245 = vmatprep.subr.mxu0 0.0
      %1246 = vmatpush2.msra.mxu0 0.0
      %1247 = vmatprep.subr.mxu0 0.0
      %1248 = vmatpush2.msra.mxu0 0.0
      %1249 = vmatprep.subr.mxu0 0.0
      %1250 = vmatpush2.msra.mxu0 0.0
      %1251 = vmatprep.subr.mxu0 0.0
      %1252 = vmatpush2.msra.mxu0 0.0
      %1253 = vmatprep.subr.mxu0 0.0
      %1254 = vmatpush2.msra.mxu0 0.0
      %1255 = vmatprep.subr.mxu0 0.0
      %1256 = vmatpush2.msra.mxu0 0.0
      %1257 = vmatprep.subr.mxu0 0.0
      %1258 = vmatpush2.msra.mxu0 0.0
      %1259 = vmatprep.subr.mxu0 0.0
      %1260 = vmatpush2.msra.mxu0 0.0
      %1261 = vmatprep.subr.mxu0 0.0
      %1262 = vmatpush2.msra.mxu0 0.0
      %1263 = vmatprep.subr.mxu0 0.0
      %1264 = vmatpush2.msra.mxu0 0.0
      %1265 = vmatprep.subr.mxu0 0.0
      %1266 = vmatpush2.msra.mxu0 0.0
      %1267 = vmatprep.subr.mxu0 0.0
      %1268 = vmatpush2.msra.mxu0 0.0
      %1269 = vmatprep.subr.mxu0 0.0
      %1270 = vmatpush2.msra.mxu0 0.0
      %1271 = vmatprep.subr.mxu0 0.0
      %1272 = vmatpush2.msra.mxu0 0.0
      %1273 = vmatprep.subr.mxu0 0.0
      %1274 = vmatpush2.msra.mxu0 0.0
      %1275 = vmatprep.mubr.f32.mxu0 0.0
      %1276 = vmatmul.mubr.f32.gmra.mxu0 %v338
      %v1277 = vpop.f32.mrf.mxu0
      %v1278 = vadd.f32 0.0, %v1277
      %v1279 = vpop.f32.mrf.mxu0
      %1280 = vmatprep.mubr.f32.mxu0 0.0
      %1281 = vmatmul.mubr.f32.gmra.mxu0 %v339
      %v1282 = vpop.f32.mrf.mxu0
      %v1283 = vadd.f32 0.0, %v1282
      %v1284 = vpop.f32.mrf.mxu0
      %1285 = vmatprep.mubr.f32.mxu0 0.0
      %1286 = vmatmul.mubr.f32.gmra.mxu0 %v340
      %v1287 = vpop.f32.mrf.mxu0
      %v1288 = vadd.f32 0.0, %v1287
      %v1289 = vpop.f32.mrf.mxu0
      %1290 = vmatprep.mubr.f32.mxu0 0.0
      %1291 = vmatmul.mubr.f32.gmra.mxu0 %v341
      %v1292 = vpop.f32.mrf.mxu0
      %v1293 = vadd.f32 0.0, %v1292
      %v1294 = vpop.f32.mrf.mxu0
      %1295 = vmatprep.mubr.f32.mxu0 0.0
      %1296 = vmatmul.mubr.f32.gmra.mxu0 %v342
      %v1297 = vpop.f32.mrf.mxu0
      %v1298 = vadd.f32 0.0, %v1297
      %v1299 = vpop.f32.mrf.mxu0
      %1300 = vmatprep.mubr.f32.mxu0 0.0
      %1301 = vmatmul.mubr.f32.gmra.mxu0 %v343
      %v1302 = vpop.f32.mrf.mxu0
      %v1303 = vadd.f32 0.0, %v1302
      %v1304 = vpop.f32.mrf.mxu0
      %1305 = vmatprep.mubr.f32.mxu0 0.0
      %1306 = vmatmul.mubr.f32.gmra.mxu0 %v344
      %v1307 = vpop.f32.mrf.mxu0
      %v1308 = vadd.f32 0.0, %v1307
      %v1309 = vpop.f32.mrf.mxu0
      %1310 = vmatprep.mubr.f32.mxu0 0.0
      %1311 = vmatmul.mubr.f32.gmra.mxu0 %v345
      %v1312 = vpop.f32.mrf.mxu0
      %v1313 = vadd.f32 0.0, %v1312
      %v1314 = vpop.f32.mrf.mxu0
      %1315 = vmatprep.mubr.f32.mxu0 0.0
      %1316 = vmatmul.mubr.f32.gmra.mxu0 %v346
      %v1317 = vpop.f32.mrf.mxu0
      %v1318 = vadd.f32 0.0, %v1317
      %v1319 = vpop.f32.mrf.mxu0
      %1320 = vmatprep.mubr.f32.mxu0 0.0
      %1321 = vmatmul.mubr.f32.gmra.mxu0 %v347
      %v1322 = vpop.f32.mrf.mxu0
      %v1323 = vadd.f32 0.0, %v1322
      %v1324 = vpop.f32.mrf.mxu0
      %1325 = vmatprep.mubr.f32.mxu0 0.0
      %1326 = vmatmul.mubr.f32.gmra.mxu0 %v348
      %v1327 = vpop.f32.mrf.mxu0
      %v1328 = vadd.f32 0.0, %v1327
      %v1329 = vpop.f32.mrf.mxu0
      %1330 = vmatprep.mubr.f32.mxu0 0.0
      %1331 = vmatmul.mubr.f32.gmra.mxu0 %v349
      %v1332 = vpop.f32.mrf.mxu0
      %v1333 = vadd.f32 0.0, %v1332
      %v1334 = vpop.f32.mrf.mxu0
      %1335 = vmatprep.mubr.f32.mxu0 0.0
      %1336 = vmatmul.mubr.f32.gmra.mxu0 %v350
      %v1337 = vpop.f32.mrf.mxu0
      %v1338 = vadd.f32 0.0, %v1337
      %v1339 = vpop.f32.mrf.mxu0
      %1340 = vmatprep.mubr.f32.mxu0 0.0
      %1341 = vmatmul.mubr.f32.gmra.mxu0 %v351
      %v1342 = vpop.f32.mrf.mxu0
      %v1343 = vadd.f32 0.0, %v1342
      %v1344 = vpop.f32.mrf.mxu0
      %1345 = vmatprep.mubr.f32.mxu0 0.0
      %1346 = vmatmul.mubr.f32.gmra.mxu0 %v352
      %v1347 = vpop.f32.mrf.mxu0
      %v1348 = vadd.f32 0.0, %v1347
      %v1349 = vpop.f32.mrf.mxu0
      %1350 = vmatprep.mubr.f32.mxu0 0.0
      %1351 = vmatmul.mubr.f32.gmra.mxu0 %v353
      %v1352 = vpop.f32.mrf.mxu0
      %v1353 = vadd.f32 0.0, %v1352
      %v1354 = vpop.f32.mrf.mxu0
      %1355 = vmatprep.mubr.f32.mxu0 0.0
      %1356 = vmatmul.mubr.f32.gmra.mxu0 %v354
      %v1357 = vpop.f32.mrf.mxu0
      %v1358 = vadd.f32 0.0, %v1357
      %v1359 = vpop.f32.mrf.mxu0
      %1360 = vmatprep.mubr.f32.mxu0 0.0
      %1361 = vmatmul.mubr.f32.gmra.mxu0 %v355
      %v1362 = vpop.f32.mrf.mxu0
      %v1363 = vadd.f32 0.0, %v1362
      %v1364 = vpop.f32.mrf.mxu0
      %1365 = vmatprep.mubr.f32.mxu0 0.0
      %1366 = vmatmul.mubr.f32.gmra.mxu0 %v356
      %v1367 = vpop.f32.mrf.mxu0
      %v1368 = vadd.f32 0.0, %v1367
      %v1369 = vpop.f32.mrf.mxu0
      %1370 = vmatprep.mubr.f32.mxu0 0.0
      %1371 = vmatmul.mubr.f32.gmra.mxu0 %v357
      %v1372 = vpop.f32.mrf.mxu0
      %v1373 = vadd.f32 0.0, %v1372
      %v1374 = vpop.f32.mrf.mxu0
      %1375 = vmatprep.mubr.f32.mxu0 0.0
      %1376 = vmatmul.mubr.f32.gmra.mxu0 %v358
      %v1377 = vpop.f32.mrf.mxu0
      %v1378 = vadd.f32 0.0, %v1377
      %v1379 = vpop.f32.mrf.mxu0
      %1380 = vmatprep.mubr.f32.mxu0 0.0
      %1381 = vmatmul.mubr.f32.gmra.mxu0 %v359
      %v1382 = vpop.f32.mrf.mxu0
      %v1383 = vadd.f32 0.0, %v1382
      %v1384 = vpop.f32.mrf.mxu0
      %1385 = vmatprep.mubr.f32.mxu0 0.0
      %1386 = vmatmul.mubr.f32.gmra.mxu0 %v360
      %v1387 = vpop.f32.mrf.mxu0
      %v1388 = vadd.f32 0.0, %v1387
      %v1389 = vpop.f32.mrf.mxu0
      %1390 = vmatprep.mubr.f32.mxu0 0.0
      %1391 = vmatmul.mubr.f32.gmra.mxu0 %v361
      %v1392 = vpop.f32.mrf.mxu0
      %v1393 = vadd.f32 0.0, %v1392
      %v1394 = vpop.f32.mrf.mxu0
      %1395 = vmatprep.mubr.f32.mxu0 0.0
      %1396 = vmatmul.mubr.f32.gmra.mxu0 %v362
      %v1397 = vpop.f32.mrf.mxu0
      %v1398 = vadd.f32 0.0, %v1397
      %v1399 = vpop.f32.mrf.mxu0
      %1400 = vmatprep.mubr.f32.mxu0 0.0
      %1401 = vmatmul.mubr.f32.gmra.mxu0 %v363
      %v1402 = vpop.f32.mrf.mxu0
      %v1403 = vadd.f32 0.0, %v1402
      %v1404 = vpop.f32.mrf.mxu0
      %1405 = vmatprep.mubr.f32.mxu0 0.0
      %1406 = vmatmul.mubr.f32.gmra.mxu0 %v364
      %v1407 = vpop.f32.mrf.mxu0
      %v1408 = vadd.f32 0.0, %v1407
      %v1409 = vpop.f32.mrf.mxu0
      %1410 = vmatprep.mubr.f32.mxu0 0.0
      %1411 = vmatmul.mubr.f32.gmra.mxu0 %v365
      %v1412 = vpop.f32.mrf.mxu0
      %v1413 = vadd.f32 0.0, %v1412
      %v1414 = vpop.f32.mrf.mxu0
      %1415 = vmatprep.mubr.f32.mxu0 0.0
      %1416 = vmatmul.mubr.f32.gmra.mxu0 %v366
      %v1417 = vpop.f32.mrf.mxu0
      %v1418 = vadd.f32 0.0, %v1417
      %v1419 = vpop.f32.mrf.mxu0
      %1420 = vmatprep.mubr.f32.mxu0 0.0
      %1421 = vmatmul.mubr.f32.gmra.mxu0 %v367
      %v1422 = vpop.f32.mrf.mxu0
      %v1423 = vadd.f32 0.0, %v1422
      %v1424 = vpop.f32.mrf.mxu0
      %1425 = vmatprep.mubr.f32.mxu0 0.0
      %1426 = vmatmul.mubr.f32.gmra.mxu0 %v368
      %v1427 = vpop.f32.mrf.mxu0
      %v1428 = vadd.f32 0.0, %v1427
      %v1429 = vpop.f32.mrf.mxu0
      %1430 = vmatprep.mubr.f32.mxu0 0.0
      %1431 = vmatmul.mubr.f32.gmra.mxu0 %v369
      %v1432 = vpop.f32.mrf.mxu0
      %v1433 = vadd.f32 0.0, %v1432
      %v1434 = vpop.f32.mrf.mxu0
      %1435 = vdwg.mxu0
      %s1436 = scalar_lea.vmem %s316, 768
      %1437 = vst.msk [vmem:[%s1436] sm:$0xff] %vm611, %v1278
      %1438 = vst.msk [vmem:[%s1436 + $0x8] sm:$0xff] %vm611, %v1283
      %1439 = vst.msk [vmem:[%s1436 + $0x10] sm:$0xff] %vm611, %v1288
      %1440 = vst.msk [vmem:[%s1436 + $0x18] sm:$0xff] %vm611, %v1293
      %1441 = vst.msk [vmem:[%s1436 + $0x20] sm:$0xff] %vm611, %v1298
      %1442 = vst.msk [vmem:[%s1436 + $0x28] sm:$0xff] %vm611, %v1303
      %1443 = vst.msk [vmem:[%s1436 + $0x30] sm:$0xff] %vm611, %v1308
      %1444 = vst.msk [vmem:[%s1436 + $0x38] sm:$0xff] %vm611, %v1313
      %1445 = vst.msk [vmem:[%s1436 + $0x40] sm:$0xff] %vm611, %v1318
      %1446 = vst.msk [vmem:[%s1436 + $0x48] sm:$0xff] %vm611, %v1323
      %1447 = vst.msk [vmem:[%s1436 + $0x50] sm:$0xff] %vm611, %v1328
      %1448 = vst.msk [vmem:[%s1436 + $0x58] sm:$0xff] %vm611, %v1333
      %1449 = vst.msk [vmem:[%s1436 + $0x60] sm:$0xff] %vm611, %v1338
      %1450 = vst.msk [vmem:[%s1436 + $0x68] sm:$0xff] %vm611, %v1343
      %1451 = vst.msk [vmem:[%s1436 + $0x70] sm:$0xff] %vm611, %v1348
      %1452 = vst.msk [vmem:[%s1436 + $0x78] sm:$0xff] %vm611, %v1353
      %1453 = vst.msk [vmem:[%s1436 + $0x80] sm:$0xff] %vm611, %v1358
      %1454 = vst.msk [vmem:[%s1436 + $0x88] sm:$0xff] %vm611, %v1363
      %1455 = vst.msk [vmem:[%s1436 + $0x90] sm:$0xff] %vm611, %v1368
      %1456 = vst.msk [vmem:[%s1436 + $0x98] sm:$0xff] %vm611, %v1373
      %1457 = vst.msk [vmem:[%s1436 + $0xa0] sm:$0xff] %vm611, %v1378
      %1458 = vst.msk [vmem:[%s1436 + $0xa8] sm:$0xff] %vm611, %v1383
      %1459 = vst.msk [vmem:[%s1436 + $0xb0] sm:$0xff] %vm611, %v1388
      %1460 = vst.msk [vmem:[%s1436 + $0xb8] sm:$0xff] %vm611, %v1393
      %1461 = vst.msk [vmem:[%s1436 + $0xc0] sm:$0xff] %vm611, %v1398
      %1462 = vst.msk [vmem:[%s1436 + $0xc8] sm:$0xff] %vm611, %v1403
      %1463 = vst.msk [vmem:[%s1436 + $0xd0] sm:$0xff] %vm611, %v1408
      %1464 = vst.msk [vmem:[%s1436 + $0xd8] sm:$0xff] %vm611, %v1413
      %1465 = vst.msk [vmem:[%s1436 + $0xe0] sm:$0xff] %vm611, %v1418
      %1466 = vst.msk [vmem:[%s1436 + $0xe8] sm:$0xff] %vm611, %v1423
      %1467 = vst.msk [vmem:[%s1436 + $0xf0] sm:$0xff] %vm611, %v1428
      %1468 = vst.msk [vmem:[%s1436 + $0xf8] sm:$0xff] %vm611, %v1433
      %v1469 = vld [vmem:[%s2] sm:$0xff]
      %v1470 = vld [vmem:[%s2 + $0x8] sm:$0xff]
      %v1471 = vld [vmem:[%s2 + $0x10] sm:$0xff]
      %v1472 = vld [vmem:[%s2 + $0x18] sm:$0xff]
      %v1473 = vld [vmem:[%s2 + $0x20] sm:$0xff]
      %v1474 = vld [vmem:[%s2 + $0x28] sm:$0xff]
      %v1475 = vld [vmem:[%s2 + $0x30] sm:$0xff]
      %v1476 = vld [vmem:[%s2 + $0x38] sm:$0xff]
      %v1477 = vld [vmem:[%s2 + $0x40] sm:$0xff]
      %v1478 = vld [vmem:[%s2 + $0x48] sm:$0xff]
      %v1479 = vld [vmem:[%s2 + $0x50] sm:$0xff]
      %v1480 = vld [vmem:[%s2 + $0x58] sm:$0xff]
      %v1481 = vld [vmem:[%s2 + $0x60] sm:$0xff]
      %v1482 = vld [vmem:[%s2 + $0x68] sm:$0xff]
      %v1483 = vld [vmem:[%s2 + $0x70] sm:$0xff]
      %v1484 = vld [vmem:[%s2 + $0x78] sm:$0xff]
      %1485 = vmatprep.subr.mxu0 0.0
      %1486 = vmatpush1.msra.mxu0 %v1484
      %1487 = vmatprep.subr.mxu0 0.0
      %1488 = vmatpush1.msra.mxu0 %v1483
      %1489 = vmatprep.subr.mxu0 0.0
      %1490 = vmatpush1.msra.mxu0 %v1482
      %1491 = vmatprep.subr.mxu0 0.0
      %1492 = vmatpush1.msra.mxu0 %v1481
      %1493 = vmatprep.subr.mxu0 0.0
      %1494 = vmatpush1.msra.mxu0 %v1480
      %1495 = vmatprep.subr.mxu0 0.0
      %1496 = vmatpush1.msra.mxu0 %v1479
      %1497 = vmatprep.subr.mxu0 0.0
      %1498 = vmatpush1.msra.mxu0 %v1478
      %1499 = vmatprep.subr.mxu0 0.0
      %1500 = vmatpush1.msra.mxu0 %v1477
      %1501 = vmatprep.subr.mxu0 0.0
      %1502 = vmatpush1.msra.mxu0 %v1476
      %1503 = vmatprep.subr.mxu0 0.0
      %1504 = vmatpush1.msra.mxu0 %v1475
      %1505 = vmatprep.subr.mxu0 0.0
      %1506 = vmatpush1.msra.mxu0 %v1474
      %1507 = vmatprep.subr.mxu0 0.0
      %1508 = vmatpush1.msra.mxu0 %v1473
      %1509 = vmatprep.subr.mxu0 0.0
      %1510 = vmatpush1.msra.mxu0 %v1472
      %1511 = vmatprep.subr.mxu0 0.0
      %1512 = vmatpush1.msra.mxu0 %v1471
      %1513 = vmatprep.subr.mxu0 0.0
      %1514 = vmatpush1.msra.mxu0 %v1470
      %1515 = vmatprep.subr.mxu0 0.0
      %1516 = vmatpush1.msra.mxu0 %v1469
      %1517 = vmatprep.subr.mxu0 0.0
      %1518 = vmatpush2.msra.mxu0 0.0
      %1519 = vmatprep.subr.mxu0 0.0
      %1520 = vmatpush2.msra.mxu0 0.0
      %1521 = vmatprep.subr.mxu0 0.0
      %1522 = vmatpush2.msra.mxu0 0.0
      %1523 = vmatprep.subr.mxu0 0.0
      %1524 = vmatpush2.msra.mxu0 0.0
      %1525 = vmatprep.subr.mxu0 0.0
      %1526 = vmatpush2.msra.mxu0 0.0
      %1527 = vmatprep.subr.mxu0 0.0
      %1528 = vmatpush2.msra.mxu0 0.0
      %1529 = vmatprep.subr.mxu0 0.0
      %1530 = vmatpush2.msra.mxu0 0.0
      %1531 = vmatprep.subr.mxu0 0.0
      %1532 = vmatpush2.msra.mxu0 0.0
      %1533 = vmatprep.subr.mxu0 0.0
      %1534 = vmatpush2.msra.mxu0 0.0
      %1535 = vmatprep.subr.mxu0 0.0
      %1536 = vmatpush2.msra.mxu0 0.0
      %1537 = vmatprep.subr.mxu0 0.0
      %1538 = vmatpush2.msra.mxu0 0.0
      %1539 = vmatprep.subr.mxu0 0.0
      %1540 = vmatpush2.msra.mxu0 0.0
      %1541 = vmatprep.subr.mxu0 0.0
      %1542 = vmatpush2.msra.mxu0 0.0
      %1543 = vmatprep.subr.mxu0 0.0
      %1544 = vmatpush2.msra.mxu0 0.0
      %1545 = vmatprep.subr.mxu0 0.0
      %1546 = vmatpush2.msra.mxu0 0.0
      %1547 = vmatprep.subr.mxu0 0.0
      %1548 = vmatpush2.msra.mxu0 0.0
      %1549 = vmatprep.mubr.f32.mxu0 0.0
      %1550 = vmatmul.mubr.f32.gmra.mxu0 %v338
      %v1551 = vpop.f32.mrf.mxu0
      %v1552 = vadd.f32 0.0, %v1551
      %v1553 = vpop.f32.mrf.mxu0
      %1554 = vmatprep.mubr.f32.mxu0 0.0
      %1555 = vmatmul.mubr.f32.gmra.mxu0 %v339
      %v1556 = vpop.f32.mrf.mxu0
      %v1557 = vadd.f32 0.0, %v1556
      %v1558 = vpop.f32.mrf.mxu0
      %1559 = vmatprep.mubr.f32.mxu0 0.0
      %1560 = vmatmul.mubr.f32.gmra.mxu0 %v340
      %v1561 = vpop.f32.mrf.mxu0
      %v1562 = vadd.f32 0.0, %v1561
      %v1563 = vpop.f32.mrf.mxu0
      %1564 = vmatprep.mubr.f32.mxu0 0.0
      %1565 = vmatmul.mubr.f32.gmra.mxu0 %v341
      %v1566 = vpop.f32.mrf.mxu0
      %v1567 = vadd.f32 0.0, %v1566
      %v1568 = vpop.f32.mrf.mxu0
      %1569 = vmatprep.mubr.f32.mxu0 0.0
      %1570 = vmatmul.mubr.f32.gmra.mxu0 %v342
      %v1571 = vpop.f32.mrf.mxu0
      %v1572 = vadd.f32 0.0, %v1571
      %v1573 = vpop.f32.mrf.mxu0
      %1574 = vmatprep.mubr.f32.mxu0 0.0
      %1575 = vmatmul.mubr.f32.gmra.mxu0 %v343
      %v1576 = vpop.f32.mrf.mxu0
      %v1577 = vadd.f32 0.0, %v1576
      %v1578 = vpop.f32.mrf.mxu0
      %1579 = vmatprep.mubr.f32.mxu0 0.0
      %1580 = vmatmul.mubr.f32.gmra.mxu0 %v344
      %v1581 = vpop.f32.mrf.mxu0
      %v1582 = vadd.f32 0.0, %v1581
      %v1583 = vpop.f32.mrf.mxu0
      %1584 = vmatprep.mubr.f32.mxu0 0.0
      %1585 = vmatmul.mubr.f32.gmra.mxu0 %v345
      %v1586 = vpop.f32.mrf.mxu0
      %v1587 = vadd.f32 0.0, %v1586
      %v1588 = vpop.f32.mrf.mxu0
      %1589 = vmatprep.mubr.f32.mxu0 0.0
      %1590 = vmatmul.mubr.f32.gmra.mxu0 %v346
      %v1591 = vpop.f32.mrf.mxu0
      %v1592 = vadd.f32 0.0, %v1591
      %v1593 = vpop.f32.mrf.mxu0
      %1594 = vmatprep.mubr.f32.mxu0 0.0
      %1595 = vmatmul.mubr.f32.gmra.mxu0 %v347
      %v1596 = vpop.f32.mrf.mxu0
      %v1597 = vadd.f32 0.0, %v1596
      %v1598 = vpop.f32.mrf.mxu0
      %1599 = vmatprep.mubr.f32.mxu0 0.0
      %1600 = vmatmul.mubr.f32.gmra.mxu0 %v348
      %v1601 = vpop.f32.mrf.mxu0
      %v1602 = vadd.f32 0.0, %v1601
      %v1603 = vpop.f32.mrf.mxu0
      %1604 = vmatprep.mubr.f32.mxu0 0.0
      %1605 = vmatmul.mubr.f32.gmra.mxu0 %v349
      %v1606 = vpop.f32.mrf.mxu0
      %v1607 = vadd.f32 0.0, %v1606
      %v1608 = vpop.f32.mrf.mxu0
      %1609 = vmatprep.mubr.f32.mxu0 0.0
      %1610 = vmatmul.mubr.f32.gmra.mxu0 %v350
      %v1611 = vpop.f32.mrf.mxu0
      %v1612 = vadd.f32 0.0, %v1611
      %v1613 = vpop.f32.mrf.mxu0
      %1614 = vmatprep.mubr.f32.mxu0 0.0
      %1615 = vmatmul.mubr.f32.gmra.mxu0 %v351
      %v1616 = vpop.f32.mrf.mxu0
      %v1617 = vadd.f32 0.0, %v1616
      %v1618 = vpop.f32.mrf.mxu0
      %1619 = vmatprep.mubr.f32.mxu0 0.0
      %1620 = vmatmul.mubr.f32.gmra.mxu0 %v352
      %v1621 = vpop.f32.mrf.mxu0
      %v1622 = vadd.f32 0.0, %v1621
      %v1623 = vpop.f32.mrf.mxu0
      %1624 = vmatprep.mubr.f32.mxu0 0.0
      %1625 = vmatmul.mubr.f32.gmra.mxu0 %v353
      %v1626 = vpop.f32.mrf.mxu0
      %v1627 = vadd.f32 0.0, %v1626
      %v1628 = vpop.f32.mrf.mxu0
      %1629 = vmatprep.mubr.f32.mxu0 0.0
      %1630 = vmatmul.mubr.f32.gmra.mxu0 %v354
      %v1631 = vpop.f32.mrf.mxu0
      %v1632 = vadd.f32 0.0, %v1631
      %v1633 = vpop.f32.mrf.mxu0
      %1634 = vmatprep.mubr.f32.mxu0 0.0
      %1635 = vmatmul.mubr.f32.gmra.mxu0 %v355
      %v1636 = vpop.f32.mrf.mxu0
      %v1637 = vadd.f32 0.0, %v1636
      %v1638 = vpop.f32.mrf.mxu0
      %1639 = vmatprep.mubr.f32.mxu0 0.0
      %1640 = vmatmul.mubr.f32.gmra.mxu0 %v356
      %v1641 = vpop.f32.mrf.mxu0
      %v1642 = vadd.f32 0.0, %v1641
      %v1643 = vpop.f32.mrf.mxu0
      %1644 = vmatprep.mubr.f32.mxu0 0.0
      %1645 = vmatmul.mubr.f32.gmra.mxu0 %v357
      %v1646 = vpop.f32.mrf.mxu0
      %v1647 = vadd.f32 0.0, %v1646
      %v1648 = vpop.f32.mrf.mxu0
      %1649 = vmatprep.mubr.f32.mxu0 0.0
      %1650 = vmatmul.mubr.f32.gmra.mxu0 %v358
      %v1651 = vpop.f32.mrf.mxu0
      %v1652 = vadd.f32 0.0, %v1651
      %v1653 = vpop.f32.mrf.mxu0
      %1654 = vmatprep.mubr.f32.mxu0 0.0
      %1655 = vmatmul.mubr.f32.gmra.mxu0 %v359
      %v1656 = vpop.f32.mrf.mxu0
      %v1657 = vadd.f32 0.0, %v1656
      %v1658 = vpop.f32.mrf.mxu0
      %1659 = vmatprep.mubr.f32.mxu0 0.0
      %1660 = vmatmul.mubr.f32.gmra.mxu0 %v360
      %v1661 = vpop.f32.mrf.mxu0
      %v1662 = vadd.f32 0.0, %v1661
      %v1663 = vpop.f32.mrf.mxu0
      %1664 = vmatprep.mubr.f32.mxu0 0.0
      %1665 = vmatmul.mubr.f32.gmra.mxu0 %v361
      %v1666 = vpop.f32.mrf.mxu0
      %v1667 = vadd.f32 0.0, %v1666
      %v1668 = vpop.f32.mrf.mxu0
      %1669 = vmatprep.mubr.f32.mxu0 0.0
      %1670 = vmatmul.mubr.f32.gmra.mxu0 %v362
      %v1671 = vpop.f32.mrf.mxu0
      %v1672 = vadd.f32 0.0, %v1671
      %v1673 = vpop.f32.mrf.mxu0
      %1674 = vmatprep.mubr.f32.mxu0 0.0
      %1675 = vmatmul.mubr.f32.gmra.mxu0 %v363
      %v1676 = vpop.f32.mrf.mxu0
      %v1677 = vadd.f32 0.0, %v1676
      %v1678 = vpop.f32.mrf.mxu0
      %1679 = vmatprep.mubr.f32.mxu0 0.0
      %1680 = vmatmul.mubr.f32.gmra.mxu0 %v364
      %v1681 = vpop.f32.mrf.mxu0
      %v1682 = vadd.f32 0.0, %v1681
      %v1683 = vpop.f32.mrf.mxu0
      %1684 = vmatprep.mubr.f32.mxu0 0.0
      %1685 = vmatmul.mubr.f32.gmra.mxu0 %v365
      %v1686 = vpop.f32.mrf.mxu0
      %v1687 = vadd.f32 0.0, %v1686
      %v1688 = vpop.f32.mrf.mxu0
      %1689 = vmatprep.mubr.f32.mxu0 0.0
      %1690 = vmatmul.mubr.f32.gmra.mxu0 %v366
      %v1691 = vpop.f32.mrf.mxu0
      %v1692 = vadd.f32 0.0, %v1691
      %v1693 = vpop.f32.mrf.mxu0
      %1694 = vmatprep.mubr.f32.mxu0 0.0
      %1695 = vmatmul.mubr.f32.gmra.mxu0 %v367
      %v1696 = vpop.f32.mrf.mxu0
      %v1697 = vadd.f32 0.0, %v1696
      %v1698 = vpop.f32.mrf.mxu0
      %1699 = vmatprep.mubr.f32.mxu0 0.0
      %1700 = vmatmul.mubr.f32.gmra.mxu0 %v368
      %v1701 = vpop.f32.mrf.mxu0
      %v1702 = vadd.f32 0.0, %v1701
      %v1703 = vpop.f32.mrf.mxu0
      %1704 = vmatprep.mubr.f32.mxu0 0.0
      %1705 = vmatmul.mubr.f32.gmra.mxu0 %v369
      %v1706 = vpop.f32.mrf.mxu0
      %v1707 = vadd.f32 0.0, %v1706
      %v1708 = vpop.f32.mrf.mxu0
      %1709 = vdwg.mxu0
      %1710 = vst.msk [vmem:[%s326] sm:$0xff] %vm611, %v1552
      %1711 = vst.msk [vmem:[%s326 + $0x8] sm:$0xff] %vm611, %v1557
      %1712 = vst.msk [vmem:[%s326 + $0x10] sm:$0xff] %vm611, %v1562
      %1713 = vst.msk [vmem:[%s326 + $0x18] sm:$0xff] %vm611, %v1567
      %1714 = vst.msk [vmem:[%s326 + $0x20] sm:$0xff] %vm611, %v1572
      %1715 = vst.msk [vmem:[%s326 + $0x28] sm:$0xff] %vm611, %v1577
      %1716 = vst.msk [vmem:[%s326 + $0x30] sm:$0xff] %vm611, %v1582
      %1717 = vst.msk [vmem:[%s326 + $0x38] sm:$0xff] %vm611, %v1587
      %1718 = vst.msk [vmem:[%s326 + $0x40] sm:$0xff] %vm611, %v1592
      %1719 = vst.msk [vmem:[%s326 + $0x48] sm:$0xff] %vm611, %v1597
      %1720 = vst.msk [vmem:[%s326 + $0x50] sm:$0xff] %vm611, %v1602
      %1721 = vst.msk [vmem:[%s326 + $0x58] sm:$0xff] %vm611, %v1607
      %1722 = vst.msk [vmem:[%s326 + $0x60] sm:$0xff] %vm611, %v1612
      %1723 = vst.msk [vmem:[%s326 + $0x68] sm:$0xff] %vm611, %v1617
      %1724 = vst.msk [vmem:[%s326 + $0x70] sm:$0xff] %vm611, %v1622
      %1725 = vst.msk [vmem:[%s326 + $0x78] sm:$0xff] %vm611, %v1627
      %1726 = vst.msk [vmem:[%s326 + $0x80] sm:$0xff] %vm611, %v1632
      %1727 = vst.msk [vmem:[%s326 + $0x88] sm:$0xff] %vm611, %v1637
      %1728 = vst.msk [vmem:[%s326 + $0x90] sm:$0xff] %vm611, %v1642
      %1729 = vst.msk [vmem:[%s326 + $0x98] sm:$0xff] %vm611, %v1647
      %1730 = vst.msk [vmem:[%s326 + $0xa0] sm:$0xff] %vm611, %v1652
      %1731 = vst.msk [vmem:[%s326 + $0xa8] sm:$0xff] %vm611, %v1657
      %1732 = vst.msk [vmem:[%s326 + $0xb0] sm:$0xff] %vm611, %v1662
      %1733 = vst.msk [vmem:[%s326 + $0xb8] sm:$0xff] %vm611, %v1667
      %1734 = vst.msk [vmem:[%s326 + $0xc0] sm:$0xff] %vm611, %v1672
      %1735 = vst.msk [vmem:[%s326 + $0xc8] sm:$0xff] %vm611, %v1677
      %1736 = vst.msk [vmem:[%s326 + $0xd0] sm:$0xff] %vm611, %v1682
      %1737 = vst.msk [vmem:[%s326 + $0xd8] sm:$0xff] %vm611, %v1687
      %1738 = vst.msk [vmem:[%s326 + $0xe0] sm:$0xff] %vm611, %v1692
      %1739 = vst.msk [vmem:[%s326 + $0xe8] sm:$0xff] %vm611, %v1697
      %1740 = vst.msk [vmem:[%s326 + $0xf0] sm:$0xff] %vm611, %v1702
      %1741 = vst.msk [vmem:[%s326 + $0xf8] sm:$0xff] %vm611, %v1707
      %s1742 = scalar_lea.vmem %s2, 128
      %v1743 = vld [vmem:[%s1742] sm:$0xff]
      %v1744 = vld [vmem:[%s1742 + $0x8] sm:$0xff]
      %v1745 = vld [vmem:[%s1742 + $0x10] sm:$0xff]
      %v1746 = vld [vmem:[%s1742 + $0x18] sm:$0xff]
      %v1747 = vld [vmem:[%s1742 + $0x20] sm:$0xff]
      %v1748 = vld [vmem:[%s1742 + $0x28] sm:$0xff]
      %v1749 = vld [vmem:[%s1742 + $0x30] sm:$0xff]
      %v1750 = vld [vmem:[%s1742 + $0x38] sm:$0xff]
      %v1751 = vld [vmem:[%s1742 + $0x40] sm:$0xff]
      %v1752 = vld [vmem:[%s1742 + $0x48] sm:$0xff]
      %v1753 = vld [vmem:[%s1742 + $0x50] sm:$0xff]
      %v1754 = vld [vmem:[%s1742 + $0x58] sm:$0xff]
      %v1755 = vld [vmem:[%s1742 + $0x60] sm:$0xff]
      %v1756 = vld [vmem:[%s1742 + $0x68] sm:$0xff]
      %v1757 = vld [vmem:[%s1742 + $0x70] sm:$0xff]
      %v1758 = vld [vmem:[%s1742 + $0x78] sm:$0xff]
      %1759 = vmatprep.subr.mxu0 0.0
      %1760 = vmatpush1.msra.mxu0 %v1758
      %1761 = vmatprep.subr.mxu0 0.0
      %1762 = vmatpush1.msra.mxu0 %v1757
      %1763 = vmatprep.subr.mxu0 0.0
      %1764 = vmatpush1.msra.mxu0 %v1756
      %1765 = vmatprep.subr.mxu0 0.0
      %1766 = vmatpush1.msra.mxu0 %v1755
      %1767 = vmatprep.subr.mxu0 0.0
      %1768 = vmatpush1.msra.mxu0 %v1754
      %1769 = vmatprep.subr.mxu0 0.0
      %1770 = vmatpush1.msra.mxu0 %v1753
      %1771 = vmatprep.subr.mxu0 0.0
      %1772 = vmatpush1.msra.mxu0 %v1752
      %1773 = vmatprep.subr.mxu0 0.0
      %1774 = vmatpush1.msra.mxu0 %v1751
      %1775 = vmatprep.subr.mxu0 0.0
      %1776 = vmatpush1.msra.mxu0 %v1750
      %1777 = vmatprep.subr.mxu0 0.0
      %1778 = vmatpush1.msra.mxu0 %v1749
      %1779 = vmatprep.subr.mxu0 0.0
      %1780 = vmatpush1.msra.mxu0 %v1748
      %1781 = vmatprep.subr.mxu0 0.0
      %1782 = vmatpush1.msra.mxu0 %v1747
      %1783 = vmatprep.subr.mxu0 0.0
      %1784 = vmatpush1.msra.mxu0 %v1746
      %1785 = vmatprep.subr.mxu0 0.0
      %1786 = vmatpush1.msra.mxu0 %v1745
      %1787 = vmatprep.subr.mxu0 0.0
      %1788 = vmatpush1.msra.mxu0 %v1744
      %1789 = vmatprep.subr.mxu0 0.0
      %1790 = vmatpush1.msra.mxu0 %v1743
      %1791 = vmatprep.subr.mxu0 0.0
      %1792 = vmatpush2.msra.mxu0 0.0
      %1793 = vmatprep.subr.mxu0 0.0
      %1794 = vmatpush2.msra.mxu0 0.0
      %1795 = vmatprep.subr.mxu0 0.0
      %1796 = vmatpush2.msra.mxu0 0.0
      %1797 = vmatprep.subr.mxu0 0.0
      %1798 = vmatpush2.msra.mxu0 0.0
      %1799 = vmatprep.subr.mxu0 0.0
      %1800 = vmatpush2.msra.mxu0 0.0
      %1801 = vmatprep.subr.mxu0 0.0
      %1802 = vmatpush2.msra.mxu0 0.0
      %1803 = vmatprep.subr.mxu0 0.0
      %1804 = vmatpush2.msra.mxu0 0.0
      %1805 = vmatprep.subr.mxu0 0.0
      %1806 = vmatpush2.msra.mxu0 0.0
      %1807 = vmatprep.subr.mxu0 0.0
      %1808 = vmatpush2.msra.mxu0 0.0
      %1809 = vmatprep.subr.mxu0 0.0
      %1810 = vmatpush2.msra.mxu0 0.0
      %1811 = vmatprep.subr.mxu0 0.0
      %1812 = vmatpush2.msra.mxu0 0.0
      %1813 = vmatprep.subr.mxu0 0.0
      %1814 = vmatpush2.msra.mxu0 0.0
      %1815 = vmatprep.subr.mxu0 0.0
      %1816 = vmatpush2.msra.mxu0 0.0
      %1817 = vmatprep.subr.mxu0 0.0
      %1818 = vmatpush2.msra.mxu0 0.0
      %1819 = vmatprep.subr.mxu0 0.0
      %1820 = vmatpush2.msra.mxu0 0.0
      %1821 = vmatprep.subr.mxu0 0.0
      %1822 = vmatpush2.msra.mxu0 0.0
      %1823 = vmatprep.mubr.f32.mxu0 0.0
      %1824 = vmatmul.mubr.f32.gmra.mxu0 %v338
      %v1825 = vpop.f32.mrf.mxu0
      %v1826 = vadd.f32 0.0, %v1825
      %v1827 = vpop.f32.mrf.mxu0
      %1828 = vmatprep.mubr.f32.mxu0 0.0
      %1829 = vmatmul.mubr.f32.gmra.mxu0 %v339
      %v1830 = vpop.f32.mrf.mxu0
      %v1831 = vadd.f32 0.0, %v1830
      %v1832 = vpop.f32.mrf.mxu0
      %1833 = vmatprep.mubr.f32.mxu0 0.0
      %1834 = vmatmul.mubr.f32.gmra.mxu0 %v340
      %v1835 = vpop.f32.mrf.mxu0
      %v1836 = vadd.f32 0.0, %v1835
      %v1837 = vpop.f32.mrf.mxu0
      %1838 = vmatprep.mubr.f32.mxu0 0.0
      %1839 = vmatmul.mubr.f32.gmra.mxu0 %v341
      %v1840 = vpop.f32.mrf.mxu0
      %v1841 = vadd.f32 0.0, %v1840
      %v1842 = vpop.f32.mrf.mxu0
      %1843 = vmatprep.mubr.f32.mxu0 0.0
      %1844 = vmatmul.mubr.f32.gmra.mxu0 %v342
      %v1845 = vpop.f32.mrf.mxu0
      %v1846 = vadd.f32 0.0, %v1845
      %v1847 = vpop.f32.mrf.mxu0
      %1848 = vmatprep.mubr.f32.mxu0 0.0
      %1849 = vmatmul.mubr.f32.gmra.mxu0 %v343
      %v1850 = vpop.f32.mrf.mxu0
      %v1851 = vadd.f32 0.0, %v1850
      %v1852 = vpop.f32.mrf.mxu0
      %1853 = vmatprep.mubr.f32.mxu0 0.0
      %1854 = vmatmul.mubr.f32.gmra.mxu0 %v344
      %v1855 = vpop.f32.mrf.mxu0
      %v1856 = vadd.f32 0.0, %v1855
      %v1857 = vpop.f32.mrf.mxu0
      %1858 = vmatprep.mubr.f32.mxu0 0.0
      %1859 = vmatmul.mubr.f32.gmra.mxu0 %v345
      %v1860 = vpop.f32.mrf.mxu0
      %v1861 = vadd.f32 0.0, %v1860
      %v1862 = vpop.f32.mrf.mxu0
      %1863 = vmatprep.mubr.f32.mxu0 0.0
      %1864 = vmatmul.mubr.f32.gmra.mxu0 %v346
      %v1865 = vpop.f32.mrf.mxu0
      %v1866 = vadd.f32 0.0, %v1865
      %v1867 = vpop.f32.mrf.mxu0
      %1868 = vmatprep.mubr.f32.mxu0 0.0
      %1869 = vmatmul.mubr.f32.gmra.mxu0 %v347
      %v1870 = vpop.f32.mrf.mxu0
      %v1871 = vadd.f32 0.0, %v1870
      %v1872 = vpop.f32.mrf.mxu0
      %1873 = vmatprep.mubr.f32.mxu0 0.0
      %1874 = vmatmul.mubr.f32.gmra.mxu0 %v348
      %v1875 = vpop.f32.mrf.mxu0
      %v1876 = vadd.f32 0.0, %v1875
      %v1877 = vpop.f32.mrf.mxu0
      %1878 = vmatprep.mubr.f32.mxu0 0.0
      %1879 = vmatmul.mubr.f32.gmra.mxu0 %v349
      %v1880 = vpop.f32.mrf.mxu0
      %v1881 = vadd.f32 0.0, %v1880
      %v1882 = vpop.f32.mrf.mxu0
      %1883 = vmatprep.mubr.f32.mxu0 0.0
      %1884 = vmatmul.mubr.f32.gmra.mxu0 %v350
      %v1885 = vpop.f32.mrf.mxu0
      %v1886 = vadd.f32 0.0, %v1885
      %v1887 = vpop.f32.mrf.mxu0
      %1888 = vmatprep.mubr.f32.mxu0 0.0
      %1889 = vmatmul.mubr.f32.gmra.mxu0 %v351
      %v1890 = vpop.f32.mrf.mxu0
      %v1891 = vadd.f32 0.0, %v1890
      %v1892 = vpop.f32.mrf.mxu0
      %1893 = vmatprep.mubr.f32.mxu0 0.0
      %1894 = vmatmul.mubr.f32.gmra.mxu0 %v352
      %v1895 = vpop.f32.mrf.mxu0
      %v1896 = vadd.f32 0.0, %v1895
      %v1897 = vpop.f32.mrf.mxu0
      %1898 = vmatprep.mubr.f32.mxu0 0.0
      %1899 = vmatmul.mubr.f32.gmra.mxu0 %v353
      %v1900 = vpop.f32.mrf.mxu0
      %v1901 = vadd.f32 0.0, %v1900
      %v1902 = vpop.f32.mrf.mxu0
      %1903 = vmatprep.mubr.f32.mxu0 0.0
      %1904 = vmatmul.mubr.f32.gmra.mxu0 %v354
      %v1905 = vpop.f32.mrf.mxu0
      %v1906 = vadd.f32 0.0, %v1905
      %v1907 = vpop.f32.mrf.mxu0
      %1908 = vmatprep.mubr.f32.mxu0 0.0
      %1909 = vmatmul.mubr.f32.gmra.mxu0 %v355
      %v1910 = vpop.f32.mrf.mxu0
      %v1911 = vadd.f32 0.0, %v1910
      %v1912 = vpop.f32.mrf.mxu0
      %1913 = vmatprep.mubr.f32.mxu0 0.0
      %1914 = vmatmul.mubr.f32.gmra.mxu0 %v356
      %v1915 = vpop.f32.mrf.mxu0
      %v1916 = vadd.f32 0.0, %v1915
      %v1917 = vpop.f32.mrf.mxu0
      %1918 = vmatprep.mubr.f32.mxu0 0.0
      %1919 = vmatmul.mubr.f32.gmra.mxu0 %v357
      %v1920 = vpop.f32.mrf.mxu0
      %v1921 = vadd.f32 0.0, %v1920
      %v1922 = vpop.f32.mrf.mxu0
      %1923 = vmatprep.mubr.f32.mxu0 0.0
      %1924 = vmatmul.mubr.f32.gmra.mxu0 %v358
      %v1925 = vpop.f32.mrf.mxu0
      %v1926 = vadd.f32 0.0, %v1925
      %v1927 = vpop.f32.mrf.mxu0
      %1928 = vmatprep.mubr.f32.mxu0 0.0
      %1929 = vmatmul.mubr.f32.gmra.mxu0 %v359
      %v1930 = vpop.f32.mrf.mxu0
      %v1931 = vadd.f32 0.0, %v1930
      %v1932 = vpop.f32.mrf.mxu0
      %1933 = vmatprep.mubr.f32.mxu0 0.0
      %1934 = vmatmul.mubr.f32.gmra.mxu0 %v360
      %v1935 = vpop.f32.mrf.mxu0
      %v1936 = vadd.f32 0.0, %v1935
      %v1937 = vpop.f32.mrf.mxu0
      %1938 = vmatprep.mubr.f32.mxu0 0.0
      %1939 = vmatmul.mubr.f32.gmra.mxu0 %v361
      %v1940 = vpop.f32.mrf.mxu0
      %v1941 = vadd.f32 0.0, %v1940
      %v1942 = vpop.f32.mrf.mxu0
      %1943 = vmatprep.mubr.f32.mxu0 0.0
      %1944 = vmatmul.mubr.f32.gmra.mxu0 %v362
      %v1945 = vpop.f32.mrf.mxu0
      %v1946 = vadd.f32 0.0, %v1945
      %v1947 = vpop.f32.mrf.mxu0
      %1948 = vmatprep.mubr.f32.mxu0 0.0
      %1949 = vmatmul.mubr.f32.gmra.mxu0 %v363
      %v1950 = vpop.f32.mrf.mxu0
      %v1951 = vadd.f32 0.0, %v1950
      %v1952 = vpop.f32.mrf.mxu0
      %1953 = vmatprep.mubr.f32.mxu0 0.0
      %1954 = vmatmul.mubr.f32.gmra.mxu0 %v364
      %v1955 = vpop.f32.mrf.mxu0
      %v1956 = vadd.f32 0.0, %v1955
      %v1957 = vpop.f32.mrf.mxu0
      %1958 = vmatprep.mubr.f32.mxu0 0.0
      %1959 = vmatmul.mubr.f32.gmra.mxu0 %v365
      %v1960 = vpop.f32.mrf.mxu0
      %v1961 = vadd.f32 0.0, %v1960
      %v1962 = vpop.f32.mrf.mxu0
      %1963 = vmatprep.mubr.f32.mxu0 0.0
      %1964 = vmatmul.mubr.f32.gmra.mxu0 %v366
      %v1965 = vpop.f32.mrf.mxu0
      %v1966 = vadd.f32 0.0, %v1965
      %v1967 = vpop.f32.mrf.mxu0
      %1968 = vmatprep.mubr.f32.mxu0 0.0
      %1969 = vmatmul.mubr.f32.gmra.mxu0 %v367
      %v1970 = vpop.f32.mrf.mxu0
      %v1971 = vadd.f32 0.0, %v1970
      %v1972 = vpop.f32.mrf.mxu0
      %1973 = vmatprep.mubr.f32.mxu0 0.0
      %1974 = vmatmul.mubr.f32.gmra.mxu0 %v368
      %v1975 = vpop.f32.mrf.mxu0
      %v1976 = vadd.f32 0.0, %v1975
      %v1977 = vpop.f32.mrf.mxu0
      %1978 = vmatprep.mubr.f32.mxu0 0.0
      %1979 = vmatmul.mubr.f32.gmra.mxu0 %v369
      %v1980 = vpop.f32.mrf.mxu0
      %v1981 = vadd.f32 0.0, %v1980
      %v1982 = vpop.f32.mrf.mxu0
      %1983 = vdwg.mxu0
      %s1984 = scalar_lea.vmem %s326, 256
      %1985 = vst.msk [vmem:[%s1984] sm:$0xff] %vm611, %v1826
      %1986 = vst.msk [vmem:[%s1984 + $0x8] sm:$0xff] %vm611, %v1831
      %1987 = vst.msk [vmem:[%s1984 + $0x10] sm:$0xff] %vm611, %v1836
      %1988 = vst.msk [vmem:[%s1984 + $0x18] sm:$0xff] %vm611, %v1841
      %1989 = vst.msk [vmem:[%s1984 + $0x20] sm:$0xff] %vm611, %v1846
      %1990 = vst.msk [vmem:[%s1984 + $0x28] sm:$0xff] %vm611, %v1851
      %1991 = vst.msk [vmem:[%s1984 + $0x30] sm:$0xff] %vm611, %v1856
      %1992 = vst.msk [vmem:[%s1984 + $0x38] sm:$0xff] %vm611, %v1861
      %1993 = vst.msk [vmem:[%s1984 + $0x40] sm:$0xff] %vm611, %v1866
      %1994 = vst.msk [vmem:[%s1984 + $0x48] sm:$0xff] %vm611, %v1871
      %1995 = vst.msk [vmem:[%s1984 + $0x50] sm:$0xff] %vm611, %v1876
      %1996 = vst.msk [vmem:[%s1984 + $0x58] sm:$0xff] %vm611, %v1881
      %1997 = vst.msk [vmem:[%s1984 + $0x60] sm:$0xff] %vm611, %v1886
      %1998 = vst.msk [vmem:[%s1984 + $0x68] sm:$0xff] %vm611, %v1891
      %1999 = vst.msk [vmem:[%s1984 + $0x70] sm:$0xff] %vm611, %v1896
      %2000 = vst.msk [vmem:[%s1984 + $0x78] sm:$0xff] %vm611, %v1901
      %2001 = vst.msk [vmem:[%s1984 + $0x80] sm:$0xff] %vm611, %v1906
      %2002 = vst.msk [vmem:[%s1984 + $0x88] sm:$0xff] %vm611, %v1911
      %2003 = vst.msk [vmem:[%s1984 + $0x90] sm:$0xff] %vm611, %v1916
      %2004 = vst.msk [vmem:[%s1984 + $0x98] sm:$0xff] %vm611, %v1921
      %2005 = vst.msk [vmem:[%s1984 + $0xa0] sm:$0xff] %vm611, %v1926
      %2006 = vst.msk [vmem:[%s1984 + $0xa8] sm:$0xff] %vm611, %v1931
      %2007 = vst.msk [vmem:[%s1984 + $0xb0] sm:$0xff] %vm611, %v1936
      %2008 = vst.msk [vmem:[%s1984 + $0xb8] sm:$0xff] %vm611, %v1941
      %2009 = vst.msk [vmem:[%s1984 + $0xc0] sm:$0xff] %vm611, %v1946
      %2010 = vst.msk [vmem:[%s1984 + $0xc8] sm:$0xff] %vm611, %v1951
      %2011 = vst.msk [vmem:[%s1984 + $0xd0] sm:$0xff] %vm611, %v1956
      %2012 = vst.msk [vmem:[%s1984 + $0xd8] sm:$0xff] %vm611, %v1961
      %2013 = vst.msk [vmem:[%s1984 + $0xe0] sm:$0xff] %vm611, %v1966
      %2014 = vst.msk [vmem:[%s1984 + $0xe8] sm:$0xff] %vm611, %v1971
      %2015 = vst.msk [vmem:[%s1984 + $0xf0] sm:$0xff] %vm611, %v1976
      %2016 = vst.msk [vmem:[%s1984 + $0xf8] sm:$0xff] %vm611, %v1981
      %s2017 = scalar_lea.vmem %s2, 256
      %v2018 = vld [vmem:[%s2017] sm:$0xff]
      %v2019 = vld [vmem:[%s2017 + $0x8] sm:$0xff]
      %v2020 = vld [vmem:[%s2017 + $0x10] sm:$0xff]
      %v2021 = vld [vmem:[%s2017 + $0x18] sm:$0xff]
      %v2022 = vld [vmem:[%s2017 + $0x20] sm:$0xff]
      %v2023 = vld [vmem:[%s2017 + $0x28] sm:$0xff]
      %v2024 = vld [vmem:[%s2017 + $0x30] sm:$0xff]
      %v2025 = vld [vmem:[%s2017 + $0x38] sm:$0xff]
      %v2026 = vld [vmem:[%s2017 + $0x40] sm:$0xff]
      %v2027 = vld [vmem:[%s2017 + $0x48] sm:$0xff]
      %v2028 = vld [vmem:[%s2017 + $0x50] sm:$0xff]
      %v2029 = vld [vmem:[%s2017 + $0x58] sm:$0xff]
      %v2030 = vld [vmem:[%s2017 + $0x60] sm:$0xff]
      %v2031 = vld [vmem:[%s2017 + $0x68] sm:$0xff]
      %v2032 = vld [vmem:[%s2017 + $0x70] sm:$0xff]
      %v2033 = vld [vmem:[%s2017 + $0x78] sm:$0xff]
      %2034 = vmatprep.subr.mxu0 0.0
      %2035 = vmatpush1.msra.mxu0 %v2033
      %2036 = vmatprep.subr.mxu0 0.0
      %2037 = vmatpush1.msra.mxu0 %v2032
      %2038 = vmatprep.subr.mxu0 0.0
      %2039 = vmatpush1.msra.mxu0 %v2031
      %2040 = vmatprep.subr.mxu0 0.0
      %2041 = vmatpush1.msra.mxu0 %v2030
      %2042 = vmatprep.subr.mxu0 0.0
      %2043 = vmatpush1.msra.mxu0 %v2029
      %2044 = vmatprep.subr.mxu0 0.0
      %2045 = vmatpush1.msra.mxu0 %v2028
      %2046 = vmatprep.subr.mxu0 0.0
      %2047 = vmatpush1.msra.mxu0 %v2027
      %2048 = vmatprep.subr.mxu0 0.0
      %2049 = vmatpush1.msra.mxu0 %v2026
      %2050 = vmatprep.subr.mxu0 0.0
      %2051 = vmatpush1.msra.mxu0 %v2025
      %2052 = vmatprep.subr.mxu0 0.0
      %2053 = vmatpush1.msra.mxu0 %v2024
      %2054 = vmatprep.subr.mxu0 0.0
      %2055 = vmatpush1.msra.mxu0 %v2023
      %2056 = vmatprep.subr.mxu0 0.0
      %2057 = vmatpush1.msra.mxu0 %v2022
      %2058 = vmatprep.subr.mxu0 0.0
      %2059 = vmatpush1.msra.mxu0 %v2021
      %2060 = vmatprep.subr.mxu0 0.0
      %2061 = vmatpush1.msra.mxu0 %v2020
      %2062 = vmatprep.subr.mxu0 0.0
      %2063 = vmatpush1.msra.mxu0 %v2019
      %2064 = vmatprep.subr.mxu0 0.0
      %2065 = vmatpush1.msra.mxu0 %v2018
      %2066 = vmatprep.subr.mxu0 0.0
      %2067 = vmatpush2.msra.mxu0 0.0
      %2068 = vmatprep.subr.mxu0 0.0
      %2069 = vmatpush2.msra.mxu0 0.0
      %2070 = vmatprep.subr.mxu0 0.0
      %2071 = vmatpush2.msra.mxu0 0.0
      %2072 = vmatprep.subr.mxu0 0.0
      %2073 = vmatpush2.msra.mxu0 0.0
      %2074 = vmatprep.subr.mxu0 0.0
      %2075 = vmatpush2.msra.mxu0 0.0
      %2076 = vmatprep.subr.mxu0 0.0
      %2077 = vmatpush2.msra.mxu0 0.0
      %2078 = vmatprep.subr.mxu0 0.0
      %2079 = vmatpush2.msra.mxu0 0.0
      %2080 = vmatprep.subr.mxu0 0.0
      %2081 = vmatpush2.msra.mxu0 0.0
      %2082 = vmatprep.subr.mxu0 0.0
      %2083 = vmatpush2.msra.mxu0 0.0
      %2084 = vmatprep.subr.mxu0 0.0
      %2085 = vmatpush2.msra.mxu0 0.0
      %2086 = vmatprep.subr.mxu0 0.0
      %2087 = vmatpush2.msra.mxu0 0.0
      %2088 = vmatprep.subr.mxu0 0.0
      %2089 = vmatpush2.msra.mxu0 0.0
      %2090 = vmatprep.subr.mxu0 0.0
      %2091 = vmatpush2.msra.mxu0 0.0
      %2092 = vmatprep.subr.mxu0 0.0
      %2093 = vmatpush2.msra.mxu0 0.0
      %2094 = vmatprep.subr.mxu0 0.0
      %2095 = vmatpush2.msra.mxu0 0.0
      %2096 = vmatprep.subr.mxu0 0.0
      %2097 = vmatpush2.msra.mxu0 0.0
      %2098 = vmatprep.mubr.f32.mxu0 0.0
      %2099 = vmatmul.mubr.f32.gmra.mxu0 %v338
      %v2100 = vpop.f32.mrf.mxu0
      %v2101 = vadd.f32 0.0, %v2100
      %v2102 = vpop.f32.mrf.mxu0
      %2103 = vmatprep.mubr.f32.mxu0 0.0
      %2104 = vmatmul.mubr.f32.gmra.mxu0 %v339
      %v2105 = vpop.f32.mrf.mxu0
      %v2106 = vadd.f32 0.0, %v2105
      %v2107 = vpop.f32.mrf.mxu0
      %2108 = vmatprep.mubr.f32.mxu0 0.0
      %2109 = vmatmul.mubr.f32.gmra.mxu0 %v340
      %v2110 = vpop.f32.mrf.mxu0
      %v2111 = vadd.f32 0.0, %v2110
      %v2112 = vpop.f32.mrf.mxu0
      %2113 = vmatprep.mubr.f32.mxu0 0.0
      %2114 = vmatmul.mubr.f32.gmra.mxu0 %v341
      %v2115 = vpop.f32.mrf.mxu0
      %v2116 = vadd.f32 0.0, %v2115
      %v2117 = vpop.f32.mrf.mxu0
      %2118 = vmatprep.mubr.f32.mxu0 0.0
      %2119 = vmatmul.mubr.f32.gmra.mxu0 %v342
      %v2120 = vpop.f32.mrf.mxu0
      %v2121 = vadd.f32 0.0, %v2120
      %v2122 = vpop.f32.mrf.mxu0
      %2123 = vmatprep.mubr.f32.mxu0 0.0
      %2124 = vmatmul.mubr.f32.gmra.mxu0 %v343
      %v2125 = vpop.f32.mrf.mxu0
      %v2126 = vadd.f32 0.0, %v2125
      %v2127 = vpop.f32.mrf.mxu0
      %2128 = vmatprep.mubr.f32.mxu0 0.0
      %2129 = vmatmul.mubr.f32.gmra.mxu0 %v344
      %v2130 = vpop.f32.mrf.mxu0
      %v2131 = vadd.f32 0.0, %v2130
      %v2132 = vpop.f32.mrf.mxu0
      %2133 = vmatprep.mubr.f32.mxu0 0.0
      %2134 = vmatmul.mubr.f32.gmra.mxu0 %v345
      %v2135 = vpop.f32.mrf.mxu0
      %v2136 = vadd.f32 0.0, %v2135
      %v2137 = vpop.f32.mrf.mxu0
      %2138 = vmatprep.mubr.f32.mxu0 0.0
      %2139 = vmatmul.mubr.f32.gmra.mxu0 %v346
      %v2140 = vpop.f32.mrf.mxu0
      %v2141 = vadd.f32 0.0, %v2140
      %v2142 = vpop.f32.mrf.mxu0
      %2143 = vmatprep.mubr.f32.mxu0 0.0
      %2144 = vmatmul.mubr.f32.gmra.mxu0 %v347
      %v2145 = vpop.f32.mrf.mxu0
      %v2146 = vadd.f32 0.0, %v2145
      %v2147 = vpop.f32.mrf.mxu0
      %2148 = vmatprep.mubr.f32.mxu0 0.0
      %2149 = vmatmul.mubr.f32.gmra.mxu0 %v348
      %v2150 = vpop.f32.mrf.mxu0
      %v2151 = vadd.f32 0.0, %v2150
      %v2152 = vpop.f32.mrf.mxu0
      %2153 = vmatprep.mubr.f32.mxu0 0.0
      %2154 = vmatmul.mubr.f32.gmra.mxu0 %v349
      %v2155 = vpop.f32.mrf.mxu0
      %v2156 = vadd.f32 0.0, %v2155
      %v2157 = vpop.f32.mrf.mxu0
      %2158 = vmatprep.mubr.f32.mxu0 0.0
      %2159 = vmatmul.mubr.f32.gmra.mxu0 %v350
      %v2160 = vpop.f32.mrf.mxu0
      %v2161 = vadd.f32 0.0, %v2160
      %v2162 = vpop.f32.mrf.mxu0
      %2163 = vmatprep.mubr.f32.mxu0 0.0
      %2164 = vmatmul.mubr.f32.gmra.mxu0 %v351
      %v2165 = vpop.f32.mrf.mxu0
      %v2166 = vadd.f32 0.0, %v2165
      %v2167 = vpop.f32.mrf.mxu0
      %2168 = vmatprep.mubr.f32.mxu0 0.0
      %2169 = vmatmul.mubr.f32.gmra.mxu0 %v352
      %v2170 = vpop.f32.mrf.mxu0
      %v2171 = vadd.f32 0.0, %v2170
      %v2172 = vpop.f32.mrf.mxu0
      %2173 = vmatprep.mubr.f32.mxu0 0.0
      %2174 = vmatmul.mubr.f32.gmra.mxu0 %v353
      %v2175 = vpop.f32.mrf.mxu0
      %v2176 = vadd.f32 0.0, %v2175
      %v2177 = vpop.f32.mrf.mxu0
      %2178 = vmatprep.mubr.f32.mxu0 0.0
      %2179 = vmatmul.mubr.f32.gmra.mxu0 %v354
      %v2180 = vpop.f32.mrf.mxu0
      %v2181 = vadd.f32 0.0, %v2180
      %v2182 = vpop.f32.mrf.mxu0
      %2183 = vmatprep.mubr.f32.mxu0 0.0
      %2184 = vmatmul.mubr.f32.gmra.mxu0 %v355
      %v2185 = vpop.f32.mrf.mxu0
      %v2186 = vadd.f32 0.0, %v2185
      %v2187 = vpop.f32.mrf.mxu0
      %2188 = vmatprep.mubr.f32.mxu0 0.0
      %2189 = vmatmul.mubr.f32.gmra.mxu0 %v356
      %v2190 = vpop.f32.mrf.mxu0
      %v2191 = vadd.f32 0.0, %v2190
      %v2192 = vpop.f32.mrf.mxu0
      %2193 = vmatprep.mubr.f32.mxu0 0.0
      %2194 = vmatmul.mubr.f32.gmra.mxu0 %v357
      %v2195 = vpop.f32.mrf.mxu0
      %v2196 = vadd.f32 0.0, %v2195
      %v2197 = vpop.f32.mrf.mxu0
      %2198 = vmatprep.mubr.f32.mxu0 0.0
      %2199 = vmatmul.mubr.f32.gmra.mxu0 %v358
      %v2200 = vpop.f32.mrf.mxu0
      %v2201 = vadd.f32 0.0, %v2200
      %v2202 = vpop.f32.mrf.mxu0
      %2203 = vmatprep.mubr.f32.mxu0 0.0
      %2204 = vmatmul.mubr.f32.gmra.mxu0 %v359
      %v2205 = vpop.f32.mrf.mxu0
      %v2206 = vadd.f32 0.0, %v2205
      %v2207 = vpop.f32.mrf.mxu0
      %2208 = vmatprep.mubr.f32.mxu0 0.0
      %2209 = vmatmul.mubr.f32.gmra.mxu0 %v360
      %v2210 = vpop.f32.mrf.mxu0
      %v2211 = vadd.f32 0.0, %v2210
      %v2212 = vpop.f32.mrf.mxu0
      %2213 = vmatprep.mubr.f32.mxu0 0.0
      %2214 = vmatmul.mubr.f32.gmra.mxu0 %v361
      %v2215 = vpop.f32.mrf.mxu0
      %v2216 = vadd.f32 0.0, %v2215
      %v2217 = vpop.f32.mrf.mxu0
      %2218 = vmatprep.mubr.f32.mxu0 0.0
      %2219 = vmatmul.mubr.f32.gmra.mxu0 %v362
      %v2220 = vpop.f32.mrf.mxu0
      %v2221 = vadd.f32 0.0, %v2220
      %v2222 = vpop.f32.mrf.mxu0
      %2223 = vmatprep.mubr.f32.mxu0 0.0
      %2224 = vmatmul.mubr.f32.gmra.mxu0 %v363
      %v2225 = vpop.f32.mrf.mxu0
      %v2226 = vadd.f32 0.0, %v2225
      %v2227 = vpop.f32.mrf.mxu0
      %2228 = vmatprep.mubr.f32.mxu0 0.0
      %2229 = vmatmul.mubr.f32.gmra.mxu0 %v364
      %v2230 = vpop.f32.mrf.mxu0
      %v2231 = vadd.f32 0.0, %v2230
      %v2232 = vpop.f32.mrf.mxu0
      %2233 = vmatprep.mubr.f32.mxu0 0.0
      %2234 = vmatmul.mubr.f32.gmra.mxu0 %v365
      %v2235 = vpop.f32.mrf.mxu0
      %v2236 = vadd.f32 0.0, %v2235
      %v2237 = vpop.f32.mrf.mxu0
      %2238 = vmatprep.mubr.f32.mxu0 0.0
      %2239 = vmatmul.mubr.f32.gmra.mxu0 %v366
      %v2240 = vpop.f32.mrf.mxu0
      %v2241 = vadd.f32 0.0, %v2240
      %v2242 = vpop.f32.mrf.mxu0
      %2243 = vmatprep.mubr.f32.mxu0 0.0
      %2244 = vmatmul.mubr.f32.gmra.mxu0 %v367
      %v2245 = vpop.f32.mrf.mxu0
      %v2246 = vadd.f32 0.0, %v2245
      %v2247 = vpop.f32.mrf.mxu0
      %2248 = vmatprep.mubr.f32.mxu0 0.0
      %2249 = vmatmul.mubr.f32.gmra.mxu0 %v368
      %v2250 = vpop.f32.mrf.mxu0
      %v2251 = vadd.f32 0.0, %v2250
      %v2252 = vpop.f32.mrf.mxu0
      %2253 = vmatprep.mubr.f32.mxu0 0.0
      %2254 = vmatmul.mubr.f32.gmra.mxu0 %v369
      %v2255 = vpop.f32.mrf.mxu0
      %v2256 = vadd.f32 0.0, %v2255
      %v2257 = vpop.f32.mrf.mxu0
      %2258 = vdwg.mxu0
      %s2259 = scalar_lea.vmem %s326, 512
      %2260 = vst.msk [vmem:[%s2259] sm:$0xff] %vm611, %v2101
      %2261 = vst.msk [vmem:[%s2259 + $0x8] sm:$0xff] %vm611, %v2106
      %2262 = vst.msk [vmem:[%s2259 + $0x10] sm:$0xff] %vm611, %v2111
      %2263 = vst.msk [vmem:[%s2259 + $0x18] sm:$0xff] %vm611, %v2116
      %2264 = vst.msk [vmem:[%s2259 + $0x20] sm:$0xff] %vm611, %v2121
      %2265 = vst.msk [vmem:[%s2259 + $0x28] sm:$0xff] %vm611, %v2126
      %2266 = vst.msk [vmem:[%s2259 + $0x30] sm:$0xff] %vm611, %v2131
      %2267 = vst.msk [vmem:[%s2259 + $0x38] sm:$0xff] %vm611, %v2136
      %2268 = vst.msk [vmem:[%s2259 + $0x40] sm:$0xff] %vm611, %v2141
      %2269 = vst.msk [vmem:[%s2259 + $0x48] sm:$0xff] %vm611, %v2146
      %2270 = vst.msk [vmem:[%s2259 + $0x50] sm:$0xff] %vm611, %v2151
      %2271 = vst.msk [vmem:[%s2259 + $0x58] sm:$0xff] %vm611, %v2156
      %2272 = vst.msk [vmem:[%s2259 + $0x60] sm:$0xff] %vm611, %v2161
      %2273 = vst.msk [vmem:[%s2259 + $0x68] sm:$0xff] %vm611, %v2166
      %2274 = vst.msk [vmem:[%s2259 + $0x70] sm:$0xff] %vm611, %v2171
      %2275 = vst.msk [vmem:[%s2259 + $0x78] sm:$0xff] %vm611, %v2176
      %2276 = vst.msk [vmem:[%s2259 + $0x80] sm:$0xff] %vm611, %v2181
      %2277 = vst.msk [vmem:[%s2259 + $0x88] sm:$0xff] %vm611, %v2186
      %2278 = vst.msk [vmem:[%s2259 + $0x90] sm:$0xff] %vm611, %v2191
      %2279 = vst.msk [vmem:[%s2259 + $0x98] sm:$0xff] %vm611, %v2196
      %2280 = vst.msk [vmem:[%s2259 + $0xa0] sm:$0xff] %vm611, %v2201
      %2281 = vst.msk [vmem:[%s2259 + $0xa8] sm:$0xff] %vm611, %v2206
      %2282 = vst.msk [vmem:[%s2259 + $0xb0] sm:$0xff] %vm611, %v2211
      %2283 = vst.msk [vmem:[%s2259 + $0xb8] sm:$0xff] %vm611, %v2216
      %2284 = vst.msk [vmem:[%s2259 + $0xc0] sm:$0xff] %vm611, %v2221
      %2285 = vst.msk [vmem:[%s2259 + $0xc8] sm:$0xff] %vm611, %v2226
      %2286 = vst.msk [vmem:[%s2259 + $0xd0] sm:$0xff] %vm611, %v2231
      %2287 = vst.msk [vmem:[%s2259 + $0xd8] sm:$0xff] %vm611, %v2236
      %2288 = vst.msk [vmem:[%s2259 + $0xe0] sm:$0xff] %vm611, %v2241
      %2289 = vst.msk [vmem:[%s2259 + $0xe8] sm:$0xff] %vm611, %v2246
      %2290 = vst.msk [vmem:[%s2259 + $0xf0] sm:$0xff] %vm611, %v2251
      %2291 = vst.msk [vmem:[%s2259 + $0xf8] sm:$0xff] %vm611, %v2256
      %s2292 = scalar_lea.vmem %s2, 384
      %v2293 = vld [vmem:[%s2292] sm:$0xff]
      %v2294 = vld [vmem:[%s2292 + $0x8] sm:$0xff]
      %v2295 = vld [vmem:[%s2292 + $0x10] sm:$0xff]
      %v2296 = vld [vmem:[%s2292 + $0x18] sm:$0xff]
      %v2297 = vld [vmem:[%s2292 + $0x20] sm:$0xff]
      %v2298 = vld [vmem:[%s2292 + $0x28] sm:$0xff]
      %v2299 = vld [vmem:[%s2292 + $0x30] sm:$0xff]
      %v2300 = vld [vmem:[%s2292 + $0x38] sm:$0xff]
      %v2301 = vld [vmem:[%s2292 + $0x40] sm:$0xff]
      %v2302 = vld [vmem:[%s2292 + $0x48] sm:$0xff]
      %v2303 = vld [vmem:[%s2292 + $0x50] sm:$0xff]
      %v2304 = vld [vmem:[%s2292 + $0x58] sm:$0xff]
      %v2305 = vld [vmem:[%s2292 + $0x60] sm:$0xff]
      %v2306 = vld [vmem:[%s2292 + $0x68] sm:$0xff]
      %v2307 = vld [vmem:[%s2292 + $0x70] sm:$0xff]
      %v2308 = vld [vmem:[%s2292 + $0x78] sm:$0xff]
      %2309 = vmatprep.subr.mxu0 0.0
      %2310 = vmatpush1.msra.mxu0 %v2308
      %2311 = vmatprep.subr.mxu0 0.0
      %2312 = vmatpush1.msra.mxu0 %v2307
      %2313 = vmatprep.subr.mxu0 0.0
      %2314 = vmatpush1.msra.mxu0 %v2306
      %2315 = vmatprep.subr.mxu0 0.0
      %2316 = vmatpush1.msra.mxu0 %v2305
      %2317 = vmatprep.subr.mxu0 0.0
      %2318 = vmatpush1.msra.mxu0 %v2304
      %2319 = vmatprep.subr.mxu0 0.0
      %2320 = vmatpush1.msra.mxu0 %v2303
      %2321 = vmatprep.subr.mxu0 0.0
      %2322 = vmatpush1.msra.mxu0 %v2302
      %2323 = vmatprep.subr.mxu0 0.0
      %2324 = vmatpush1.msra.mxu0 %v2301
      %2325 = vmatprep.subr.mxu0 0.0
      %2326 = vmatpush1.msra.mxu0 %v2300
      %2327 = vmatprep.subr.mxu0 0.0
      %2328 = vmatpush1.msra.mxu0 %v2299
      %2329 = vmatprep.subr.mxu0 0.0
      %2330 = vmatpush1.msra.mxu0 %v2298
      %2331 = vmatprep.subr.mxu0 0.0
      %2332 = vmatpush1.msra.mxu0 %v2297
      %2333 = vmatprep.subr.mxu0 0.0
      %2334 = vmatpush1.msra.mxu0 %v2296
      %2335 = vmatprep.subr.mxu0 0.0
      %2336 = vmatpush1.msra.mxu0 %v2295
      %2337 = vmatprep.subr.mxu0 0.0
      %2338 = vmatpush1.msra.mxu0 %v2294
      %2339 = vmatprep.subr.mxu0 0.0
      %2340 = vmatpush1.msra.mxu0 %v2293
      %2341 = vmatprep.subr.mxu0 0.0
      %2342 = vmatpush2.msra.mxu0 0.0
      %2343 = vmatprep.subr.mxu0 0.0
      %2344 = vmatpush2.msra.mxu0 0.0
      %2345 = vmatprep.subr.mxu0 0.0
      %2346 = vmatpush2.msra.mxu0 0.0
      %2347 = vmatprep.subr.mxu0 0.0
      %2348 = vmatpush2.msra.mxu0 0.0
      %2349 = vmatprep.subr.mxu0 0.0
      %2350 = vmatpush2.msra.mxu0 0.0
      %2351 = vmatprep.subr.mxu0 0.0
      %2352 = vmatpush2.msra.mxu0 0.0
      %2353 = vmatprep.subr.mxu0 0.0
      %2354 = vmatpush2.msra.mxu0 0.0
      %2355 = vmatprep.subr.mxu0 0.0
      %2356 = vmatpush2.msra.mxu0 0.0
      %2357 = vmatprep.subr.mxu0 0.0
      %2358 = vmatpush2.msra.mxu0 0.0
      %2359 = vmatprep.subr.mxu0 0.0
      %2360 = vmatpush2.msra.mxu0 0.0
      %2361 = vmatprep.subr.mxu0 0.0
      %2362 = vmatpush2.msra.mxu0 0.0
      %2363 = vmatprep.subr.mxu0 0.0
      %2364 = vmatpush2.msra.mxu0 0.0
      %2365 = vmatprep.subr.mxu0 0.0
      %2366 = vmatpush2.msra.mxu0 0.0
      %2367 = vmatprep.subr.mxu0 0.0
      %2368 = vmatpush2.msra.mxu0 0.0
      %2369 = vmatprep.subr.mxu0 0.0
      %2370 = vmatpush2.msra.mxu0 0.0
      %2371 = vmatprep.subr.mxu0 0.0
      %2372 = vmatpush2.msra.mxu0 0.0
      %2373 = vmatprep.mubr.f32.mxu0 0.0
      %2374 = vmatmul.mubr.f32.gmra.mxu0 %v338
      %v2375 = vpop.f32.mrf.mxu0
      %v2376 = vadd.f32 0.0, %v2375
      %v2377 = vpop.f32.mrf.mxu0
      %2378 = vmatprep.mubr.f32.mxu0 0.0
      %2379 = vmatmul.mubr.f32.gmra.mxu0 %v339
      %v2380 = vpop.f32.mrf.mxu0
      %v2381 = vadd.f32 0.0, %v2380
      %v2382 = vpop.f32.mrf.mxu0
      %2383 = vmatprep.mubr.f32.mxu0 0.0
      %2384 = vmatmul.mubr.f32.gmra.mxu0 %v340
      %v2385 = vpop.f32.mrf.mxu0
      %v2386 = vadd.f32 0.0, %v2385
      %v2387 = vpop.f32.mrf.mxu0
      %2388 = vmatprep.mubr.f32.mxu0 0.0
      %2389 = vmatmul.mubr.f32.gmra.mxu0 %v341
      %v2390 = vpop.f32.mrf.mxu0
      %v2391 = vadd.f32 0.0, %v2390
      %v2392 = vpop.f32.mrf.mxu0
      %2393 = vmatprep.mubr.f32.mxu0 0.0
      %2394 = vmatmul.mubr.f32.gmra.mxu0 %v342
      %v2395 = vpop.f32.mrf.mxu0
      %v2396 = vadd.f32 0.0, %v2395
      %v2397 = vpop.f32.mrf.mxu0
      %2398 = vmatprep.mubr.f32.mxu0 0.0
      %2399 = vmatmul.mubr.f32.gmra.mxu0 %v343
      %v2400 = vpop.f32.mrf.mxu0
      %v2401 = vadd.f32 0.0, %v2400
      %v2402 = vpop.f32.mrf.mxu0
      %2403 = vmatprep.mubr.f32.mxu0 0.0
      %2404 = vmatmul.mubr.f32.gmra.mxu0 %v344
      %v2405 = vpop.f32.mrf.mxu0
      %v2406 = vadd.f32 0.0, %v2405
      %v2407 = vpop.f32.mrf.mxu0
      %2408 = vmatprep.mubr.f32.mxu0 0.0
      %2409 = vmatmul.mubr.f32.gmra.mxu0 %v345
      %v2410 = vpop.f32.mrf.mxu0
      %v2411 = vadd.f32 0.0, %v2410
      %v2412 = vpop.f32.mrf.mxu0
      %2413 = vmatprep.mubr.f32.mxu0 0.0
      %2414 = vmatmul.mubr.f32.gmra.mxu0 %v346
      %v2415 = vpop.f32.mrf.mxu0
      %v2416 = vadd.f32 0.0, %v2415
      %v2417 = vpop.f32.mrf.mxu0
      %2418 = vmatprep.mubr.f32.mxu0 0.0
      %2419 = vmatmul.mubr.f32.gmra.mxu0 %v347
      %v2420 = vpop.f32.mrf.mxu0
      %v2421 = vadd.f32 0.0, %v2420
      %v2422 = vpop.f32.mrf.mxu0
      %2423 = vmatprep.mubr.f32.mxu0 0.0
      %2424 = vmatmul.mubr.f32.gmra.mxu0 %v348
      %v2425 = vpop.f32.mrf.mxu0
      %v2426 = vadd.f32 0.0, %v2425
      %v2427 = vpop.f32.mrf.mxu0
      %2428 = vmatprep.mubr.f32.mxu0 0.0
      %2429 = vmatmul.mubr.f32.gmra.mxu0 %v349
      %v2430 = vpop.f32.mrf.mxu0
      %v2431 = vadd.f32 0.0, %v2430
      %v2432 = vpop.f32.mrf.mxu0
      %2433 = vmatprep.mubr.f32.mxu0 0.0
      %2434 = vmatmul.mubr.f32.gmra.mxu0 %v350
      %v2435 = vpop.f32.mrf.mxu0
      %v2436 = vadd.f32 0.0, %v2435
      %v2437 = vpop.f32.mrf.mxu0
      %2438 = vmatprep.mubr.f32.mxu0 0.0
      %2439 = vmatmul.mubr.f32.gmra.mxu0 %v351
      %v2440 = vpop.f32.mrf.mxu0
      %v2441 = vadd.f32 0.0, %v2440
      %v2442 = vpop.f32.mrf.mxu0
      %2443 = vmatprep.mubr.f32.mxu0 0.0
      %2444 = vmatmul.mubr.f32.gmra.mxu0 %v352
      %v2445 = vpop.f32.mrf.mxu0
      %v2446 = vadd.f32 0.0, %v2445
      %v2447 = vpop.f32.mrf.mxu0
      %2448 = vmatprep.mubr.f32.mxu0 0.0
      %2449 = vmatmul.mubr.f32.gmra.mxu0 %v353
      %v2450 = vpop.f32.mrf.mxu0
      %v2451 = vadd.f32 0.0, %v2450
      %v2452 = vpop.f32.mrf.mxu0
      %2453 = vmatprep.mubr.f32.mxu0 0.0
      %2454 = vmatmul.mubr.f32.gmra.mxu0 %v354
      %v2455 = vpop.f32.mrf.mxu0
      %v2456 = vadd.f32 0.0, %v2455
      %v2457 = vpop.f32.mrf.mxu0
      %2458 = vmatprep.mubr.f32.mxu0 0.0
      %2459 = vmatmul.mubr.f32.gmra.mxu0 %v355
      %v2460 = vpop.f32.mrf.mxu0
      %v2461 = vadd.f32 0.0, %v2460
      %v2462 = vpop.f32.mrf.mxu0
      %2463 = vmatprep.mubr.f32.mxu0 0.0
      %2464 = vmatmul.mubr.f32.gmra.mxu0 %v356
      %v2465 = vpop.f32.mrf.mxu0
      %v2466 = vadd.f32 0.0, %v2465
      %v2467 = vpop.f32.mrf.mxu0
      %2468 = vmatprep.mubr.f32.mxu0 0.0
      %2469 = vmatmul.mubr.f32.gmra.mxu0 %v357
      %v2470 = vpop.f32.mrf.mxu0
      %v2471 = vadd.f32 0.0, %v2470
      %v2472 = vpop.f32.mrf.mxu0
      %2473 = vmatprep.mubr.f32.mxu0 0.0
      %2474 = vmatmul.mubr.f32.gmra.mxu0 %v358
      %v2475 = vpop.f32.mrf.mxu0
      %v2476 = vadd.f32 0.0, %v2475
      %v2477 = vpop.f32.mrf.mxu0
      %2478 = vmatprep.mubr.f32.mxu0 0.0
      %2479 = vmatmul.mubr.f32.gmra.mxu0 %v359
      %v2480 = vpop.f32.mrf.mxu0
      %v2481 = vadd.f32 0.0, %v2480
      %v2482 = vpop.f32.mrf.mxu0
      %2483 = vmatprep.mubr.f32.mxu0 0.0
      %2484 = vmatmul.mubr.f32.gmra.mxu0 %v360
      %v2485 = vpop.f32.mrf.mxu0
      %v2486 = vadd.f32 0.0, %v2485
      %v2487 = vpop.f32.mrf.mxu0
      %2488 = vmatprep.mubr.f32.mxu0 0.0
      %2489 = vmatmul.mubr.f32.gmra.mxu0 %v361
      %v2490 = vpop.f32.mrf.mxu0
      %v2491 = vadd.f32 0.0, %v2490
      %v2492 = vpop.f32.mrf.mxu0
      %2493 = vmatprep.mubr.f32.mxu0 0.0
      %2494 = vmatmul.mubr.f32.gmra.mxu0 %v362
      %v2495 = vpop.f32.mrf.mxu0
      %v2496 = vadd.f32 0.0, %v2495
      %v2497 = vpop.f32.mrf.mxu0
      %2498 = vmatprep.mubr.f32.mxu0 0.0
      %2499 = vmatmul.mubr.f32.gmra.mxu0 %v363
      %v2500 = vpop.f32.mrf.mxu0
      %v2501 = vadd.f32 0.0, %v2500
      %v2502 = vpop.f32.mrf.mxu0
      %2503 = vmatprep.mubr.f32.mxu0 0.0
      %2504 = vmatmul.mubr.f32.gmra.mxu0 %v364
      %v2505 = vpop.f32.mrf.mxu0
      %v2506 = vadd.f32 0.0, %v2505
      %v2507 = vpop.f32.mrf.mxu0
      %2508 = vmatprep.mubr.f32.mxu0 0.0
      %2509 = vmatmul.mubr.f32.gmra.mxu0 %v365
      %v2510 = vpop.f32.mrf.mxu0
      %v2511 = vadd.f32 0.0, %v2510
      %v2512 = vpop.f32.mrf.mxu0
      %2513 = vmatprep.mubr.f32.mxu0 0.0
      %2514 = vmatmul.mubr.f32.gmra.mxu0 %v366
      %v2515 = vpop.f32.mrf.mxu0
      %v2516 = vadd.f32 0.0, %v2515
      %v2517 = vpop.f32.mrf.mxu0
      %2518 = vmatprep.mubr.f32.mxu0 0.0
      %2519 = vmatmul.mubr.f32.gmra.mxu0 %v367
      %v2520 = vpop.f32.mrf.mxu0
      %v2521 = vadd.f32 0.0, %v2520
      %v2522 = vpop.f32.mrf.mxu0
      %2523 = vmatprep.mubr.f32.mxu0 0.0
      %2524 = vmatmul.mubr.f32.gmra.mxu0 %v368
      %v2525 = vpop.f32.mrf.mxu0
      %v2526 = vadd.f32 0.0, %v2525
      %v2527 = vpop.f32.mrf.mxu0
      %2528 = vmatprep.mubr.f32.mxu0 0.0
      %2529 = vmatmul.mubr.f32.gmra.mxu0 %v369
      %v2530 = vpop.f32.mrf.mxu0
      %v2531 = vadd.f32 0.0, %v2530
      %v2532 = vpop.f32.mrf.mxu0
      %2533 = vdwg.mxu0
      %s2534 = scalar_lea.vmem %s326, 768
      %2535 = vst.msk [vmem:[%s2534] sm:$0xff] %vm611, %v2376
      %2536 = vst.msk [vmem:[%s2534 + $0x8] sm:$0xff] %vm611, %v2381
      %2537 = vst.msk [vmem:[%s2534 + $0x10] sm:$0xff] %vm611, %v2386
      %2538 = vst.msk [vmem:[%s2534 + $0x18] sm:$0xff] %vm611, %v2391
      %2539 = vst.msk [vmem:[%s2534 + $0x20] sm:$0xff] %vm611, %v2396
      %2540 = vst.msk [vmem:[%s2534 + $0x28] sm:$0xff] %vm611, %v2401
      %2541 = vst.msk [vmem:[%s2534 + $0x30] sm:$0xff] %vm611, %v2406
      %2542 = vst.msk [vmem:[%s2534 + $0x38] sm:$0xff] %vm611, %v2411
      %2543 = vst.msk [vmem:[%s2534 + $0x40] sm:$0xff] %vm611, %v2416
      %2544 = vst.msk [vmem:[%s2534 + $0x48] sm:$0xff] %vm611, %v2421
      %2545 = vst.msk [vmem:[%s2534 + $0x50] sm:$0xff] %vm611, %v2426
      %2546 = vst.msk [vmem:[%s2534 + $0x58] sm:$0xff] %vm611, %v2431
      %2547 = vst.msk [vmem:[%s2534 + $0x60] sm:$0xff] %vm611, %v2436
      %2548 = vst.msk [vmem:[%s2534 + $0x68] sm:$0xff] %vm611, %v2441
      %2549 = vst.msk [vmem:[%s2534 + $0x70] sm:$0xff] %vm611, %v2446
      %2550 = vst.msk [vmem:[%s2534 + $0x78] sm:$0xff] %vm611, %v2451
      %2551 = vst.msk [vmem:[%s2534 + $0x80] sm:$0xff] %vm611, %v2456
      %2552 = vst.msk [vmem:[%s2534 + $0x88] sm:$0xff] %vm611, %v2461
      %2553 = vst.msk [vmem:[%s2534 + $0x90] sm:$0xff] %vm611, %v2466
      %2554 = vst.msk [vmem:[%s2534 + $0x98] sm:$0xff] %vm611, %v2471
      %2555 = vst.msk [vmem:[%s2534 + $0xa0] sm:$0xff] %vm611, %v2476
      %2556 = vst.msk [vmem:[%s2534 + $0xa8] sm:$0xff] %vm611, %v2481
      %2557 = vst.msk [vmem:[%s2534 + $0xb0] sm:$0xff] %vm611, %v2486
      %2558 = vst.msk [vmem:[%s2534 + $0xb8] sm:$0xff] %vm611, %v2491
      %2559 = vst.msk [vmem:[%s2534 + $0xc0] sm:$0xff] %vm611, %v2496
      %2560 = vst.msk [vmem:[%s2534 + $0xc8] sm:$0xff] %vm611, %v2501
      %2561 = vst.msk [vmem:[%s2534 + $0xd0] sm:$0xff] %vm611, %v2506
      %2562 = vst.msk [vmem:[%s2534 + $0xd8] sm:$0xff] %vm611, %v2511
      %2563 = vst.msk [vmem:[%s2534 + $0xe0] sm:$0xff] %vm611, %v2516
      %2564 = vst.msk [vmem:[%s2534 + $0xe8] sm:$0xff] %vm611, %v2521
      %2565 = vst.msk [vmem:[%s2534 + $0xf0] sm:$0xff] %vm611, %v2526
      %2566 = vst.msk [vmem:[%s2534 + $0xf8] sm:$0xff] %vm611, %v2531
      %v2567 = vld [vmem:[%s3] sm:$0xff]
      %v2568 = vld [vmem:[%s3 + $0x8] sm:$0xff]
      %v2569 = vld [vmem:[%s3 + $0x10] sm:$0xff]
      %v2570 = vld [vmem:[%s3 + $0x18] sm:$0xff]
      %v2571 = vld [vmem:[%s3 + $0x20] sm:$0xff]
      %v2572 = vld [vmem:[%s3 + $0x28] sm:$0xff]
      %v2573 = vld [vmem:[%s3 + $0x30] sm:$0xff]
      %v2574 = vld [vmem:[%s3 + $0x38] sm:$0xff]
      %v2575 = vld [vmem:[%s3 + $0x40] sm:$0xff]
      %v2576 = vld [vmem:[%s3 + $0x48] sm:$0xff]
      %v2577 = vld [vmem:[%s3 + $0x50] sm:$0xff]
      %v2578 = vld [vmem:[%s3 + $0x58] sm:$0xff]
      %v2579 = vld [vmem:[%s3 + $0x60] sm:$0xff]
      %v2580 = vld [vmem:[%s3 + $0x68] sm:$0xff]
      %v2581 = vld [vmem:[%s3 + $0x70] sm:$0xff]
      %v2582 = vld [vmem:[%s3 + $0x78] sm:$0xff]
      %2583 = vmatprep.subr.mxu0 0.0
      %2584 = vmatpush1.msra.mxu0 %v2582
      %2585 = vmatprep.subr.mxu0 0.0
      %2586 = vmatpush1.msra.mxu0 %v2581
      %2587 = vmatprep.subr.mxu0 0.0
      %2588 = vmatpush1.msra.mxu0 %v2580
      %2589 = vmatprep.subr.mxu0 0.0
      %2590 = vmatpush1.msra.mxu0 %v2579
      %2591 = vmatprep.subr.mxu0 0.0
      %2592 = vmatpush1.msra.mxu0 %v2578
      %2593 = vmatprep.subr.mxu0 0.0
      %2594 = vmatpush1.msra.mxu0 %v2577
      %2595 = vmatprep.subr.mxu0 0.0
      %2596 = vmatpush1.msra.mxu0 %v2576
      %2597 = vmatprep.subr.mxu0 0.0
      %2598 = vmatpush1.msra.mxu0 %v2575
      %2599 = vmatprep.subr.mxu0 0.0
      %2600 = vmatpush1.msra.mxu0 %v2574
      %2601 = vmatprep.subr.mxu0 0.0
      %2602 = vmatpush1.msra.mxu0 %v2573
      %2603 = vmatprep.subr.mxu0 0.0
      %2604 = vmatpush1.msra.mxu0 %v2572
      %2605 = vmatprep.subr.mxu0 0.0
      %2606 = vmatpush1.msra.mxu0 %v2571
      %2607 = vmatprep.subr.mxu0 0.0
      %2608 = vmatpush1.msra.mxu0 %v2570
      %2609 = vmatprep.subr.mxu0 0.0
      %2610 = vmatpush1.msra.mxu0 %v2569
      %2611 = vmatprep.subr.mxu0 0.0
      %2612 = vmatpush1.msra.mxu0 %v2568
      %2613 = vmatprep.subr.mxu0 0.0
      %2614 = vmatpush1.msra.mxu0 %v2567
      %2615 = vmatprep.subr.mxu0 0.0
      %2616 = vmatpush2.msra.mxu0 0.0
      %2617 = vmatprep.subr.mxu0 0.0
      %2618 = vmatpush2.msra.mxu0 0.0
      %2619 = vmatprep.subr.mxu0 0.0
      %2620 = vmatpush2.msra.mxu0 0.0
      %2621 = vmatprep.subr.mxu0 0.0
      %2622 = vmatpush2.msra.mxu0 0.0
      %2623 = vmatprep.subr.mxu0 0.0
      %2624 = vmatpush2.msra.mxu0 0.0
      %2625 = vmatprep.subr.mxu0 0.0
      %2626 = vmatpush2.msra.mxu0 0.0
      %2627 = vmatprep.subr.mxu0 0.0
      %2628 = vmatpush2.msra.mxu0 0.0
      %2629 = vmatprep.subr.mxu0 0.0
      %2630 = vmatpush2.msra.mxu0 0.0
      %2631 = vmatprep.subr.mxu0 0.0
      %2632 = vmatpush2.msra.mxu0 0.0
      %2633 = vmatprep.subr.mxu0 0.0
      %2634 = vmatpush2.msra.mxu0 0.0
      %2635 = vmatprep.subr.mxu0 0.0
      %2636 = vmatpush2.msra.mxu0 0.0
      %2637 = vmatprep.subr.mxu0 0.0
      %2638 = vmatpush2.msra.mxu0 0.0
      %2639 = vmatprep.subr.mxu0 0.0
      %2640 = vmatpush2.msra.mxu0 0.0
      %2641 = vmatprep.subr.mxu0 0.0
      %2642 = vmatpush2.msra.mxu0 0.0
      %2643 = vmatprep.subr.mxu0 0.0
      %2644 = vmatpush2.msra.mxu0 0.0
      %2645 = vmatprep.subr.mxu0 0.0
      %2646 = vmatpush2.msra.mxu0 0.0
      %2647 = vmatprep.mubr.f32.mxu0 0.0
      %2648 = vmatmul.mubr.f32.gmra.mxu0 %v338
      %v2649 = vpop.f32.mrf.mxu0
      %v2650 = vadd.f32 0.0, %v2649
      %v2651 = vpop.f32.mrf.mxu0
      %2652 = vmatprep.mubr.f32.mxu0 0.0
      %2653 = vmatmul.mubr.f32.gmra.mxu0 %v339
      %v2654 = vpop.f32.mrf.mxu0
      %v2655 = vadd.f32 0.0, %v2654
      %v2656 = vpop.f32.mrf.mxu0
      %2657 = vmatprep.mubr.f32.mxu0 0.0
      %2658 = vmatmul.mubr.f32.gmra.mxu0 %v340
      %v2659 = vpop.f32.mrf.mxu0
      %v2660 = vadd.f32 0.0, %v2659
      %v2661 = vpop.f32.mrf.mxu0
      %2662 = vmatprep.mubr.f32.mxu0 0.0
      %2663 = vmatmul.mubr.f32.gmra.mxu0 %v341
      %v2664 = vpop.f32.mrf.mxu0
      %v2665 = vadd.f32 0.0, %v2664
      %v2666 = vpop.f32.mrf.mxu0
      %2667 = vmatprep.mubr.f32.mxu0 0.0
      %2668 = vmatmul.mubr.f32.gmra.mxu0 %v342
      %v2669 = vpop.f32.mrf.mxu0
      %v2670 = vadd.f32 0.0, %v2669
      %v2671 = vpop.f32.mrf.mxu0
      %2672 = vmatprep.mubr.f32.mxu0 0.0
      %2673 = vmatmul.mubr.f32.gmra.mxu0 %v343
      %v2674 = vpop.f32.mrf.mxu0
      %v2675 = vadd.f32 0.0, %v2674
      %v2676 = vpop.f32.mrf.mxu0
      %2677 = vmatprep.mubr.f32.mxu0 0.0
      %2678 = vmatmul.mubr.f32.gmra.mxu0 %v344
      %v2679 = vpop.f32.mrf.mxu0
      %v2680 = vadd.f32 0.0, %v2679
      %v2681 = vpop.f32.mrf.mxu0
      %2682 = vmatprep.mubr.f32.mxu0 0.0
      %2683 = vmatmul.mubr.f32.gmra.mxu0 %v345
      %v2684 = vpop.f32.mrf.mxu0
      %v2685 = vadd.f32 0.0, %v2684
      %v2686 = vpop.f32.mrf.mxu0
      %2687 = vmatprep.mubr.f32.mxu0 0.0
      %2688 = vmatmul.mubr.f32.gmra.mxu0 %v346
      %v2689 = vpop.f32.mrf.mxu0
      %v2690 = vadd.f32 0.0, %v2689
      %v2691 = vpop.f32.mrf.mxu0
      %2692 = vmatprep.mubr.f32.mxu0 0.0
      %2693 = vmatmul.mubr.f32.gmra.mxu0 %v347
      %v2694 = vpop.f32.mrf.mxu0
      %v2695 = vadd.f32 0.0, %v2694
      %v2696 = vpop.f32.mrf.mxu0
      %2697 = vmatprep.mubr.f32.mxu0 0.0
      %2698 = vmatmul.mubr.f32.gmra.mxu0 %v348
      %v2699 = vpop.f32.mrf.mxu0
      %v2700 = vadd.f32 0.0, %v2699
      %v2701 = vpop.f32.mrf.mxu0
      %2702 = vmatprep.mubr.f32.mxu0 0.0
      %2703 = vmatmul.mubr.f32.gmra.mxu0 %v349
      %v2704 = vpop.f32.mrf.mxu0
      %v2705 = vadd.f32 0.0, %v2704
      %v2706 = vpop.f32.mrf.mxu0
      %2707 = vmatprep.mubr.f32.mxu0 0.0
      %2708 = vmatmul.mubr.f32.gmra.mxu0 %v350
      %v2709 = vpop.f32.mrf.mxu0
      %v2710 = vadd.f32 0.0, %v2709
      %v2711 = vpop.f32.mrf.mxu0
      %2712 = vmatprep.mubr.f32.mxu0 0.0
      %2713 = vmatmul.mubr.f32.gmra.mxu0 %v351
      %v2714 = vpop.f32.mrf.mxu0
      %v2715 = vadd.f32 0.0, %v2714
      %v2716 = vpop.f32.mrf.mxu0
      %2717 = vmatprep.mubr.f32.mxu0 0.0
      %2718 = vmatmul.mubr.f32.gmra.mxu0 %v352
      %v2719 = vpop.f32.mrf.mxu0
      %v2720 = vadd.f32 0.0, %v2719
      %v2721 = vpop.f32.mrf.mxu0
      %2722 = vmatprep.mubr.f32.mxu0 0.0
      %2723 = vmatmul.mubr.f32.gmra.mxu0 %v353
      %v2724 = vpop.f32.mrf.mxu0
      %v2725 = vadd.f32 0.0, %v2724
      %v2726 = vpop.f32.mrf.mxu0
      %2727 = vmatprep.mubr.f32.mxu0 0.0
      %2728 = vmatmul.mubr.f32.gmra.mxu0 %v354
      %v2729 = vpop.f32.mrf.mxu0
      %v2730 = vadd.f32 0.0, %v2729
      %v2731 = vpop.f32.mrf.mxu0
      %2732 = vmatprep.mubr.f32.mxu0 0.0
      %2733 = vmatmul.mubr.f32.gmra.mxu0 %v355
      %v2734 = vpop.f32.mrf.mxu0
      %v2735 = vadd.f32 0.0, %v2734
      %v2736 = vpop.f32.mrf.mxu0
      %2737 = vmatprep.mubr.f32.mxu0 0.0
      %2738 = vmatmul.mubr.f32.gmra.mxu0 %v356
      %v2739 = vpop.f32.mrf.mxu0
      %v2740 = vadd.f32 0.0, %v2739
      %v2741 = vpop.f32.mrf.mxu0
      %2742 = vmatprep.mubr.f32.mxu0 0.0
      %2743 = vmatmul.mubr.f32.gmra.mxu0 %v357
      %v2744 = vpop.f32.mrf.mxu0
      %v2745 = vadd.f32 0.0, %v2744
      %v2746 = vpop.f32.mrf.mxu0
      %2747 = vmatprep.mubr.f32.mxu0 0.0
      %2748 = vmatmul.mubr.f32.gmra.mxu0 %v358
      %v2749 = vpop.f32.mrf.mxu0
      %v2750 = vadd.f32 0.0, %v2749
      %v2751 = vpop.f32.mrf.mxu0
      %2752 = vmatprep.mubr.f32.mxu0 0.0
      %2753 = vmatmul.mubr.f32.gmra.mxu0 %v359
      %v2754 = vpop.f32.mrf.mxu0
      %v2755 = vadd.f32 0.0, %v2754
      %v2756 = vpop.f32.mrf.mxu0
      %2757 = vmatprep.mubr.f32.mxu0 0.0
      %2758 = vmatmul.mubr.f32.gmra.mxu0 %v360
      %v2759 = vpop.f32.mrf.mxu0
      %v2760 = vadd.f32 0.0, %v2759
      %v2761 = vpop.f32.mrf.mxu0
      %2762 = vmatprep.mubr.f32.mxu0 0.0
      %2763 = vmatmul.mubr.f32.gmra.mxu0 %v361
      %v2764 = vpop.f32.mrf.mxu0
      %v2765 = vadd.f32 0.0, %v2764
      %v2766 = vpop.f32.mrf.mxu0
      %2767 = vmatprep.mubr.f32.mxu0 0.0
      %2768 = vmatmul.mubr.f32.gmra.mxu0 %v362
      %v2769 = vpop.f32.mrf.mxu0
      %v2770 = vadd.f32 0.0, %v2769
      %v2771 = vpop.f32.mrf.mxu0
      %2772 = vmatprep.mubr.f32.mxu0 0.0
      %2773 = vmatmul.mubr.f32.gmra.mxu0 %v363
      %v2774 = vpop.f32.mrf.mxu0
      %v2775 = vadd.f32 0.0, %v2774
      %v2776 = vpop.f32.mrf.mxu0
      %2777 = vmatprep.mubr.f32.mxu0 0.0
      %2778 = vmatmul.mubr.f32.gmra.mxu0 %v364
      %v2779 = vpop.f32.mrf.mxu0
      %v2780 = vadd.f32 0.0, %v2779
      %v2781 = vpop.f32.mrf.mxu0
      %2782 = vmatprep.mubr.f32.mxu0 0.0
      %2783 = vmatmul.mubr.f32.gmra.mxu0 %v365
      %v2784 = vpop.f32.mrf.mxu0
      %v2785 = vadd.f32 0.0, %v2784
      %v2786 = vpop.f32.mrf.mxu0
      %2787 = vmatprep.mubr.f32.mxu0 0.0
      %2788 = vmatmul.mubr.f32.gmra.mxu0 %v366
      %v2789 = vpop.f32.mrf.mxu0
      %v2790 = vadd.f32 0.0, %v2789
      %v2791 = vpop.f32.mrf.mxu0
      %2792 = vmatprep.mubr.f32.mxu0 0.0
      %2793 = vmatmul.mubr.f32.gmra.mxu0 %v367
      %v2794 = vpop.f32.mrf.mxu0
      %v2795 = vadd.f32 0.0, %v2794
      %v2796 = vpop.f32.mrf.mxu0
      %2797 = vmatprep.mubr.f32.mxu0 0.0
      %2798 = vmatmul.mubr.f32.gmra.mxu0 %v368
      %v2799 = vpop.f32.mrf.mxu0
      %v2800 = vadd.f32 0.0, %v2799
      %v2801 = vpop.f32.mrf.mxu0
      %2802 = vmatprep.mubr.f32.mxu0 0.0
      %2803 = vmatmul.mubr.f32.gmra.mxu0 %v369
      %v2804 = vpop.f32.mrf.mxu0
      %v2805 = vadd.f32 0.0, %v2804
      %v2806 = vpop.f32.mrf.mxu0
      %2807 = vdwg.mxu0
      %2808 = vst.msk [vmem:[%s336] sm:$0xff] %vm611, %v2650
      %2809 = vst.msk [vmem:[%s336 + $0x8] sm:$0xff] %vm611, %v2655
      %2810 = vst.msk [vmem:[%s336 + $0x10] sm:$0xff] %vm611, %v2660
      %2811 = vst.msk [vmem:[%s336 + $0x18] sm:$0xff] %vm611, %v2665
      %2812 = vst.msk [vmem:[%s336 + $0x20] sm:$0xff] %vm611, %v2670
      %2813 = vst.msk [vmem:[%s336 + $0x28] sm:$0xff] %vm611, %v2675
      %2814 = vst.msk [vmem:[%s336 + $0x30] sm:$0xff] %vm611, %v2680
      %2815 = vst.msk [vmem:[%s336 + $0x38] sm:$0xff] %vm611, %v2685
      %2816 = vst.msk [vmem:[%s336 + $0x40] sm:$0xff] %vm611, %v2690
      %2817 = vst.msk [vmem:[%s336 + $0x48] sm:$0xff] %vm611, %v2695
      %2818 = vst.msk [vmem:[%s336 + $0x50] sm:$0xff] %vm611, %v2700
      %2819 = vst.msk [vmem:[%s336 + $0x58] sm:$0xff] %vm611, %v2705
      %2820 = vst.msk [vmem:[%s336 + $0x60] sm:$0xff] %vm611, %v2710
      %2821 = vst.msk [vmem:[%s336 + $0x68] sm:$0xff] %vm611, %v2715
      %2822 = vst.msk [vmem:[%s336 + $0x70] sm:$0xff] %vm611, %v2720
      %2823 = vst.msk [vmem:[%s336 + $0x78] sm:$0xff] %vm611, %v2725
      %2824 = vst.msk [vmem:[%s336 + $0x80] sm:$0xff] %vm611, %v2730
      %2825 = vst.msk [vmem:[%s336 + $0x88] sm:$0xff] %vm611, %v2735
      %2826 = vst.msk [vmem:[%s336 + $0x90] sm:$0xff] %vm611, %v2740
      %2827 = vst.msk [vmem:[%s336 + $0x98] sm:$0xff] %vm611, %v2745
      %2828 = vst.msk [vmem:[%s336 + $0xa0] sm:$0xff] %vm611, %v2750
      %2829 = vst.msk [vmem:[%s336 + $0xa8] sm:$0xff] %vm611, %v2755
      %2830 = vst.msk [vmem:[%s336 + $0xb0] sm:$0xff] %vm611, %v2760
      %2831 = vst.msk [vmem:[%s336 + $0xb8] sm:$0xff] %vm611, %v2765
      %2832 = vst.msk [vmem:[%s336 + $0xc0] sm:$0xff] %vm611, %v2770
      %2833 = vst.msk [vmem:[%s336 + $0xc8] sm:$0xff] %vm611, %v2775
      %2834 = vst.msk [vmem:[%s336 + $0xd0] sm:$0xff] %vm611, %v2780
      %2835 = vst.msk [vmem:[%s336 + $0xd8] sm:$0xff] %vm611, %v2785
      %2836 = vst.msk [vmem:[%s336 + $0xe0] sm:$0xff] %vm611, %v2790
      %2837 = vst.msk [vmem:[%s336 + $0xe8] sm:$0xff] %vm611, %v2795
      %2838 = vst.msk [vmem:[%s336 + $0xf0] sm:$0xff] %vm611, %v2800
      %2839 = vst.msk [vmem:[%s336 + $0xf8] sm:$0xff] %vm611, %v2805
      %s2840 = scalar_lea.vmem %s3, 128
      %v2841 = vld [vmem:[%s2840] sm:$0xff]
      %v2842 = vld [vmem:[%s2840 + $0x8] sm:$0xff]
      %v2843 = vld [vmem:[%s2840 + $0x10] sm:$0xff]
      %v2844 = vld [vmem:[%s2840 + $0x18] sm:$0xff]
      %v2845 = vld [vmem:[%s2840 + $0x20] sm:$0xff]
      %v2846 = vld [vmem:[%s2840 + $0x28] sm:$0xff]
      %v2847 = vld [vmem:[%s2840 + $0x30] sm:$0xff]
      %v2848 = vld [vmem:[%s2840 + $0x38] sm:$0xff]
      %v2849 = vld [vmem:[%s2840 + $0x40] sm:$0xff]
      %v2850 = vld [vmem:[%s2840 + $0x48] sm:$0xff]
      %v2851 = vld [vmem:[%s2840 + $0x50] sm:$0xff]
      %v2852 = vld [vmem:[%s2840 + $0x58] sm:$0xff]
      %v2853 = vld [vmem:[%s2840 + $0x60] sm:$0xff]
      %v2854 = vld [vmem:[%s2840 + $0x68] sm:$0xff]
      %v2855 = vld [vmem:[%s2840 + $0x70] sm:$0xff]
      %v2856 = vld [vmem:[%s2840 + $0x78] sm:$0xff]
      %2857 = vmatprep.subr.mxu0 0.0
      %2858 = vmatpush1.msra.mxu0 %v2856
      %2859 = vmatprep.subr.mxu0 0.0
      %2860 = vmatpush1.msra.mxu0 %v2855
      %2861 = vmatprep.subr.mxu0 0.0
      %2862 = vmatpush1.msra.mxu0 %v2854
      %2863 = vmatprep.subr.mxu0 0.0
      %2864 = vmatpush1.msra.mxu0 %v2853
      %2865 = vmatprep.subr.mxu0 0.0
      %2866 = vmatpush1.msra.mxu0 %v2852
      %2867 = vmatprep.subr.mxu0 0.0
      %2868 = vmatpush1.msra.mxu0 %v2851
      %2869 = vmatprep.subr.mxu0 0.0
      %2870 = vmatpush1.msra.mxu0 %v2850
      %2871 = vmatprep.subr.mxu0 0.0
      %2872 = vmatpush1.msra.mxu0 %v2849
      %2873 = vmatprep.subr.mxu0 0.0
      %2874 = vmatpush1.msra.mxu0 %v2848
      %2875 = vmatprep.subr.mxu0 0.0
      %2876 = vmatpush1.msra.mxu0 %v2847
      %2877 = vmatprep.subr.mxu0 0.0
      %2878 = vmatpush1.msra.mxu0 %v2846
      %2879 = vmatprep.subr.mxu0 0.0
      %2880 = vmatpush1.msra.mxu0 %v2845
      %2881 = vmatprep.subr.mxu0 0.0
      %2882 = vmatpush1.msra.mxu0 %v2844
      %2883 = vmatprep.subr.mxu0 0.0
      %2884 = vmatpush1.msra.mxu0 %v2843
      %2885 = vmatprep.subr.mxu0 0.0
      %2886 = vmatpush1.msra.mxu0 %v2842
      %2887 = vmatprep.subr.mxu0 0.0
      %2888 = vmatpush1.msra.mxu0 %v2841
      %2889 = vmatprep.subr.mxu0 0.0
      %2890 = vmatpush2.msra.mxu0 0.0
      %2891 = vmatprep.subr.mxu0 0.0
      %2892 = vmatpush2.msra.mxu0 0.0
      %2893 = vmatprep.subr.mxu0 0.0
      %2894 = vmatpush2.msra.mxu0 0.0
      %2895 = vmatprep.subr.mxu0 0.0
      %2896 = vmatpush2.msra.mxu0 0.0
      %2897 = vmatprep.subr.mxu0 0.0
      %2898 = vmatpush2.msra.mxu0 0.0
      %2899 = vmatprep.subr.mxu0 0.0
      %2900 = vmatpush2.msra.mxu0 0.0
      %2901 = vmatprep.subr.mxu0 0.0
      %2902 = vmatpush2.msra.mxu0 0.0
      %2903 = vmatprep.subr.mxu0 0.0
      %2904 = vmatpush2.msra.mxu0 0.0
      %2905 = vmatprep.subr.mxu0 0.0
      %2906 = vmatpush2.msra.mxu0 0.0
      %2907 = vmatprep.subr.mxu0 0.0
      %2908 = vmatpush2.msra.mxu0 0.0
      %2909 = vmatprep.subr.mxu0 0.0
      %2910 = vmatpush2.msra.mxu0 0.0
      %2911 = vmatprep.subr.mxu0 0.0
      %2912 = vmatpush2.msra.mxu0 0.0
      %2913 = vmatprep.subr.mxu0 0.0
      %2914 = vmatpush2.msra.mxu0 0.0
      %2915 = vmatprep.subr.mxu0 0.0
      %2916 = vmatpush2.msra.mxu0 0.0
      %2917 = vmatprep.subr.mxu0 0.0
      %2918 = vmatpush2.msra.mxu0 0.0
      %2919 = vmatprep.subr.mxu0 0.0
      %2920 = vmatpush2.msra.mxu0 0.0
      %2921 = vmatprep.mubr.f32.mxu0 0.0
      %2922 = vmatmul.mubr.f32.gmra.mxu0 %v338
      %v2923 = vpop.f32.mrf.mxu0
      %v2924 = vadd.f32 0.0, %v2923
      %v2925 = vpop.f32.mrf.mxu0
      %2926 = vmatprep.mubr.f32.mxu0 0.0
      %2927 = vmatmul.mubr.f32.gmra.mxu0 %v339
      %v2928 = vpop.f32.mrf.mxu0
      %v2929 = vadd.f32 0.0, %v2928
      %v2930 = vpop.f32.mrf.mxu0
      %2931 = vmatprep.mubr.f32.mxu0 0.0
      %2932 = vmatmul.mubr.f32.gmra.mxu0 %v340
      %v2933 = vpop.f32.mrf.mxu0
      %v2934 = vadd.f32 0.0, %v2933
      %v2935 = vpop.f32.mrf.mxu0
      %2936 = vmatprep.mubr.f32.mxu0 0.0
      %2937 = vmatmul.mubr.f32.gmra.mxu0 %v341
      %v2938 = vpop.f32.mrf.mxu0
      %v2939 = vadd.f32 0.0, %v2938
      %v2940 = vpop.f32.mrf.mxu0
      %2941 = vmatprep.mubr.f32.mxu0 0.0
      %2942 = vmatmul.mubr.f32.gmra.mxu0 %v342
      %v2943 = vpop.f32.mrf.mxu0
      %v2944 = vadd.f32 0.0, %v2943
      %v2945 = vpop.f32.mrf.mxu0
      %2946 = vmatprep.mubr.f32.mxu0 0.0
      %2947 = vmatmul.mubr.f32.gmra.mxu0 %v343
      %v2948 = vpop.f32.mrf.mxu0
      %v2949 = vadd.f32 0.0, %v2948
      %v2950 = vpop.f32.mrf.mxu0
      %2951 = vmatprep.mubr.f32.mxu0 0.0
      %2952 = vmatmul.mubr.f32.gmra.mxu0 %v344
      %v2953 = vpop.f32.mrf.mxu0
      %v2954 = vadd.f32 0.0, %v2953
      %v2955 = vpop.f32.mrf.mxu0
      %2956 = vmatprep.mubr.f32.mxu0 0.0
      %2957 = vmatmul.mubr.f32.gmra.mxu0 %v345
      %v2958 = vpop.f32.mrf.mxu0
      %v2959 = vadd.f32 0.0, %v2958
      %v2960 = vpop.f32.mrf.mxu0
      %2961 = vmatprep.mubr.f32.mxu0 0.0
      %2962 = vmatmul.mubr.f32.gmra.mxu0 %v346
      %v2963 = vpop.f32.mrf.mxu0
      %v2964 = vadd.f32 0.0, %v2963
      %v2965 = vpop.f32.mrf.mxu0
      %2966 = vmatprep.mubr.f32.mxu0 0.0
      %2967 = vmatmul.mubr.f32.gmra.mxu0 %v347
      %v2968 = vpop.f32.mrf.mxu0
      %v2969 = vadd.f32 0.0, %v2968
      %v2970 = vpop.f32.mrf.mxu0
      %2971 = vmatprep.mubr.f32.mxu0 0.0
      %2972 = vmatmul.mubr.f32.gmra.mxu0 %v348
      %v2973 = vpop.f32.mrf.mxu0
      %v2974 = vadd.f32 0.0, %v2973
      %v2975 = vpop.f32.mrf.mxu0
      %2976 = vmatprep.mubr.f32.mxu0 0.0
      %2977 = vmatmul.mubr.f32.gmra.mxu0 %v349
      %v2978 = vpop.f32.mrf.mxu0
      %v2979 = vadd.f32 0.0, %v2978
      %v2980 = vpop.f32.mrf.mxu0
      %2981 = vmatprep.mubr.f32.mxu0 0.0
      %2982 = vmatmul.mubr.f32.gmra.mxu0 %v350
      %v2983 = vpop.f32.mrf.mxu0
      %v2984 = vadd.f32 0.0, %v2983
      %v2985 = vpop.f32.mrf.mxu0
      %2986 = vmatprep.mubr.f32.mxu0 0.0
      %2987 = vmatmul.mubr.f32.gmra.mxu0 %v351
      %v2988 = vpop.f32.mrf.mxu0
      %v2989 = vadd.f32 0.0, %v2988
      %v2990 = vpop.f32.mrf.mxu0
      %2991 = vmatprep.mubr.f32.mxu0 0.0
      %2992 = vmatmul.mubr.f32.gmra.mxu0 %v352
      %v2993 = vpop.f32.mrf.mxu0
      %v2994 = vadd.f32 0.0, %v2993
      %v2995 = vpop.f32.mrf.mxu0
      %2996 = vmatprep.mubr.f32.mxu0 0.0
      %2997 = vmatmul.mubr.f32.gmra.mxu0 %v353
      %v2998 = vpop.f32.mrf.mxu0
      %v2999 = vadd.f32 0.0, %v2998
      %v3000 = vpop.f32.mrf.mxu0
      %3001 = vmatprep.mubr.f32.mxu0 0.0
      %3002 = vmatmul.mubr.f32.gmra.mxu0 %v354
      %v3003 = vpop.f32.mrf.mxu0
      %v3004 = vadd.f32 0.0, %v3003
      %v3005 = vpop.f32.mrf.mxu0
      %3006 = vmatprep.mubr.f32.mxu0 0.0
      %3007 = vmatmul.mubr.f32.gmra.mxu0 %v355
      %v3008 = vpop.f32.mrf.mxu0
      %v3009 = vadd.f32 0.0, %v3008
      %v3010 = vpop.f32.mrf.mxu0
      %3011 = vmatprep.mubr.f32.mxu0 0.0
      %3012 = vmatmul.mubr.f32.gmra.mxu0 %v356
      %v3013 = vpop.f32.mrf.mxu0
      %v3014 = vadd.f32 0.0, %v3013
      %v3015 = vpop.f32.mrf.mxu0
      %3016 = vmatprep.mubr.f32.mxu0 0.0
      %3017 = vmatmul.mubr.f32.gmra.mxu0 %v357
      %v3018 = vpop.f32.mrf.mxu0
      %v3019 = vadd.f32 0.0, %v3018
      %v3020 = vpop.f32.mrf.mxu0
      %3021 = vmatprep.mubr.f32.mxu0 0.0
      %3022 = vmatmul.mubr.f32.gmra.mxu0 %v358
      %v3023 = vpop.f32.mrf.mxu0
      %v3024 = vadd.f32 0.0, %v3023
      %v3025 = vpop.f32.mrf.mxu0
      %3026 = vmatprep.mubr.f32.mxu0 0.0
      %3027 = vmatmul.mubr.f32.gmra.mxu0 %v359
      %v3028 = vpop.f32.mrf.mxu0
      %v3029 = vadd.f32 0.0, %v3028
      %v3030 = vpop.f32.mrf.mxu0
      %3031 = vmatprep.mubr.f32.mxu0 0.0
      %3032 = vmatmul.mubr.f32.gmra.mxu0 %v360
      %v3033 = vpop.f32.mrf.mxu0
      %v3034 = vadd.f32 0.0, %v3033
      %v3035 = vpop.f32.mrf.mxu0
      %3036 = vmatprep.mubr.f32.mxu0 0.0
      %3037 = vmatmul.mubr.f32.gmra.mxu0 %v361
      %v3038 = vpop.f32.mrf.mxu0
      %v3039 = vadd.f32 0.0, %v3038
      %v3040 = vpop.f32.mrf.mxu0
      %3041 = vmatprep.mubr.f32.mxu0 0.0
      %3042 = vmatmul.mubr.f32.gmra.mxu0 %v362
      %v3043 = vpop.f32.mrf.mxu0
      %v3044 = vadd.f32 0.0, %v3043
      %v3045 = vpop.f32.mrf.mxu0
      %3046 = vmatprep.mubr.f32.mxu0 0.0
      %3047 = vmatmul.mubr.f32.gmra.mxu0 %v363
      %v3048 = vpop.f32.mrf.mxu0
      %v3049 = vadd.f32 0.0, %v3048
      %v3050 = vpop.f32.mrf.mxu0
      %3051 = vmatprep.mubr.f32.mxu0 0.0
      %3052 = vmatmul.mubr.f32.gmra.mxu0 %v364
      %v3053 = vpop.f32.mrf.mxu0
      %v3054 = vadd.f32 0.0, %v3053
      %v3055 = vpop.f32.mrf.mxu0
      %3056 = vmatprep.mubr.f32.mxu0 0.0
      %3057 = vmatmul.mubr.f32.gmra.mxu0 %v365
      %v3058 = vpop.f32.mrf.mxu0
      %v3059 = vadd.f32 0.0, %v3058
      %v3060 = vpop.f32.mrf.mxu0
      %3061 = vmatprep.mubr.f32.mxu0 0.0
      %3062 = vmatmul.mubr.f32.gmra.mxu0 %v366
      %v3063 = vpop.f32.mrf.mxu0
      %v3064 = vadd.f32 0.0, %v3063
      %v3065 = vpop.f32.mrf.mxu0
      %3066 = vmatprep.mubr.f32.mxu0 0.0
      %3067 = vmatmul.mubr.f32.gmra.mxu0 %v367
      %v3068 = vpop.f32.mrf.mxu0
      %v3069 = vadd.f32 0.0, %v3068
      %v3070 = vpop.f32.mrf.mxu0
      %3071 = vmatprep.mubr.f32.mxu0 0.0
      %3072 = vmatmul.mubr.f32.gmra.mxu0 %v368
      %v3073 = vpop.f32.mrf.mxu0
      %v3074 = vadd.f32 0.0, %v3073
      %v3075 = vpop.f32.mrf.mxu0
      %3076 = vmatprep.mubr.f32.mxu0 0.0
      %3077 = vmatmul.mubr.f32.gmra.mxu0 %v369
      %v3078 = vpop.f32.mrf.mxu0
      %v3079 = vadd.f32 0.0, %v3078
      %v3080 = vpop.f32.mrf.mxu0
      %3081 = vdwg.mxu0
      %s3082 = scalar_lea.vmem %s336, 256
      %3083 = vst.msk [vmem:[%s3082] sm:$0xff] %vm611, %v2924
      %3084 = vst.msk [vmem:[%s3082 + $0x8] sm:$0xff] %vm611, %v2929
      %3085 = vst.msk [vmem:[%s3082 + $0x10] sm:$0xff] %vm611, %v2934
      %3086 = vst.msk [vmem:[%s3082 + $0x18] sm:$0xff] %vm611, %v2939
      %3087 = vst.msk [vmem:[%s3082 + $0x20] sm:$0xff] %vm611, %v2944
      %3088 = vst.msk [vmem:[%s3082 + $0x28] sm:$0xff] %vm611, %v2949
      %3089 = vst.msk [vmem:[%s3082 + $0x30] sm:$0xff] %vm611, %v2954
      %3090 = vst.msk [vmem:[%s3082 + $0x38] sm:$0xff] %vm611, %v2959
      %3091 = vst.msk [vmem:[%s3082 + $0x40] sm:$0xff] %vm611, %v2964
      %3092 = vst.msk [vmem:[%s3082 + $0x48] sm:$0xff] %vm611, %v2969
      %3093 = vst.msk [vmem:[%s3082 + $0x50] sm:$0xff] %vm611, %v2974
      %3094 = vst.msk [vmem:[%s3082 + $0x58] sm:$0xff] %vm611, %v2979
      %3095 = vst.msk [vmem:[%s3082 + $0x60] sm:$0xff] %vm611, %v2984
      %3096 = vst.msk [vmem:[%s3082 + $0x68] sm:$0xff] %vm611, %v2989
      %3097 = vst.msk [vmem:[%s3082 + $0x70] sm:$0xff] %vm611, %v2994
      %3098 = vst.msk [vmem:[%s3082 + $0x78] sm:$0xff] %vm611, %v2999
      %3099 = vst.msk [vmem:[%s3082 + $0x80] sm:$0xff] %vm611, %v3004
      %3100 = vst.msk [vmem:[%s3082 + $0x88] sm:$0xff] %vm611, %v3009
      %3101 = vst.msk [vmem:[%s3082 + $0x90] sm:$0xff] %vm611, %v3014
      %3102 = vst.msk [vmem:[%s3082 + $0x98] sm:$0xff] %vm611, %v3019
      %3103 = vst.msk [vmem:[%s3082 + $0xa0] sm:$0xff] %vm611, %v3024
      %3104 = vst.msk [vmem:[%s3082 + $0xa8] sm:$0xff] %vm611, %v3029
      %3105 = vst.msk [vmem:[%s3082 + $0xb0] sm:$0xff] %vm611, %v3034
      %3106 = vst.msk [vmem:[%s3082 + $0xb8] sm:$0xff] %vm611, %v3039
      %3107 = vst.msk [vmem:[%s3082 + $0xc0] sm:$0xff] %vm611, %v3044
      %3108 = vst.msk [vmem:[%s3082 + $0xc8] sm:$0xff] %vm611, %v3049
      %3109 = vst.msk [vmem:[%s3082 + $0xd0] sm:$0xff] %vm611, %v3054
      %3110 = vst.msk [vmem:[%s3082 + $0xd8] sm:$0xff] %vm611, %v3059
      %3111 = vst.msk [vmem:[%s3082 + $0xe0] sm:$0xff] %vm611, %v3064
      %3112 = vst.msk [vmem:[%s3082 + $0xe8] sm:$0xff] %vm611, %v3069
      %3113 = vst.msk [vmem:[%s3082 + $0xf0] sm:$0xff] %vm611, %v3074
      %3114 = vst.msk [vmem:[%s3082 + $0xf8] sm:$0xff] %vm611, %v3079
      %s3115 = scalar_lea.vmem %s3, 256
      %v3116 = vld [vmem:[%s3115] sm:$0xff]
      %v3117 = vld [vmem:[%s3115 + $0x8] sm:$0xff]
      %v3118 = vld [vmem:[%s3115 + $0x10] sm:$0xff]
      %v3119 = vld [vmem:[%s3115 + $0x18] sm:$0xff]
      %v3120 = vld [vmem:[%s3115 + $0x20] sm:$0xff]
      %v3121 = vld [vmem:[%s3115 + $0x28] sm:$0xff]
      %v3122 = vld [vmem:[%s3115 + $0x30] sm:$0xff]
      %v3123 = vld [vmem:[%s3115 + $0x38] sm:$0xff]
      %v3124 = vld [vmem:[%s3115 + $0x40] sm:$0xff]
      %v3125 = vld [vmem:[%s3115 + $0x48] sm:$0xff]
      %v3126 = vld [vmem:[%s3115 + $0x50] sm:$0xff]
      %v3127 = vld [vmem:[%s3115 + $0x58] sm:$0xff]
      %v3128 = vld [vmem:[%s3115 + $0x60] sm:$0xff]
      %v3129 = vld [vmem:[%s3115 + $0x68] sm:$0xff]
      %v3130 = vld [vmem:[%s3115 + $0x70] sm:$0xff]
      %v3131 = vld [vmem:[%s3115 + $0x78] sm:$0xff]
      %3132 = vmatprep.subr.mxu0 0.0
      %3133 = vmatpush1.msra.mxu0 %v3131
      %3134 = vmatprep.subr.mxu0 0.0
      %3135 = vmatpush1.msra.mxu0 %v3130
      %3136 = vmatprep.subr.mxu0 0.0
      %3137 = vmatpush1.msra.mxu0 %v3129
      %3138 = vmatprep.subr.mxu0 0.0
      %3139 = vmatpush1.msra.mxu0 %v3128
      %3140 = vmatprep.subr.mxu0 0.0
      %3141 = vmatpush1.msra.mxu0 %v3127
      %3142 = vmatprep.subr.mxu0 0.0
      %3143 = vmatpush1.msra.mxu0 %v3126
      %3144 = vmatprep.subr.mxu0 0.0
      %3145 = vmatpush1.msra.mxu0 %v3125
      %3146 = vmatprep.subr.mxu0 0.0
      %3147 = vmatpush1.msra.mxu0 %v3124
      %3148 = vmatprep.subr.mxu0 0.0
      %3149 = vmatpush1.msra.mxu0 %v3123
      %3150 = vmatprep.subr.mxu0 0.0
      %3151 = vmatpush1.msra.mxu0 %v3122
      %3152 = vmatprep.subr.mxu0 0.0
      %3153 = vmatpush1.msra.mxu0 %v3121
      %3154 = vmatprep.subr.mxu0 0.0
      %3155 = vmatpush1.msra.mxu0 %v3120
      %3156 = vmatprep.subr.mxu0 0.0
      %3157 = vmatpush1.msra.mxu0 %v3119
      %3158 = vmatprep.subr.mxu0 0.0
      %3159 = vmatpush1.msra.mxu0 %v3118
      %3160 = vmatprep.subr.mxu0 0.0
      %3161 = vmatpush1.msra.mxu0 %v3117
      %3162 = vmatprep.subr.mxu0 0.0
      %3163 = vmatpush1.msra.mxu0 %v3116
      %3164 = vmatprep.subr.mxu0 0.0
      %3165 = vmatpush2.msra.mxu0 0.0
      %3166 = vmatprep.subr.mxu0 0.0
      %3167 = vmatpush2.msra.mxu0 0.0
      %3168 = vmatprep.subr.mxu0 0.0
      %3169 = vmatpush2.msra.mxu0 0.0
      %3170 = vmatprep.subr.mxu0 0.0
      %3171 = vmatpush2.msra.mxu0 0.0
      %3172 = vmatprep.subr.mxu0 0.0
      %3173 = vmatpush2.msra.mxu0 0.0
      %3174 = vmatprep.subr.mxu0 0.0
      %3175 = vmatpush2.msra.mxu0 0.0
      %3176 = vmatprep.subr.mxu0 0.0
      %3177 = vmatpush2.msra.mxu0 0.0
      %3178 = vmatprep.subr.mxu0 0.0
      %3179 = vmatpush2.msra.mxu0 0.0
      %3180 = vmatprep.subr.mxu0 0.0
      %3181 = vmatpush2.msra.mxu0 0.0
      %3182 = vmatprep.subr.mxu0 0.0
      %3183 = vmatpush2.msra.mxu0 0.0
      %3184 = vmatprep.subr.mxu0 0.0
      %3185 = vmatpush2.msra.mxu0 0.0
      %3186 = vmatprep.subr.mxu0 0.0
      %3187 = vmatpush2.msra.mxu0 0.0
      %3188 = vmatprep.subr.mxu0 0.0
      %3189 = vmatpush2.msra.mxu0 0.0
      %3190 = vmatprep.subr.mxu0 0.0
      %3191 = vmatpush2.msra.mxu0 0.0
      %3192 = vmatprep.subr.mxu0 0.0
      %3193 = vmatpush2.msra.mxu0 0.0
      %3194 = vmatprep.subr.mxu0 0.0
      %3195 = vmatpush2.msra.mxu0 0.0
      %3196 = vmatprep.mubr.f32.mxu0 0.0
      %3197 = vmatmul.mubr.f32.gmra.mxu0 %v338
      %v3198 = vpop.f32.mrf.mxu0
      %v3199 = vadd.f32 0.0, %v3198
      %v3200 = vpop.f32.mrf.mxu0
      %3201 = vmatprep.mubr.f32.mxu0 0.0
      %3202 = vmatmul.mubr.f32.gmra.mxu0 %v339
      %v3203 = vpop.f32.mrf.mxu0
      %v3204 = vadd.f32 0.0, %v3203
      %v3205 = vpop.f32.mrf.mxu0
      %3206 = vmatprep.mubr.f32.mxu0 0.0
      %3207 = vmatmul.mubr.f32.gmra.mxu0 %v340
      %v3208 = vpop.f32.mrf.mxu0
      %v3209 = vadd.f32 0.0, %v3208
      %v3210 = vpop.f32.mrf.mxu0
      %3211 = vmatprep.mubr.f32.mxu0 0.0
      %3212 = vmatmul.mubr.f32.gmra.mxu0 %v341
      %v3213 = vpop.f32.mrf.mxu0
      %v3214 = vadd.f32 0.0, %v3213
      %v3215 = vpop.f32.mrf.mxu0
      %3216 = vmatprep.mubr.f32.mxu0 0.0
      %3217 = vmatmul.mubr.f32.gmra.mxu0 %v342
      %v3218 = vpop.f32.mrf.mxu0
      %v3219 = vadd.f32 0.0, %v3218
      %v3220 = vpop.f32.mrf.mxu0
      %3221 = vmatprep.mubr.f32.mxu0 0.0
      %3222 = vmatmul.mubr.f32.gmra.mxu0 %v343
      %v3223 = vpop.f32.mrf.mxu0
      %v3224 = vadd.f32 0.0, %v3223
      %v3225 = vpop.f32.mrf.mxu0
      %3226 = vmatprep.mubr.f32.mxu0 0.0
      %3227 = vmatmul.mubr.f32.gmra.mxu0 %v344
      %v3228 = vpop.f32.mrf.mxu0
      %v3229 = vadd.f32 0.0, %v3228
      %v3230 = vpop.f32.mrf.mxu0
      %3231 = vmatprep.mubr.f32.mxu0 0.0
      %3232 = vmatmul.mubr.f32.gmra.mxu0 %v345
      %v3233 = vpop.f32.mrf.mxu0
      %v3234 = vadd.f32 0.0, %v3233
      %v3235 = vpop.f32.mrf.mxu0
      %3236 = vmatprep.mubr.f32.mxu0 0.0
      %3237 = vmatmul.mubr.f32.gmra.mxu0 %v346
      %v3238 = vpop.f32.mrf.mxu0
      %v3239 = vadd.f32 0.0, %v3238
      %v3240 = vpop.f32.mrf.mxu0
      %3241 = vmatprep.mubr.f32.mxu0 0.0
      %3242 = vmatmul.mubr.f32.gmra.mxu0 %v347
      %v3243 = vpop.f32.mrf.mxu0
      %v3244 = vadd.f32 0.0, %v3243
      %v3245 = vpop.f32.mrf.mxu0
      %3246 = vmatprep.mubr.f32.mxu0 0.0
      %3247 = vmatmul.mubr.f32.gmra.mxu0 %v348
      %v3248 = vpop.f32.mrf.mxu0
      %v3249 = vadd.f32 0.0, %v3248
      %v3250 = vpop.f32.mrf.mxu0
      %3251 = vmatprep.mubr.f32.mxu0 0.0
      %3252 = vmatmul.mubr.f32.gmra.mxu0 %v349
      %v3253 = vpop.f32.mrf.mxu0
      %v3254 = vadd.f32 0.0, %v3253
      %v3255 = vpop.f32.mrf.mxu0
      %3256 = vmatprep.mubr.f32.mxu0 0.0
      %3257 = vmatmul.mubr.f32.gmra.mxu0 %v350
      %v3258 = vpop.f32.mrf.mxu0
      %v3259 = vadd.f32 0.0, %v3258
      %v3260 = vpop.f32.mrf.mxu0
      %3261 = vmatprep.mubr.f32.mxu0 0.0
      %3262 = vmatmul.mubr.f32.gmra.mxu0 %v351
      %v3263 = vpop.f32.mrf.mxu0
      %v3264 = vadd.f32 0.0, %v3263
      %v3265 = vpop.f32.mrf.mxu0
      %3266 = vmatprep.mubr.f32.mxu0 0.0
      %3267 = vmatmul.mubr.f32.gmra.mxu0 %v352
      %v3268 = vpop.f32.mrf.mxu0
      %v3269 = vadd.f32 0.0, %v3268
      %v3270 = vpop.f32.mrf.mxu0
      %3271 = vmatprep.mubr.f32.mxu0 0.0
      %3272 = vmatmul.mubr.f32.gmra.mxu0 %v353
      %v3273 = vpop.f32.mrf.mxu0
      %v3274 = vadd.f32 0.0, %v3273
      %v3275 = vpop.f32.mrf.mxu0
      %3276 = vmatprep.mubr.f32.mxu0 0.0
      %3277 = vmatmul.mubr.f32.gmra.mxu0 %v354
      %v3278 = vpop.f32.mrf.mxu0
      %v3279 = vadd.f32 0.0, %v3278
      %v3280 = vpop.f32.mrf.mxu0
      %3281 = vmatprep.mubr.f32.mxu0 0.0
      %3282 = vmatmul.mubr.f32.gmra.mxu0 %v355
      %v3283 = vpop.f32.mrf.mxu0
      %v3284 = vadd.f32 0.0, %v3283
      %v3285 = vpop.f32.mrf.mxu0
      %3286 = vmatprep.mubr.f32.mxu0 0.0
      %3287 = vmatmul.mubr.f32.gmra.mxu0 %v356
      %v3288 = vpop.f32.mrf.mxu0
      %v3289 = vadd.f32 0.0, %v3288
      %v3290 = vpop.f32.mrf.mxu0
      %3291 = vmatprep.mubr.f32.mxu0 0.0
      %3292 = vmatmul.mubr.f32.gmra.mxu0 %v357
      %v3293 = vpop.f32.mrf.mxu0
      %v3294 = vadd.f32 0.0, %v3293
      %v3295 = vpop.f32.mrf.mxu0
      %3296 = vmatprep.mubr.f32.mxu0 0.0
      %3297 = vmatmul.mubr.f32.gmra.mxu0 %v358
      %v3298 = vpop.f32.mrf.mxu0
      %v3299 = vadd.f32 0.0, %v3298
      %v3300 = vpop.f32.mrf.mxu0
      %3301 = vmatprep.mubr.f32.mxu0 0.0
      %3302 = vmatmul.mubr.f32.gmra.mxu0 %v359
      %v3303 = vpop.f32.mrf.mxu0
      %v3304 = vadd.f32 0.0, %v3303
      %v3305 = vpop.f32.mrf.mxu0
      %3306 = vmatprep.mubr.f32.mxu0 0.0
      %3307 = vmatmul.mubr.f32.gmra.mxu0 %v360
      %v3308 = vpop.f32.mrf.mxu0
      %v3309 = vadd.f32 0.0, %v3308
      %v3310 = vpop.f32.mrf.mxu0
      %3311 = vmatprep.mubr.f32.mxu0 0.0
      %3312 = vmatmul.mubr.f32.gmra.mxu0 %v361
      %v3313 = vpop.f32.mrf.mxu0
      %v3314 = vadd.f32 0.0, %v3313
      %v3315 = vpop.f32.mrf.mxu0
      %3316 = vmatprep.mubr.f32.mxu0 0.0
      %3317 = vmatmul.mubr.f32.gmra.mxu0 %v362
      %v3318 = vpop.f32.mrf.mxu0
      %v3319 = vadd.f32 0.0, %v3318
      %v3320 = vpop.f32.mrf.mxu0
      %3321 = vmatprep.mubr.f32.mxu0 0.0
      %3322 = vmatmul.mubr.f32.gmra.mxu0 %v363
      %v3323 = vpop.f32.mrf.mxu0
      %v3324 = vadd.f32 0.0, %v3323
      %v3325 = vpop.f32.mrf.mxu0
      %3326 = vmatprep.mubr.f32.mxu0 0.0
      %3327 = vmatmul.mubr.f32.gmra.mxu0 %v364
      %v3328 = vpop.f32.mrf.mxu0
      %v3329 = vadd.f32 0.0, %v3328
      %v3330 = vpop.f32.mrf.mxu0
      %3331 = vmatprep.mubr.f32.mxu0 0.0
      %3332 = vmatmul.mubr.f32.gmra.mxu0 %v365
      %v3333 = vpop.f32.mrf.mxu0
      %v3334 = vadd.f32 0.0, %v3333
      %v3335 = vpop.f32.mrf.mxu0
      %3336 = vmatprep.mubr.f32.mxu0 0.0
      %3337 = vmatmul.mubr.f32.gmra.mxu0 %v366
      %v3338 = vpop.f32.mrf.mxu0
      %v3339 = vadd.f32 0.0, %v3338
      %v3340 = vpop.f32.mrf.mxu0
      %3341 = vmatprep.mubr.f32.mxu0 0.0
      %3342 = vmatmul.mubr.f32.gmra.mxu0 %v367
      %v3343 = vpop.f32.mrf.mxu0
      %v3344 = vadd.f32 0.0, %v3343
      %v3345 = vpop.f32.mrf.mxu0
      %3346 = vmatprep.mubr.f32.mxu0 0.0
      %3347 = vmatmul.mubr.f32.gmra.mxu0 %v368
      %v3348 = vpop.f32.mrf.mxu0
      %v3349 = vadd.f32 0.0, %v3348
      %v3350 = vpop.f32.mrf.mxu0
      %3351 = vmatprep.mubr.f32.mxu0 0.0
      %3352 = vmatmul.mubr.f32.gmra.mxu0 %v369
      %v3353 = vpop.f32.mrf.mxu0
      %v3354 = vadd.f32 0.0, %v3353
      %v3355 = vpop.f32.mrf.mxu0
      %3356 = vdwg.mxu0
      %s3357 = scalar_lea.vmem %s336, 512
      %3358 = vst.msk [vmem:[%s3357] sm:$0xff] %vm611, %v3199
      %3359 = vst.msk [vmem:[%s3357 + $0x8] sm:$0xff] %vm611, %v3204
      %3360 = vst.msk [vmem:[%s3357 + $0x10] sm:$0xff] %vm611, %v3209
      %3361 = vst.msk [vmem:[%s3357 + $0x18] sm:$0xff] %vm611, %v3214
      %3362 = vst.msk [vmem:[%s3357 + $0x20] sm:$0xff] %vm611, %v3219
      %3363 = vst.msk [vmem:[%s3357 + $0x28] sm:$0xff] %vm611, %v3224
      %3364 = vst.msk [vmem:[%s3357 + $0x30] sm:$0xff] %vm611, %v3229
      %3365 = vst.msk [vmem:[%s3357 + $0x38] sm:$0xff] %vm611, %v3234
      %3366 = vst.msk [vmem:[%s3357 + $0x40] sm:$0xff] %vm611, %v3239
      %3367 = vst.msk [vmem:[%s3357 + $0x48] sm:$0xff] %vm611, %v3244
      %3368 = vst.msk [vmem:[%s3357 + $0x50] sm:$0xff] %vm611, %v3249
      %3369 = vst.msk [vmem:[%s3357 + $0x58] sm:$0xff] %vm611, %v3254
      %3370 = vst.msk [vmem:[%s3357 + $0x60] sm:$0xff] %vm611, %v3259
      %3371 = vst.msk [vmem:[%s3357 + $0x68] sm:$0xff] %vm611, %v3264
      %3372 = vst.msk [vmem:[%s3357 + $0x70] sm:$0xff] %vm611, %v3269
      %3373 = vst.msk [vmem:[%s3357 + $0x78] sm:$0xff] %vm611, %v3274
      %3374 = vst.msk [vmem:[%s3357 + $0x80] sm:$0xff] %vm611, %v3279
      %3375 = vst.msk [vmem:[%s3357 + $0x88] sm:$0xff] %vm611, %v3284
      %3376 = vst.msk [vmem:[%s3357 + $0x90] sm:$0xff] %vm611, %v3289
      %3377 = vst.msk [vmem:[%s3357 + $0x98] sm:$0xff] %vm611, %v3294
      %3378 = vst.msk [vmem:[%s3357 + $0xa0] sm:$0xff] %vm611, %v3299
      %3379 = vst.msk [vmem:[%s3357 + $0xa8] sm:$0xff] %vm611, %v3304
      %3380 = vst.msk [vmem:[%s3357 + $0xb0] sm:$0xff] %vm611, %v3309
      %3381 = vst.msk [vmem:[%s3357 + $0xb8] sm:$0xff] %vm611, %v3314
      %3382 = vst.msk [vmem:[%s3357 + $0xc0] sm:$0xff] %vm611, %v3319
      %3383 = vst.msk [vmem:[%s3357 + $0xc8] sm:$0xff] %vm611, %v3324
      %3384 = vst.msk [vmem:[%s3357 + $0xd0] sm:$0xff] %vm611, %v3329
      %3385 = vst.msk [vmem:[%s3357 + $0xd8] sm:$0xff] %vm611, %v3334
      %3386 = vst.msk [vmem:[%s3357 + $0xe0] sm:$0xff] %vm611, %v3339
      %3387 = vst.msk [vmem:[%s3357 + $0xe8] sm:$0xff] %vm611, %v3344
      %3388 = vst.msk [vmem:[%s3357 + $0xf0] sm:$0xff] %vm611, %v3349
      %3389 = vst.msk [vmem:[%s3357 + $0xf8] sm:$0xff] %vm611, %v3354
      %s3390 = scalar_lea.vmem %s3, 384
      %v3391 = vld [vmem:[%s3390] sm:$0xff]
      %v3392 = vld [vmem:[%s3390 + $0x8] sm:$0xff]
      %v3393 = vld [vmem:[%s3390 + $0x10] sm:$0xff]
      %v3394 = vld [vmem:[%s3390 + $0x18] sm:$0xff]
      %v3395 = vld [vmem:[%s3390 + $0x20] sm:$0xff]
      %v3396 = vld [vmem:[%s3390 + $0x28] sm:$0xff]
      %v3397 = vld [vmem:[%s3390 + $0x30] sm:$0xff]
      %v3398 = vld [vmem:[%s3390 + $0x38] sm:$0xff]
      %v3399 = vld [vmem:[%s3390 + $0x40] sm:$0xff]
      %v3400 = vld [vmem:[%s3390 + $0x48] sm:$0xff]
      %v3401 = vld [vmem:[%s3390 + $0x50] sm:$0xff]
      %v3402 = vld [vmem:[%s3390 + $0x58] sm:$0xff]
      %v3403 = vld [vmem:[%s3390 + $0x60] sm:$0xff]
      %v3404 = vld [vmem:[%s3390 + $0x68] sm:$0xff]
      %v3405 = vld [vmem:[%s3390 + $0x70] sm:$0xff]
      %v3406 = vld [vmem:[%s3390 + $0x78] sm:$0xff]
      %3407 = vmatprep.subr.mxu0 0.0
      %3408 = vmatpush1.msra.mxu0 %v3406
      %3409 = vmatprep.subr.mxu0 0.0
      %3410 = vmatpush1.msra.mxu0 %v3405
      %3411 = vmatprep.subr.mxu0 0.0
      %3412 = vmatpush1.msra.mxu0 %v3404
      %3413 = vmatprep.subr.mxu0 0.0
      %3414 = vmatpush1.msra.mxu0 %v3403
      %3415 = vmatprep.subr.mxu0 0.0
      %3416 = vmatpush1.msra.mxu0 %v3402
      %3417 = vmatprep.subr.mxu0 0.0
      %3418 = vmatpush1.msra.mxu0 %v3401
      %3419 = vmatprep.subr.mxu0 0.0
      %3420 = vmatpush1.msra.mxu0 %v3400
      %3421 = vmatprep.subr.mxu0 0.0
      %3422 = vmatpush1.msra.mxu0 %v3399
      %3423 = vmatprep.subr.mxu0 0.0
      %3424 = vmatpush1.msra.mxu0 %v3398
      %3425 = vmatprep.subr.mxu0 0.0
      %3426 = vmatpush1.msra.mxu0 %v3397
      %3427 = vmatprep.subr.mxu0 0.0
      %3428 = vmatpush1.msra.mxu0 %v3396
      %3429 = vmatprep.subr.mxu0 0.0
      %3430 = vmatpush1.msra.mxu0 %v3395
      %3431 = vmatprep.subr.mxu0 0.0
      %3432 = vmatpush1.msra.mxu0 %v3394
      %3433 = vmatprep.subr.mxu0 0.0
      %3434 = vmatpush1.msra.mxu0 %v3393
      %3435 = vmatprep.subr.mxu0 0.0
      %3436 = vmatpush1.msra.mxu0 %v3392
      %3437 = vmatprep.subr.mxu0 0.0
      %3438 = vmatpush1.msra.mxu0 %v3391
      %3439 = vmatprep.subr.mxu0 0.0
      %3440 = vmatpush2.msra.mxu0 0.0
      %3441 = vmatprep.subr.mxu0 0.0
      %3442 = vmatpush2.msra.mxu0 0.0
      %3443 = vmatprep.subr.mxu0 0.0
      %3444 = vmatpush2.msra.mxu0 0.0
      %3445 = vmatprep.subr.mxu0 0.0
      %3446 = vmatpush2.msra.mxu0 0.0
      %3447 = vmatprep.subr.mxu0 0.0
      %3448 = vmatpush2.msra.mxu0 0.0
      %3449 = vmatprep.subr.mxu0 0.0
      %3450 = vmatpush2.msra.mxu0 0.0
      %3451 = vmatprep.subr.mxu0 0.0
      %3452 = vmatpush2.msra.mxu0 0.0
      %3453 = vmatprep.subr.mxu0 0.0
      %3454 = vmatpush2.msra.mxu0 0.0
      %3455 = vmatprep.subr.mxu0 0.0
      %3456 = vmatpush2.msra.mxu0 0.0
      %3457 = vmatprep.subr.mxu0 0.0
      %3458 = vmatpush2.msra.mxu0 0.0
      %3459 = vmatprep.subr.mxu0 0.0
      %3460 = vmatpush2.msra.mxu0 0.0
      %3461 = vmatprep.subr.mxu0 0.0
      %3462 = vmatpush2.msra.mxu0 0.0
      %3463 = vmatprep.subr.mxu0 0.0
      %3464 = vmatpush2.msra.mxu0 0.0
      %3465 = vmatprep.subr.mxu0 0.0
      %3466 = vmatpush2.msra.mxu0 0.0
      %3467 = vmatprep.subr.mxu0 0.0
      %3468 = vmatpush2.msra.mxu0 0.0
      %3469 = vmatprep.subr.mxu0 0.0
      %3470 = vmatpush2.msra.mxu0 0.0
      %3471 = vmatprep.mubr.f32.mxu0 0.0
      %3472 = vmatmul.mubr.f32.gmra.mxu0 %v338
      %v3473 = vpop.f32.mrf.mxu0
      %v3474 = vadd.f32 0.0, %v3473
      %v3475 = vpop.f32.mrf.mxu0
      %3476 = vmatprep.mubr.f32.mxu0 0.0
      %3477 = vmatmul.mubr.f32.gmra.mxu0 %v339
      %v3478 = vpop.f32.mrf.mxu0
      %v3479 = vadd.f32 0.0, %v3478
      %v3480 = vpop.f32.mrf.mxu0
      %3481 = vmatprep.mubr.f32.mxu0 0.0
      %3482 = vmatmul.mubr.f32.gmra.mxu0 %v340
      %v3483 = vpop.f32.mrf.mxu0
      %v3484 = vadd.f32 0.0, %v3483
      %v3485 = vpop.f32.mrf.mxu0
      %3486 = vmatprep.mubr.f32.mxu0 0.0
      %3487 = vmatmul.mubr.f32.gmra.mxu0 %v341
      %v3488 = vpop.f32.mrf.mxu0
      %v3489 = vadd.f32 0.0, %v3488
      %v3490 = vpop.f32.mrf.mxu0
      %3491 = vmatprep.mubr.f32.mxu0 0.0
      %3492 = vmatmul.mubr.f32.gmra.mxu0 %v342
      %v3493 = vpop.f32.mrf.mxu0
      %v3494 = vadd.f32 0.0, %v3493
      %v3495 = vpop.f32.mrf.mxu0
      %3496 = vmatprep.mubr.f32.mxu0 0.0
      %3497 = vmatmul.mubr.f32.gmra.mxu0 %v343
      %v3498 = vpop.f32.mrf.mxu0
      %v3499 = vadd.f32 0.0, %v3498
      %v3500 = vpop.f32.mrf.mxu0
      %3501 = vmatprep.mubr.f32.mxu0 0.0
      %3502 = vmatmul.mubr.f32.gmra.mxu0 %v344
      %v3503 = vpop.f32.mrf.mxu0
      %v3504 = vadd.f32 0.0, %v3503
      %v3505 = vpop.f32.mrf.mxu0
      %3506 = vmatprep.mubr.f32.mxu0 0.0
      %3507 = vmatmul.mubr.f32.gmra.mxu0 %v345
      %v3508 = vpop.f32.mrf.mxu0
      %v3509 = vadd.f32 0.0, %v3508
      %v3510 = vpop.f32.mrf.mxu0
      %3511 = vmatprep.mubr.f32.mxu0 0.0
      %3512 = vmatmul.mubr.f32.gmra.mxu0 %v346
      %v3513 = vpop.f32.mrf.mxu0
      %v3514 = vadd.f32 0.0, %v3513
      %v3515 = vpop.f32.mrf.mxu0
      %3516 = vmatprep.mubr.f32.mxu0 0.0
      %3517 = vmatmul.mubr.f32.gmra.mxu0 %v347
      %v3518 = vpop.f32.mrf.mxu0
      %v3519 = vadd.f32 0.0, %v3518
      %v3520 = vpop.f32.mrf.mxu0
      %3521 = vmatprep.mubr.f32.mxu0 0.0
      %3522 = vmatmul.mubr.f32.gmra.mxu0 %v348
      %v3523 = vpop.f32.mrf.mxu0
      %v3524 = vadd.f32 0.0, %v3523
      %v3525 = vpop.f32.mrf.mxu0
      %3526 = vmatprep.mubr.f32.mxu0 0.0
      %3527 = vmatmul.mubr.f32.gmra.mxu0 %v349
      %v3528 = vpop.f32.mrf.mxu0
      %v3529 = vadd.f32 0.0, %v3528
      %v3530 = vpop.f32.mrf.mxu0
      %3531 = vmatprep.mubr.f32.mxu0 0.0
      %3532 = vmatmul.mubr.f32.gmra.mxu0 %v350
      %v3533 = vpop.f32.mrf.mxu0
      %v3534 = vadd.f32 0.0, %v3533
      %v3535 = vpop.f32.mrf.mxu0
      %3536 = vmatprep.mubr.f32.mxu0 0.0
      %3537 = vmatmul.mubr.f32.gmra.mxu0 %v351
      %v3538 = vpop.f32.mrf.mxu0
      %v3539 = vadd.f32 0.0, %v3538
      %v3540 = vpop.f32.mrf.mxu0
      %3541 = vmatprep.mubr.f32.mxu0 0.0
      %3542 = vmatmul.mubr.f32.gmra.mxu0 %v352
      %v3543 = vpop.f32.mrf.mxu0
      %v3544 = vadd.f32 0.0, %v3543
      %v3545 = vpop.f32.mrf.mxu0
      %3546 = vmatprep.mubr.f32.mxu0 0.0
      %3547 = vmatmul.mubr.f32.gmra.mxu0 %v353
      %v3548 = vpop.f32.mrf.mxu0
      %v3549 = vadd.f32 0.0, %v3548
      %v3550 = vpop.f32.mrf.mxu0
      %3551 = vmatprep.mubr.f32.mxu0 0.0
      %3552 = vmatmul.mubr.f32.gmra.mxu0 %v354
      %v3553 = vpop.f32.mrf.mxu0
      %v3554 = vadd.f32 0.0, %v3553
      %v3555 = vpop.f32.mrf.mxu0
      %3556 = vmatprep.mubr.f32.mxu0 0.0
      %3557 = vmatmul.mubr.f32.gmra.mxu0 %v355
      %v3558 = vpop.f32.mrf.mxu0
      %v3559 = vadd.f32 0.0, %v3558
      %v3560 = vpop.f32.mrf.mxu0
      %3561 = vmatprep.mubr.f32.mxu0 0.0
      %3562 = vmatmul.mubr.f32.gmra.mxu0 %v356
      %v3563 = vpop.f32.mrf.mxu0
      %v3564 = vadd.f32 0.0, %v3563
      %v3565 = vpop.f32.mrf.mxu0
      %3566 = vmatprep.mubr.f32.mxu0 0.0
      %3567 = vmatmul.mubr.f32.gmra.mxu0 %v357
      %v3568 = vpop.f32.mrf.mxu0
      %v3569 = vadd.f32 0.0, %v3568
      %v3570 = vpop.f32.mrf.mxu0
      %3571 = vmatprep.mubr.f32.mxu0 0.0
      %3572 = vmatmul.mubr.f32.gmra.mxu0 %v358
      %v3573 = vpop.f32.mrf.mxu0
      %v3574 = vadd.f32 0.0, %v3573
      %v3575 = vpop.f32.mrf.mxu0
      %3576 = vmatprep.mubr.f32.mxu0 0.0
      %3577 = vmatmul.mubr.f32.gmra.mxu0 %v359
      %v3578 = vpop.f32.mrf.mxu0
      %v3579 = vadd.f32 0.0, %v3578
      %v3580 = vpop.f32.mrf.mxu0
      %3581 = vmatprep.mubr.f32.mxu0 0.0
      %3582 = vmatmul.mubr.f32.gmra.mxu0 %v360
      %v3583 = vpop.f32.mrf.mxu0
      %v3584 = vadd.f32 0.0, %v3583
      %v3585 = vpop.f32.mrf.mxu0
      %3586 = vmatprep.mubr.f32.mxu0 0.0
      %3587 = vmatmul.mubr.f32.gmra.mxu0 %v361
      %v3588 = vpop.f32.mrf.mxu0
      %v3589 = vadd.f32 0.0, %v3588
      %v3590 = vpop.f32.mrf.mxu0
      %3591 = vmatprep.mubr.f32.mxu0 0.0
      %3592 = vmatmul.mubr.f32.gmra.mxu0 %v362
      %v3593 = vpop.f32.mrf.mxu0
      %v3594 = vadd.f32 0.0, %v3593
      %v3595 = vpop.f32.mrf.mxu0
      %3596 = vmatprep.mubr.f32.mxu0 0.0
      %3597 = vmatmul.mubr.f32.gmra.mxu0 %v363
      %v3598 = vpop.f32.mrf.mxu0
      %v3599 = vadd.f32 0.0, %v3598
      %v3600 = vpop.f32.mrf.mxu0
      %3601 = vmatprep.mubr.f32.mxu0 0.0
      %3602 = vmatmul.mubr.f32.gmra.mxu0 %v364
      %v3603 = vpop.f32.mrf.mxu0
      %v3604 = vadd.f32 0.0, %v3603
      %v3605 = vpop.f32.mrf.mxu0
      %3606 = vmatprep.mubr.f32.mxu0 0.0
      %3607 = vmatmul.mubr.f32.gmra.mxu0 %v365
      %v3608 = vpop.f32.mrf.mxu0
      %v3609 = vadd.f32 0.0, %v3608
      %v3610 = vpop.f32.mrf.mxu0
      %3611 = vmatprep.mubr.f32.mxu0 0.0
      %3612 = vmatmul.mubr.f32.gmra.mxu0 %v366
      %v3613 = vpop.f32.mrf.mxu0
      %v3614 = vadd.f32 0.0, %v3613
      %v3615 = vpop.f32.mrf.mxu0
      %3616 = vmatprep.mubr.f32.mxu0 0.0
      %3617 = vmatmul.mubr.f32.gmra.mxu0 %v367
      %v3618 = vpop.f32.mrf.mxu0
      %v3619 = vadd.f32 0.0, %v3618
      %v3620 = vpop.f32.mrf.mxu0
      %3621 = vmatprep.mubr.f32.mxu0 0.0
      %3622 = vmatmul.mubr.f32.gmra.mxu0 %v368
      %v3623 = vpop.f32.mrf.mxu0
      %v3624 = vadd.f32 0.0, %v3623
      %v3625 = vpop.f32.mrf.mxu0
      %3626 = vmatprep.mubr.f32.mxu0 0.0
      %3627 = vmatmul.mubr.f32.gmra.mxu0 %v369
      %v3628 = vpop.f32.mrf.mxu0
      %v3629 = vadd.f32 0.0, %v3628
      %v3630 = vpop.f32.mrf.mxu0
      %3631 = vdwg.mxu0
      %s3632 = scalar_lea.vmem %s336, 768
      %3633 = vst.msk [vmem:[%s3632] sm:$0xff] %vm611, %v3474
      %3634 = vst.msk [vmem:[%s3632 + $0x8] sm:$0xff] %vm611, %v3479
      %3635 = vst.msk [vmem:[%s3632 + $0x10] sm:$0xff] %vm611, %v3484
      %3636 = vst.msk [vmem:[%s3632 + $0x18] sm:$0xff] %vm611, %v3489
      %3637 = vst.msk [vmem:[%s3632 + $0x20] sm:$0xff] %vm611, %v3494
      %3638 = vst.msk [vmem:[%s3632 + $0x28] sm:$0xff] %vm611, %v3499
      %3639 = vst.msk [vmem:[%s3632 + $0x30] sm:$0xff] %vm611, %v3504
      %3640 = vst.msk [vmem:[%s3632 + $0x38] sm:$0xff] %vm611, %v3509
      %3641 = vst.msk [vmem:[%s3632 + $0x40] sm:$0xff] %vm611, %v3514
      %3642 = vst.msk [vmem:[%s3632 + $0x48] sm:$0xff] %vm611, %v3519
      %3643 = vst.msk [vmem:[%s3632 + $0x50] sm:$0xff] %vm611, %v3524
      %3644 = vst.msk [vmem:[%s3632 + $0x58] sm:$0xff] %vm611, %v3529
      %3645 = vst.msk [vmem:[%s3632 + $0x60] sm:$0xff] %vm611, %v3534
      %3646 = vst.msk [vmem:[%s3632 + $0x68] sm:$0xff] %vm611, %v3539
      %3647 = vst.msk [vmem:[%s3632 + $0x70] sm:$0xff] %vm611, %v3544
      %3648 = vst.msk [vmem:[%s3632 + $0x78] sm:$0xff] %vm611, %v3549
      %3649 = vst.msk [vmem:[%s3632 + $0x80] sm:$0xff] %vm611, %v3554
      %3650 = vst.msk [vmem:[%s3632 + $0x88] sm:$0xff] %vm611, %v3559
      %3651 = vst.msk [vmem:[%s3632 + $0x90] sm:$0xff] %vm611, %v3564
      %3652 = vst.msk [vmem:[%s3632 + $0x98] sm:$0xff] %vm611, %v3569
      %3653 = vst.msk [vmem:[%s3632 + $0xa0] sm:$0xff] %vm611, %v3574
      %3654 = vst.msk [vmem:[%s3632 + $0xa8] sm:$0xff] %vm611, %v3579
      %3655 = vst.msk [vmem:[%s3632 + $0xb0] sm:$0xff] %vm611, %v3584
      %3656 = vst.msk [vmem:[%s3632 + $0xb8] sm:$0xff] %vm611, %v3589
      %3657 = vst.msk [vmem:[%s3632 + $0xc0] sm:$0xff] %vm611, %v3594
      %3658 = vst.msk [vmem:[%s3632 + $0xc8] sm:$0xff] %vm611, %v3599
      %3659 = vst.msk [vmem:[%s3632 + $0xd0] sm:$0xff] %vm611, %v3604
      %3660 = vst.msk [vmem:[%s3632 + $0xd8] sm:$0xff] %vm611, %v3609
      %3661 = vst.msk [vmem:[%s3632 + $0xe0] sm:$0xff] %vm611, %v3614
      %3662 = vst.msk [vmem:[%s3632 + $0xe8] sm:$0xff] %vm611, %v3619
      %3663 = vst.msk [vmem:[%s3632 + $0xf0] sm:$0xff] %vm611, %v3624
      %3664 = vst.msk [vmem:[%s3632 + $0xf8] sm:$0xff] %vm611, %v3629
      %s3665 = smul.u32 32, %s23
      %p3666 = scmp.lt.s32.totalorder %s22, 1
      %s3667 = scalar_select %p3666, %s22, 1
      %p3668 = scmp.lt.s32.totalorder %s3665, 31
      %s3669 = scalar_select %p3668, %s3665, 31
      %s3670 = smul.addr %s3667, 128
      %s3671 = sadd.s32 %s3669, %s3670
      %s3672 = smul.addr %s3671, 8
      %s3673 = scalar_lea.vmem %s4, %s3672
      %s3674 = smul.u32 32, %s23
      %p3675 = scmp.lt.s32.totalorder %s22, 1
      %s3676 = scalar_select %p3675, %s22, 1
      %p3677 = scmp.lt.s32.totalorder %s3674, 31
      %s3678 = scalar_select %p3677, %s3674, 31
      %s3679 = smul.addr %s3676, 128
      %s3680 = sadd.s32 %s3678, %s3679
      %s3681 = smul.addr %s3680, 8
      %s3682 = scalar_lea.vmem %s5, %s3681
      %s3683 = smul.u32 32, %s23
      %p3684 = scmp.lt.s32.totalorder %s22, 1
      %s3685 = scalar_select %p3684, %s22, 1
      %p3686 = scmp.lt.s32.totalorder %s3683, 31
      %s3687 = scalar_select %p3686, %s3683, 31
      %s3688 = smul.addr %s3685, 128
      %s3689 = sadd.s32 %s3687, %s3688
      %s3690 = smul.addr %s3689, 8
      %s3691 = scalar_lea.vmem %s6, %s3690
      // Predicated region
      $region37: #{tpu_custom_call.1} parent=35 // pred_check
        %p3692 = pneg %p141
      $region38: #{tpu_custom_call.1} parent=35 // pred_check_branch
        %3694 = sbr.rel (%p3692) target = $region40
      $region39: #{tpu_custom_call.1} parent=35 // pred_region
        %s3695 = smul.u32 32, %s23
      $region40: #{tpu_custom_call.1} parent=35 // pred_fallthru
        _
      // Predicated region
      $region41: #{tpu_custom_call.1} parent=35 // pred_check
        %p3696 = pneg %p169
      $region42: #{tpu_custom_call.1} parent=35 // pred_check_branch
        %3698 = sbr.rel (%p3696) target = $region44
      $region43: #{tpu_custom_call.1} parent=35 // pred_region
        %s3699 = smul.u32 32, %s23
      $region44: #{tpu_custom_call.1} parent=35 // pred_fallthru
        _
      // Predicated region
      $region45: #{tpu_custom_call.1} parent=35 // pred_check
        %p3700 = pneg %p197
      $region46: #{tpu_custom_call.1} parent=35 // pred_check_branch
        %3702 = sbr.rel (%p3700) target = $region48
      $region47: #{tpu_custom_call.1} parent=35 // pred_region
        %s3703 = smul.u32 32, %s23
      $region48: #{tpu_custom_call.1} parent=35 // pred_fallthru
        _
    $region36: #{tpu_custom_call.1} parent=5 // pred_fallthru
      _
    %p3704 = scmp.le.s32.totalorder 2, %s13
    // Predicated region
    $region49: #{tpu_custom_call.1} parent=5 // pred_check
      %p3705 = pneg %p3704
    $region50: #{tpu_custom_call.1} parent=5 // pred_check_branch
      %3707 = sbr.rel (%p3705) target = $region52
    $region51: #{tpu_custom_call.1} parent=5 // pred_region
      %s3708 = ssub.s32 %s13, 2
      // Predicated region
      $region53: #{tpu_custom_call.1} parent=51 // pred_check
        %p3709 = pneg %p147
      $region54: #{tpu_custom_call.1} parent=51 // pred_check_branch
        %3711 = sbr.rel (%p3709) target = $region56
      $region55: #{tpu_custom_call.1} parent=51 // pred_region
        %s3712 = smul.u32 32, %s25
        %p3713 = scmp.lt.s32.totalorder %s24, 1
        %s3714 = scalar_select %p3713, %s24, 1
        %p3715 = scmp.lt.s32.totalorder %s3712, 31
        %s3716 = scalar_select %p3715, %s3712, 31
        %s3717 = smul.addr %s3714, 128
        %s3718 = sadd.s32 %s3716, %s3717
        %s3719 = smul.addr %s3718, 8
        %s3720 = scalar_lea.vmem %s4, %s3719
      $region56: #{tpu_custom_call.1} parent=51 // pred_fallthru
        _
      // Predicated region
      $region57: #{tpu_custom_call.1} parent=51 // pred_check
        %p3721 = pneg %p175
      $region58: #{tpu_custom_call.1} parent=51 // pred_check_branch
        %3723 = sbr.rel (%p3721) target = $region60
      $region59: #{tpu_custom_call.1} parent=51 // pred_region
        %s3724 = smul.u32 32, %s25
        %p3725 = scmp.lt.s32.totalorder %s24, 1
        %s3726 = scalar_select %p3725, %s24, 1
        %p3727 = scmp.lt.s32.totalorder %s3724, 31
        %s3728 = scalar_select %p3727, %s3724, 31
        %s3729 = smul.addr %s3726, 128
        %s3730 = sadd.s32 %s3728, %s3729
        %s3731 = smul.addr %s3730, 8
        %s3732 = scalar_lea.vmem %s5, %s3731
      $region60: #{tpu_custom_call.1} parent=51 // pred_fallthru
        _
      // Predicated region
      $region61: #{tpu_custom_call.1} parent=51 // pred_check
        %p3733 = pneg %p203
      $region62: #{tpu_custom_call.1} parent=51 // pred_check_branch
        %3735 = sbr.rel (%p3733) target = $region64
      $region63: #{tpu_custom_call.1} parent=51 // pred_region
        %s3736 = smul.u32 32, %s25
        %p3737 = scmp.lt.s32.totalorder %s24, 1
        %s3738 = scalar_select %p3737, %s24, 1
        %p3739 = scmp.lt.s32.totalorder %s3736, 31
        %s3740 = scalar_select %p3739, %s3736, 31
        %s3741 = smul.addr %s3738, 128
        %s3742 = sadd.s32 %s3740, %s3741
        %s3743 = smul.addr %s3742, 8
        %s3744 = scalar_lea.vmem %s6, %s3743
      $region64: #{tpu_custom_call.1} parent=51 // pred_fallthru
        _
    $region52: #{tpu_custom_call.1} parent=5 // pred_fallthru
      _
  $region6: #{tpu_custom_call.1} parent=0 // loop_footer
    %s17 = sadd.s32 1, %s13
  $region7: #{tpu_custom_call.1} parent=0 // loop_footer_branch
    %12 = sbr.rel target = $region3
  $region8: #{tpu_custom_call.1} parent=0 // loop_exit
    _

</llo_original>
